<compile_context>
chip_gen: v5e
topology: v5e:2x2
jax: 0.10.0
libtpu: 0.0.40
codegen_flags: <defaults>
</compile_context>

<pallas_src>
import functools
import math

import jax
import jax.numpy as jnp
from jax.experimental import pallas as pl
from jax.experimental.pallas import tpu as pltpu  # noqa: F401  (reserved for dropout PRNG)

CFG = dict(input_size=16, hidden_size=32, num_layers=2, num_heads=4,
           out_size=8, dropout_rate=0.1)


# ----------------------------- in-kernel helpers -----------------------------
def _lstm_cell(g, c, H):
    """One LSTM cell update from pre-activation gates g (B, 4H) and cell c (B, H).

    Gate order matches PyTorch: i, f, g, o.  Nonlinearities are applied
    full-width (4H == 128 lanes -> exactly one lane-width per EUP push), then
    the gates are sliced from the results.
    """
    sg = jax.nn.sigmoid(g)                       # full (B, 4H) vreg
    tg = jnp.tanh(g)                             # full (B, 4H) vreg
    i = sg[:, 0:H]
    f = sg[:, H:2 * H]
    gg = tg[:, 2 * H:3 * H]
    o = sg[:, 3 * H:4 * H]
    c_new = f * c + i * gg
    h_new = o * jnp.tanh(c_new)
    # TODO(synk): bundle-dump audit of vrot/vsel from the 32-lane gate combines;
    # if >~2/step, reorder gate columns host-side to co-locate operands.
    return h_new, c_new


def _lstm_stack(xf, layers, *, B, T, H, need_seq):
    """Wavefront-interleaved stack of NL LSTM layers, statically unrolled over T.

    xf     : (B*T, Din) batch-major flattened input (traced value).
    layers : list of (wih_ref (Din_l, 4H), whh_ref (H, 4H), b_ref (1, 4H)) with
             b = b_ih + b_hh, weights pre-transposed host-side.
    Returns (seq_flat (B*T, H) or None, h_last (B, H)).  Zero initial h, c.

    Layer 0's input projection is hoisted over the whole sequence (one matmul);
    layers >= 1 take layer (l-1)'s h_t directly in the same unrolled step, so
    the serial dependence chain is ~T+NL-1 cell updates instead of NL*T and
    there is no intermediate stack/reshape handoff between layers.
    """
    NL = len(layers)
    wih0_ref, whh0_ref, b0_ref = layers[0]
    gx0 = (jnp.dot(xf, wih0_ref[...], preferred_element_type=jnp.float32)
           + b0_ref[...]).reshape(B, T, 4 * H)          # hoisted layer-0 proj
    whh0 = whh0_ref[...]
    upper = [(w[...], wh[...], b[...]) for (w, wh, b) in layers[1:]]  # load once

    hs = [jnp.zeros((B, H), jnp.float32) for _ in range(NL)]
    cs = [jnp.zeros((B, H), jnp.float32) for _ in range(NL)]
    outs = []
    for t in range(T):                                   # static unroll
        g = gx0[:, t, :] + jnp.dot(hs[0], whh0, preferred_element_type=jnp.float32)
        hs[0], cs[0] = _lstm_cell(g, cs[0], H)
        xin = hs[0]
        for l in range(1, NL):                           # wavefront: same step t
            wih, whh, b = upper[l - 1]
            g = (jnp.dot(xin, wih, preferred_element_type=jnp.float32) + b
                 + jnp.dot(hs[l], whh, preferred_element_type=jnp.float32))
            hs[l], cs[l] = _lstm_cell(g, cs[l], H)
            xin = hs[l]
        if need_seq:
            outs.append(xin)
    if need_seq:
        seq = jnp.stack(outs, axis=1).reshape(B * T, H)  # only for enc -> attn
        return seq, hs[-1]
    return None, hs[-1]


def _mha_dense1(xf, wqkv_ref, bqkv_ref, wcomb_ref, bcomb_ref, *, B, T, H, NH, O):
    """Multi-head self-attention + dense1 on a (B*T, H) batch-major slab.

    wqkv_ref  : (H, 3H)     fused in-projection (query scale pre-folded)
    bqkv_ref  : (1, 3H)
    wcomb_ref : (NH, hd, O) per-head out-projection with dense1 folded in
    bcomb_ref : (1, O)      folded bias (bo @ Wd1^T + bd1)
    Matches PyTorch nn.MultiheadAttention self-attention over T (no masks),
    followed by dense1 (both linear, folded exactly).
    """
    hd = H // NH
    qkv = (jnp.dot(xf, wqkv_ref[...], preferred_element_type=jnp.float32)
           + bqkv_ref[...])                              # (B*T, 3H) one MXU push
    acc = jnp.zeros((B * T, O), jnp.float32)
    for hh in range(NH):                                 # static unroll over heads
        q = qkv[:, hh * hd:(hh + 1) * hd].reshape(B, T, hd)
        k = qkv[:, H + hh * hd:H + (hh + 1) * hd].reshape(B, T, hd)
        v = qkv[:, 2 * H + hh * hd:2 * H + (hh + 1) * hd].reshape(B, T, hd)
        s = jnp.einsum('bqd,bkd->bqk', q, k,
                       preferred_element_type=jnp.float32)       # (B, T, T)
        s = s - jnp.max(s, axis=-1, keepdims=True)
        p = jnp.exp(s)
        p = p * pl.reciprocal(jnp.sum(p, axis=-1, keepdims=True), approx=True)
        ctx = jnp.einsum('bqk,bkd->bqd', p, v,
                         preferred_element_type=jnp.float32)     # (B, T, hd)
        # Per-head accumulation of the folded (out_proj @ dense1) projection.
        acc = acc + jnp.dot(ctx.reshape(B * T, hd), wcomb_ref[hh],
                            preferred_element_type=jnp.float32)
    return acc + bcomb_ref[...]                          # (B*T, O)


# ------------------------------- fused kernel --------------------------------
def fused_forward_kernel(*refs, B, T, Din, H, O, NH, NL):
    it = iter(refs)
    x_ref = next(it)
    enc = [(next(it), next(it), next(it)) for _ in range(NL)]
    wqkv_ref, bqkv_ref, wcomb_ref, bcomb_ref = (next(it), next(it),
                                                next(it), next(it))
    dec = [(next(it), next(it), next(it)) for _ in range(NL)]
    wfc_ref, bfc_ref = next(it), next(it)
    out_ref = next(it)

    # ---- encoder LSTM stack (batch-major (B*T, .) slab, wavefronted) ----
    seq = x_ref[...].reshape(B * T, Din)
    seq, _ = _lstm_stack(seq, enc, B=B, T=T, H=H, need_seq=True)

    # ---- self-attention + dense1 (dense1 folded into the out-projection) ----
    seq = _mha_dense1(seq, wqkv_ref, bqkv_ref, wcomb_ref, bcomb_ref,
                      B=B, T=T, H=H, NH=NH, O=O)         # (B*T, O)

    # ---- decoder LSTM stack (only the last hidden state is needed) ----
    _, h_last = _lstm_stack(seq, dec, B=B, T=T, H=H, need_seq=False)

    # Dropout(p) is identity in eval mode.
    # TODO(synk): add pltpu.prng_seed/prng_random_bits dropout mask for training.
    out_ref[...] = (jnp.dot(h_last, wfc_ref[...], preferred_element_type=jnp.float32)
                    + bfc_ref[...])                      # (B, O)


# --------------------------------- wrapper ------------------------------------
def _cost_estimate(args, *, B, T, Din, H, O, NH, NL):
    hd = H // NH
    flops = 0
    flops += 2 * (B * T) * Din * 4 * H                       # enc L0 input proj
    flops += 2 * (B * T) * O * 4 * H                         # dec L0 input proj
    flops += 2 * (NL - 1) * T * (2 * B * H * 4 * H)          # upper input projs (enc+dec)
    flops += 2 * NL * T * (2 * B * H * 4 * H)                # recurrent h@Whh (enc+dec)
    flops += 2 * (B * T) * H * 3 * H                         # fused QKV
    flops += NH * 2 * (2 * B * T * T * hd)                   # scores + context
    flops += 2 * (B * T) * H * O                             # out-proj (dense1 folded)
    flops += 2 * B * H * O                                   # fc
    trans = 2 * NL * T * (2 * B * 4 * H + B * H)             # sigmoid/tanh/tanh(c)
    trans += NH * B * T * T + NH * B * T                     # softmax exp + recip
    bytes_accessed = sum(int(a.size) * a.dtype.itemsize for a in args) + B * O * 4
    return pl.CostEstimate(flops=int(flops), transcendentals=int(trans),
                           bytes_accessed=int(bytes_accessed))


def attention_lstm_forward(x, params, cfg):
    B, T, Din = x.shape
    H, O = cfg['hidden_size'], cfg['out_size']
    NH, NL = cfg['num_heads'], cfg['num_layers']

    args = [x]
    for layer in params['enc_lstm']:
        args.extend(layer)
    args.extend(params['mha'])            # wqkv, bqkv, w_comb(heads), b_comb
    for layer in params['dec_lstm']:
        args.extend(layer)
    args.extend(params['fc'])

    kernel = functools.partial(fused_forward_kernel, B=B, T=T, Din=Din,
                               H=H, O=O, NH=NH, NL=NL)
    # Single fused call, no grid: all weights + activations live in VMEM.
    return pl.pallas_call(
        kernel,
        out_shape=jax.ShapeDtypeStruct((B, O), jnp.float32),
        cost_estimate=_cost_estimate(args, B=B, T=T, Din=Din, H=H, O=O,
                                     NH=NH, NL=NL),
    )(*args)


# --------------------------------- parameters ---------------------------------
def init_params(key, cfg):
    H, D, L = cfg['hidden_size'], cfg['input_size'], cfg['num_layers']
    O, NH = cfg['out_size'], cfg['num_heads']
    hd = H // NH
    wscale = 0.1
    keys = iter(jax.random.split(key, 64))

    def nrm(shape):
        return wscale * jax.random.normal(next(keys), shape, jnp.float32)

    def lstm_stack(in_size):
        layers = []
        for l in range(L):
            din = in_size if l == 0 else H
            w_ih = nrm((4 * H, din))          # PyTorch layout (4H, Din)
            w_hh = nrm((4 * H, H))
            b_ih = nrm((4 * H,))
            b_hh = nrm((4 * H,))
            # kernel consumes transposed weights and fused bias
            layers.append((w_ih.T, w_hh.T, (b_ih + b_hh).reshape(1, 4 * H)))
        return layers

    enc = lstm_stack(D)                       # encoder LSTM: input_size -> H
    dec = lstm_stack(O)                       # decoder LSTM: out_size  -> H

    # nn.MultiheadAttention params (PyTorch layout), fused/folded host-side.
    in_proj_w = nrm((3 * H, H))
    in_proj_b = nrm((3 * H,))
    out_proj_w = nrm((H, H))
    out_proj_b = nrm((H,))
    d1_w, d1_b = nrm((O, H)), nrm((O,))
    fc_w, fc_b = nrm((O, H)), nrm((O,))

    head_scale = 1.0 / math.sqrt(hd)
    wqkv = in_proj_w.T                        # (H, 3H): cols [Q | K | V]
    bqkv = in_proj_b
    # Fold the 1/sqrt(head_dim) query scale into Wq / bq (exact).
    wqkv = wqkv.at[:, 0:H].multiply(head_scale)
    bqkv = bqkv.at[0:H].multiply(head_scale)
    # Fold dense1 into the attention output projection (exact: the reference
    # applies dense1 directly on the attention output, no activation between).
    w_comb = out_proj_w.T @ d1_w.T            # (H, O)
    b_comb = out_proj_b @ d1_w.T + d1_b       # (O,)
    mha_p = [wqkv, bqkv.reshape(1, 3 * H),
             w_comb.reshape(NH, hd, O),       # per-head slabs, leading ref axis
             b_comb.reshape(1, O)]

    return dict(enc_lstm=enc,
                mha=mha_p,
                dec_lstm=dec,
                fc=[fc_w.T, fc_b.reshape(1, O)])


if __name__ == "__main__":
    key = jax.random.PRNGKey(0)
    pkey, xkey = jax.random.split(key)
    params = init_params(pkey, CFG)

    B, T = 2, 8
    x = jax.random.normal(xkey, (B, T, CFG['input_size']), jnp.float32)

    y = attention_lstm_forward(x, params, CFG)
    y = jax.block_until_ready(y)
    assert y.shape == (B, CFG['out_size'])
    print("KERNEL_OK")
</pallas_src>

<mosaic_0001>
module attributes {stable_mosaic.version = 11 : i64} {
  func.func @fused_forward_kernel(%arg0: memref<2x8x16xf32, #tpu.memory_space<vmem>>, %arg1: memref<16x128xf32, #tpu.memory_space<vmem>>, %arg2: memref<32x128xf32, #tpu.memory_space<vmem>>, %arg3: memref<1x128xf32, #tpu.memory_space<vmem>>, %arg4: memref<32x128xf32, #tpu.memory_space<vmem>>, %arg5: memref<32x128xf32, #tpu.memory_space<vmem>>, %arg6: memref<1x128xf32, #tpu.memory_space<vmem>>, %arg7: memref<32x96xf32, #tpu.memory_space<vmem>>, %arg8: memref<1x96xf32, #tpu.memory_space<vmem>>, %arg9: memref<4x8x8xf32, #tpu.memory_space<vmem>>, %arg10: memref<1x8xf32, #tpu.memory_space<vmem>>, %arg11: memref<8x128xf32, #tpu.memory_space<vmem>>, %arg12: memref<32x128xf32, #tpu.memory_space<vmem>>, %arg13: memref<1x128xf32, #tpu.memory_space<vmem>>, %arg14: memref<32x128xf32, #tpu.memory_space<vmem>>, %arg15: memref<32x128xf32, #tpu.memory_space<vmem>>, %arg16: memref<1x128xf32, #tpu.memory_space<vmem>>, %arg17: memref<32x8xf32, #tpu.memory_space<vmem>>, %arg18: memref<1x8xf32, #tpu.memory_space<vmem>>, %arg19: memref<2x8xf32, #tpu.memory_space<vmem>>) attributes {dimension_semantics = [], scalar_prefetch = 0 : i64, scratch_operands = 0 : i64, tpu.core_type = #tpu.core_type<tc>} {
    %c0 = arith.constant 0 : index
    %c0_0 = arith.constant 0 : index
    %c0_1 = arith.constant 0 : index
    %0 = vector.load %arg0[%c0, %c0_0, %c0_1] : memref<2x8x16xf32, #tpu.memory_space<vmem>>, vector<2x8x16xf32>
    %1 = vector.shape_cast %0 : vector<2x8x16xf32> to vector<16x16xf32>
    %c0_2 = arith.constant 0 : index
    %c0_3 = arith.constant 0 : index
    %2 = vector.load %arg1[%c0_2, %c0_3] : memref<16x128xf32, #tpu.memory_space<vmem>>, vector<16x128xf32>
    %cst = arith.constant dense<0.000000e+00> : vector<16x128xf32>
    %3 = tpu.matmul %1, %2, %cst {dimension_numbers = #tpu.dot_dimension_numbers<[1], [0], [0], [1], [0, 0, 1, 1], [], []>} : vector<16x16xf32>, vector<16x128xf32>, vector<16x128xf32> -> vector<16x128xf32>
    %c0_4 = arith.constant 0 : index
    %c0_5 = arith.constant 0 : index
    %4 = vector.load %arg3[%c0_4, %c0_5] : memref<1x128xf32, #tpu.memory_space<vmem>>, vector<1x128xf32>
    %5 = vector.broadcast %4 : vector<1x128xf32> to vector<16x128xf32>
    %6 = arith.addf %3, %5 : vector<16x128xf32>
    %7 = vector.shape_cast %6 : vector<16x128xf32> to vector<2x8x128xf32>
    %c0_6 = arith.constant 0 : index
    %c0_7 = arith.constant 0 : index
    %8 = vector.load %arg2[%c0_6, %c0_7] : memref<32x128xf32, #tpu.memory_space<vmem>>, vector<32x128xf32>
    %c0_8 = arith.constant 0 : index
    %c0_9 = arith.constant 0 : index
    %9 = vector.load %arg4[%c0_8, %c0_9] : memref<32x128xf32, #tpu.memory_space<vmem>>, vector<32x128xf32>
    %c0_10 = arith.constant 0 : index
    %c0_11 = arith.constant 0 : index
    %10 = vector.load %arg5[%c0_10, %c0_11] : memref<32x128xf32, #tpu.memory_space<vmem>>, vector<32x128xf32>
    %c0_12 = arith.constant 0 : index
    %c0_13 = arith.constant 0 : index
    %11 = vector.load %arg6[%c0_12, %c0_13] : memref<1x128xf32, #tpu.memory_space<vmem>>, vector<1x128xf32>
    %cst_14 = arith.constant 0.000000e+00 : f32
    %12 = vector.broadcast %cst_14 : f32 to vector<2x32xf32>
    %cst_15 = arith.constant 0.000000e+00 : f32
    %13 = vector.broadcast %cst_15 : f32 to vector<2x32xf32>
    %cst_16 = arith.constant 0.000000e+00 : f32
    %14 = vector.broadcast %cst_16 : f32 to vector<2x32xf32>
    %cst_17 = arith.constant 0.000000e+00 : f32
    %15 = vector.broadcast %cst_17 : f32 to vector<2x32xf32>
    %16 = vector.extract_strided_slice %7 {offsets = [0, 0, 0], sizes = [2, 1, 128], strides = [1, 1, 1]} : vector<2x8x128xf32> to vector<2x1x128xf32>
    %17 = vector.shape_cast %16 : vector<2x1x128xf32> to vector<2x128xf32>
    %cst_18 = arith.constant dense<0.000000e+00> : vector<2x128xf32>
    %18 = tpu.matmul %12, %8, %cst_18 {dimension_numbers = #tpu.dot_dimension_numbers<[1], [0], [0], [1], [0, 0, 1, 1], [], []>} : vector<2x32xf32>, vector<32x128xf32>, vector<2x128xf32> -> vector<2x128xf32>
    %19 = arith.addf %17, %18 : vector<2x128xf32>
    %20 = arith.negf %19 : vector<2x128xf32>
    %21 = math.exp %20 : vector<2x128xf32>
    %cst_19 = arith.constant 1.000000e+00 : f32
    %22 = vector.broadcast %cst_19 : f32 to vector<2x128xf32>
    %23 = arith.addf %22, %21 : vector<2x128xf32>
    %24 = arith.divf %22, %23 : vector<2x128xf32>
    %25 = math.tanh %19 : vector<2x128xf32>
    %26 = vector.extract_strided_slice %24 {offsets = [0, 0], sizes = [2, 32], strides = [1, 1]} : vector<2x128xf32> to vector<2x32xf32>
    %27 = vector.extract_strided_slice %24 {offsets = [0, 32], sizes = [2, 32], strides = [1, 1]} : vector<2x128xf32> to vector<2x32xf32>
    %28 = vector.extract_strided_slice %25 {offsets = [0, 64], sizes = [2, 32], strides = [1, 1]} : vector<2x128xf32> to vector<2x32xf32>
    %29 = vector.extract_strided_slice %24 {offsets = [0, 96], sizes = [2, 32], strides = [1, 1]} : vector<2x128xf32> to vector<2x32xf32>
    %30 = arith.mulf %27, %14 : vector<2x32xf32>
    %31 = arith.mulf %26, %28 : vector<2x32xf32>
    %32 = arith.addf %30, %31 : vector<2x32xf32>
    %33 = math.tanh %32 : vector<2x32xf32>
    %34 = arith.mulf %29, %33 : vector<2x32xf32>
    %cst_20 = arith.constant dense<0.000000e+00> : vector<2x128xf32>
    %35 = tpu.matmul %34, %9, %cst_20 {dimension_numbers = #tpu.dot_dimension_numbers<[1], [0], [0], [1], [0, 0, 1, 1], [], []>} : vector<2x32xf32>, vector<32x128xf32>, vector<2x128xf32> -> vector<2x128xf32>
    %36 = vector.broadcast %11 : vector<1x128xf32> to vector<2x128xf32>
    %37 = arith.addf %35, %36 : vector<2x128xf32>
    %cst_21 = arith.constant dense<0.000000e+00> : vector<2x128xf32>
    %38 = tpu.matmul %13, %10, %cst_21 {dimension_numbers = #tpu.dot_dimension_numbers<[1], [0], [0], [1], [0, 0, 1, 1], [], []>} : vector<2x32xf32>, vector<32x128xf32>, vector<2x128xf32> -> vector<2x128xf32>
    %39 = arith.addf %37, %38 : vector<2x128xf32>
    %40 = arith.negf %39 : vector<2x128xf32>
    %41 = math.exp %40 : vector<2x128xf32>
    %cst_22 = arith.constant 1.000000e+00 : f32
    %42 = vector.broadcast %cst_22 : f32 to vector<2x128xf32>
    %43 = arith.addf %42, %41 : vector<2x128xf32>
    %44 = arith.divf %42, %43 : vector<2x128xf32>
    %45 = math.tanh %39 : vector<2x128xf32>
    %46 = vector.extract_strided_slice %44 {offsets = [0, 0], sizes = [2, 32], strides = [1, 1]} : vector<2x128xf32> to vector<2x32xf32>
    %47 = vector.extract_strided_slice %44 {offsets = [0, 32], sizes = [2, 32], strides = [1, 1]} : vector<2x128xf32> to vector<2x32xf32>
    %48 = vector.extract_strided_slice %45 {offsets = [0, 64], sizes = [2, 32], strides = [1, 1]} : vector<2x128xf32> to vector<2x32xf32>
    %49 = vector.extract_strided_slice %44 {offsets = [0, 96], sizes = [2, 32], strides = [1, 1]} : vector<2x128xf32> to vector<2x32xf32>
    %50 = arith.mulf %47, %15 : vector<2x32xf32>
    %51 = arith.mulf %46, %48 : vector<2x32xf32>
    %52 = arith.addf %50, %51 : vector<2x32xf32>
    %53 = math.tanh %52 : vector<2x32xf32>
    %54 = arith.mulf %49, %53 : vector<2x32xf32>
    %55 = vector.extract_strided_slice %7 {offsets = [0, 1, 0], sizes = [2, 1, 128], strides = [1, 1, 1]} : vector<2x8x128xf32> to vector<2x1x128xf32>
    %56 = vector.shape_cast %55 : vector<2x1x128xf32> to vector<2x128xf32>
    %cst_23 = arith.constant dense<0.000000e+00> : vector<2x128xf32>
    %57 = tpu.matmul %34, %8, %cst_23 {dimension_numbers = #tpu.dot_dimension_numbers<[1], [0], [0], [1], [0, 0, 1, 1], [], []>} : vector<2x32xf32>, vector<32x128xf32>, vector<2x128xf32> -> vector<2x128xf32>
    %58 = arith.addf %56, %57 : vector<2x128xf32>
    %59 = arith.negf %58 : vector<2x128xf32>
    %60 = math.exp %59 : vector<2x128xf32>
    %cst_24 = arith.constant 1.000000e+00 : f32
    %61 = vector.broadcast %cst_24 : f32 to vector<2x128xf32>
    %62 = arith.addf %61, %60 : vector<2x128xf32>
    %63 = arith.divf %61, %62 : vector<2x128xf32>
    %64 = math.tanh %58 : vector<2x128xf32>
    %65 = vector.extract_strided_slice %63 {offsets = [0, 0], sizes = [2, 32], strides = [1, 1]} : vector<2x128xf32> to vector<2x32xf32>
    %66 = vector.extract_strided_slice %63 {offsets = [0, 32], sizes = [2, 32], strides = [1, 1]} : vector<2x128xf32> to vector<2x32xf32>
    %67 = vector.extract_strided_slice %64 {offsets = [0, 64], sizes = [2, 32], strides = [1, 1]} : vector<2x128xf32> to vector<2x32xf32>
    %68 = vector.extract_strided_slice %63 {offsets = [0, 96], sizes = [2, 32], strides = [1, 1]} : vector<2x128xf32> to vector<2x32xf32>
    %69 = arith.mulf %66, %32 : vector<2x32xf32>
    %70 = arith.mulf %65, %67 : vector<2x32xf32>
    %71 = arith.addf %69, %70 : vector<2x32xf32>
    %72 = math.tanh %71 : vector<2x32xf32>
    %73 = arith.mulf %68, %72 : vector<2x32xf32>
    %cst_25 = arith.constant dense<0.000000e+00> : vector<2x128xf32>
    %74 = tpu.matmul %73, %9, %cst_25 {dimension_numbers = #tpu.dot_dimension_numbers<[1], [0], [0], [1], [0, 0, 1, 1], [], []>} : vector<2x32xf32>, vector<32x128xf32>, vector<2x128xf32> -> vector<2x128xf32>
    %75 = vector.broadcast %11 : vector<1x128xf32> to vector<2x128xf32>
    %76 = arith.addf %74, %75 : vector<2x128xf32>
    %cst_26 = arith.constant dense<0.000000e+00> : vector<2x128xf32>
    %77 = tpu.matmul %54, %10, %cst_26 {dimension_numbers = #tpu.dot_dimension_numbers<[1], [0], [0], [1], [0, 0, 1, 1], [], []>} : vector<2x32xf32>, vector<32x128xf32>, vector<2x128xf32> -> vector<2x128xf32>
    %78 = arith.addf %76, %77 : vector<2x128xf32>
    %79 = arith.negf %78 : vector<2x128xf32>
    %80 = math.exp %79 : vector<2x128xf32>
    %cst_27 = arith.constant 1.000000e+00 : f32
    %81 = vector.broadcast %cst_27 : f32 to vector<2x128xf32>
    %82 = arith.addf %81, %80 : vector<2x128xf32>
    %83 = arith.divf %81, %82 : vector<2x128xf32>
    %84 = math.tanh %78 : vector<2x128xf32>
    %85 = vector.extract_strided_slice %83 {offsets = [0, 0], sizes = [2, 32], strides = [1, 1]} : vector<2x128xf32> to vector<2x32xf32>
    %86 = vector.extract_strided_slice %83 {offsets = [0, 32], sizes = [2, 32], strides = [1, 1]} : vector<2x128xf32> to vector<2x32xf32>
    %87 = vector.extract_strided_slice %84 {offsets = [0, 64], sizes = [2, 32], strides = [1, 1]} : vector<2x128xf32> to vector<2x32xf32>
    %88 = vector.extract_strided_slice %83 {offsets = [0, 96], sizes = [2, 32], strides = [1, 1]} : vector<2x128xf32> to vector<2x32xf32>
    %89 = arith.mulf %86, %52 : vector<2x32xf32>
    %90 = arith.mulf %85, %87 : vector<2x32xf32>
    %91 = arith.addf %89, %90 : vector<2x32xf32>
    %92 = math.tanh %91 : vector<2x32xf32>
    %93 = arith.mulf %88, %92 : vector<2x32xf32>
    %94 = vector.extract_strided_slice %7 {offsets = [0, 2, 0], sizes = [2, 1, 128], strides = [1, 1, 1]} : vector<2x8x128xf32> to vector<2x1x128xf32>
    %95 = vector.shape_cast %94 : vector<2x1x128xf32> to vector<2x128xf32>
    %cst_28 = arith.constant dense<0.000000e+00> : vector<2x128xf32>
    %96 = tpu.matmul %73, %8, %cst_28 {dimension_numbers = #tpu.dot_dimension_numbers<[1], [0], [0], [1], [0, 0, 1, 1], [], []>} : vector<2x32xf32>, vector<32x128xf32>, vector<2x128xf32> -> vector<2x128xf32>
    %97 = arith.addf %95, %96 : vector<2x128xf32>
    %98 = arith.negf %97 : vector<2x128xf32>
    %99 = math.exp %98 : vector<2x128xf32>
    %cst_29 = arith.constant 1.000000e+00 : f32
    %100 = vector.broadcast %cst_29 : f32 to vector<2x128xf32>
    %101 = arith.addf %100, %99 : vector<2x128xf32>
    %102 = arith.divf %100, %101 : vector<2x128xf32>
    %103 = math.tanh %97 : vector<2x128xf32>
    %104 = vector.extract_strided_slice %102 {offsets = [0, 0], sizes = [2, 32], strides = [1, 1]} : vector<2x128xf32> to vector<2x32xf32>
    %105 = vector.extract_strided_slice %102 {offsets = [0, 32], sizes = [2, 32], strides = [1, 1]} : vector<2x128xf32> to vector<2x32xf32>
    %106 = vector.extract_strided_slice %103 {offsets = [0, 64], sizes = [2, 32], strides = [1, 1]} : vector<2x128xf32> to vector<2x32xf32>
    %107 = vector.extract_strided_slice %102 {offsets = [0, 96], sizes = [2, 32], strides = [1, 1]} : vector<2x128xf32> to vector<2x32xf32>
    %108 = arith.mulf %105, %71 : vector<2x32xf32>
    %109 = arith.mulf %104, %106 : vector<2x32xf32>
    %110 = arith.addf %108, %109 : vector<2x32xf32>
    %111 = math.tanh %110 : vector<2x32xf32>
    %112 = arith.mulf %107, %111 : vector<2x32xf32>
    %cst_30 = arith.constant dense<0.000000e+00> : vector<2x128xf32>
    %113 = tpu.matmul %112, %9, %cst_30 {dimension_numbers = #tpu.dot_dimension_numbers<[1], [0], [0], [1], [0, 0, 1, 1], [], []>} : vector<2x32xf32>, vector<32x128xf32>, vector<2x128xf32> -> vector<2x128xf32>
    %114 = vector.broadcast %11 : vector<1x128xf32> to vector<2x128xf32>
    %115 = arith.addf %113, %114 : vector<2x128xf32>
    %cst_31 = arith.constant dense<0.000000e+00> : vector<2x128xf32>
    %116 = tpu.matmul %93, %10, %cst_31 {dimension_numbers = #tpu.dot_dimension_numbers<[1], [0], [0], [1], [0, 0, 1, 1], [], []>} : vector<2x32xf32>, vector<32x128xf32>, vector<2x128xf32> -> vector<2x128xf32>
    %117 = arith.addf %115, %116 : vector<2x128xf32>
    %118 = arith.negf %117 : vector<2x128xf32>
    %119 = math.exp %118 : vector<2x128xf32>
    %cst_32 = arith.constant 1.000000e+00 : f32
    %120 = vector.broadcast %cst_32 : f32 to vector<2x128xf32>
    %121 = arith.addf %120, %119 : vector<2x128xf32>
    %122 = arith.divf %120, %121 : vector<2x128xf32>
    %123 = math.tanh %117 : vector<2x128xf32>
    %124 = vector.extract_strided_slice %122 {offsets = [0, 0], sizes = [2, 32], strides = [1, 1]} : vector<2x128xf32> to vector<2x32xf32>
    %125 = vector.extract_strided_slice %122 {offsets = [0, 32], sizes = [2, 32], strides = [1, 1]} : vector<2x128xf32> to vector<2x32xf32>
    %126 = vector.extract_strided_slice %123 {offsets = [0, 64], sizes = [2, 32], strides = [1, 1]} : vector<2x128xf32> to vector<2x32xf32>
    %127 = vector.extract_strided_slice %122 {offsets = [0, 96], sizes = [2, 32], strides = [1, 1]} : vector<2x128xf32> to vector<2x32xf32>
    %128 = arith.mulf %125, %91 : vector<2x32xf32>
    %129 = arith.mulf %124, %126 : vector<2x32xf32>
    %130 = arith.addf %128, %129 : vector<2x32xf32>
    %131 = math.tanh %130 : vector<2x32xf32>
    %132 = arith.mulf %127, %131 : vector<2x32xf32>
    %133 = vector.extract_strided_slice %7 {offsets = [0, 3, 0], sizes = [2, 1, 128], strides = [1, 1, 1]} : vector<2x8x128xf32> to vector<2x1x128xf32>
    %134 = vector.shape_cast %133 : vector<2x1x128xf32> to vector<2x128xf32>
    %cst_33 = arith.constant dense<0.000000e+00> : vector<2x128xf32>
    %135 = tpu.matmul %112, %8, %cst_33 {dimension_numbers = #tpu.dot_dimension_numbers<[1], [0], [0], [1], [0, 0, 1, 1], [], []>} : vector<2x32xf32>, vector<32x128xf32>, vector<2x128xf32> -> vector<2x128xf32>
    %136 = arith.addf %134, %135 : vector<2x128xf32>
    %137 = arith.negf %136 : vector<2x128xf32>
    %138 = math.exp %137 : vector<2x128xf32>
    %cst_34 = arith.constant 1.000000e+00 : f32
    %139 = vector.broadcast %cst_34 : f32 to vector<2x128xf32>
    %140 = arith.addf %139, %138 : vector<2x128xf32>
    %141 = arith.divf %139, %140 : vector<2x128xf32>
    %142 = math.tanh %136 : vector<2x128xf32>
    %143 = vector.extract_strided_slice %141 {offsets = [0, 0], sizes = [2, 32], strides = [1, 1]} : vector<2x128xf32> to vector<2x32xf32>
    %144 = vector.extract_strided_slice %141 {offsets = [0, 32], sizes = [2, 32], strides = [1, 1]} : vector<2x128xf32> to vector<2x32xf32>
    %145 = vector.extract_strided_slice %142 {offsets = [0, 64], sizes = [2, 32], strides = [1, 1]} : vector<2x128xf32> to vector<2x32xf32>
    %146 = vector.extract_strided_slice %141 {offsets = [0, 96], sizes = [2, 32], strides = [1, 1]} : vector<2x128xf32> to vector<2x32xf32>
    %147 = arith.mulf %144, %110 : vector<2x32xf32>
    %148 = arith.mulf %143, %145 : vector<2x32xf32>
    %149 = arith.addf %147, %148 : vector<2x32xf32>
    %150 = math.tanh %149 : vector<2x32xf32>
    %151 = arith.mulf %146, %150 : vector<2x32xf32>
    %cst_35 = arith.constant dense<0.000000e+00> : vector<2x128xf32>
    %152 = tpu.matmul %151, %9, %cst_35 {dimension_numbers = #tpu.dot_dimension_numbers<[1], [0], [0], [1], [0, 0, 1, 1], [], []>} : vector<2x32xf32>, vector<32x128xf32>, vector<2x128xf32> -> vector<2x128xf32>
    %153 = vector.broadcast %11 : vector<1x128xf32> to vector<2x128xf32>
    %154 = arith.addf %152, %153 : vector<2x128xf32>
    %cst_36 = arith.constant dense<0.000000e+00> : vector<2x128xf32>
    %155 = tpu.matmul %132, %10, %cst_36 {dimension_numbers = #tpu.dot_dimension_numbers<[1], [0], [0], [1], [0, 0, 1, 1], [], []>} : vector<2x32xf32>, vector<32x128xf32>, vector<2x128xf32> -> vector<2x128xf32>
    %156 = arith.addf %154, %155 : vector<2x128xf32>
    %157 = arith.negf %156 : vector<2x128xf32>
    %158 = math.exp %157 : vector<2x128xf32>
    %cst_37 = arith.constant 1.000000e+00 : f32
    %159 = vector.broadcast %cst_37 : f32 to vector<2x128xf32>
    %160 = arith.addf %159, %158 : vector<2x128xf32>
    %161 = arith.divf %159, %160 : vector<2x128xf32>
    %162 = math.tanh %156 : vector<2x128xf32>
    %163 = vector.extract_strided_slice %161 {offsets = [0, 0], sizes = [2, 32], strides = [1, 1]} : vector<2x128xf32> to vector<2x32xf32>
    %164 = vector.extract_strided_slice %161 {offsets = [0, 32], sizes = [2, 32], strides = [1, 1]} : vector<2x128xf32> to vector<2x32xf32>
    %165 = vector.extract_strided_slice %162 {offsets = [0, 64], sizes = [2, 32], strides = [1, 1]} : vector<2x128xf32> to vector<2x32xf32>
    %166 = vector.extract_strided_slice %161 {offsets = [0, 96], sizes = [2, 32], strides = [1, 1]} : vector<2x128xf32> to vector<2x32xf32>
    %167 = arith.mulf %164, %130 : vector<2x32xf32>
    %168 = arith.mulf %163, %165 : vector<2x32xf32>
    %169 = arith.addf %167, %168 : vector<2x32xf32>
    %170 = math.tanh %169 : vector<2x32xf32>
    %171 = arith.mulf %166, %170 : vector<2x32xf32>
    %172 = vector.extract_strided_slice %7 {offsets = [0, 4, 0], sizes = [2, 1, 128], strides = [1, 1, 1]} : vector<2x8x128xf32> to vector<2x1x128xf32>
    %173 = vector.shape_cast %172 : vector<2x1x128xf32> to vector<2x128xf32>
    %cst_38 = arith.constant dense<0.000000e+00> : vector<2x128xf32>
    %174 = tpu.matmul %151, %8, %cst_38 {dimension_numbers = #tpu.dot_dimension_numbers<[1], [0], [0], [1], [0, 0, 1, 1], [], []>} : vector<2x32xf32>, vector<32x128xf32>, vector<2x128xf32> -> vector<2x128xf32>
    %175 = arith.addf %173, %174 : vector<2x128xf32>
    %176 = arith.negf %175 : vector<2x128xf32>
    %177 = math.exp %176 : vector<2x128xf32>
    %cst_39 = arith.constant 1.000000e+00 : f32
    %178 = vector.broadcast %cst_39 : f32 to vector<2x128xf32>
    %179 = arith.addf %178, %177 : vector<2x128xf32>
    %180 = arith.divf %178, %179 : vector<2x128xf32>
    %181 = math.tanh %175 : vector<2x128xf32>
    %182 = vector.extract_strided_slice %180 {offsets = [0, 0], sizes = [2, 32], strides = [1, 1]} : vector<2x128xf32> to vector<2x32xf32>
    %183 = vector.extract_strided_slice %180 {offsets = [0, 32], sizes = [2, 32], strides = [1, 1]} : vector<2x128xf32> to vector<2x32xf32>
    %184 = vector.extract_strided_slice %181 {offsets = [0, 64], sizes = [2, 32], strides = [1, 1]} : vector<2x128xf32> to vector<2x32xf32>
    %185 = vector.extract_strided_slice %180 {offsets = [0, 96], sizes = [2, 32], strides = [1, 1]} : vector<2x128xf32> to vector<2x32xf32>
    %186 = arith.mulf %183, %149 : vector<2x32xf32>
    %187 = arith.mulf %182, %184 : vector<2x32xf32>
    %188 = arith.addf %186, %187 : vector<2x32xf32>
    %189 = math.tanh %188 : vector<2x32xf32>
    %190 = arith.mulf %185, %189 : vector<2x32xf32>
    %cst_40 = arith.constant dense<0.000000e+00> : vector<2x128xf32>
    %191 = tpu.matmul %190, %9, %cst_40 {dimension_numbers = #tpu.dot_dimension_numbers<[1], [0], [0], [1], [0, 0, 1, 1], [], []>} : vector<2x32xf32>, vector<32x128xf32>, vector<2x128xf32> -> vector<2x128xf32>
    %192 = vector.broadcast %11 : vector<1x128xf32> to vector<2x128xf32>
    %193 = arith.addf %191, %192 : vector<2x128xf32>
    %cst_41 = arith.constant dense<0.000000e+00> : vector<2x128xf32>
    %194 = tpu.matmul %171, %10, %cst_41 {dimension_numbers = #tpu.dot_dimension_numbers<[1], [0], [0], [1], [0, 0, 1, 1], [], []>} : vector<2x32xf32>, vector<32x128xf32>, vector<2x128xf32> -> vector<2x128xf32>
    %195 = arith.addf %193, %194 : vector<2x128xf32>
    %196 = arith.negf %195 : vector<2x128xf32>
    %197 = math.exp %196 : vector<2x128xf32>
    %cst_42 = arith.constant 1.000000e+00 : f32
    %198 = vector.broadcast %cst_42 : f32 to vector<2x128xf32>
    %199 = arith.addf %198, %197 : vector<2x128xf32>
    %200 = arith.divf %198, %199 : vector<2x128xf32>
    %201 = math.tanh %195 : vector<2x128xf32>
    %202 = vector.extract_strided_slice %200 {offsets = [0, 0], sizes = [2, 32], strides = [1, 1]} : vector<2x128xf32> to vector<2x32xf32>
    %203 = vector.extract_strided_slice %200 {offsets = [0, 32], sizes = [2, 32], strides = [1, 1]} : vector<2x128xf32> to vector<2x32xf32>
    %204 = vector.extract_strided_slice %201 {offsets = [0, 64], sizes = [2, 32], strides = [1, 1]} : vector<2x128xf32> to vector<2x32xf32>
    %205 = vector.extract_strided_slice %200 {offsets = [0, 96], sizes = [2, 32], strides = [1, 1]} : vector<2x128xf32> to vector<2x32xf32>
    %206 = arith.mulf %203, %169 : vector<2x32xf32>
    %207 = arith.mulf %202, %204 : vector<2x32xf32>
    %208 = arith.addf %206, %207 : vector<2x32xf32>
    %209 = math.tanh %208 : vector<2x32xf32>
    %210 = arith.mulf %205, %209 : vector<2x32xf32>
    %211 = vector.extract_strided_slice %7 {offsets = [0, 5, 0], sizes = [2, 1, 128], strides = [1, 1, 1]} : vector<2x8x128xf32> to vector<2x1x128xf32>
    %212 = vector.shape_cast %211 : vector<2x1x128xf32> to vector<2x128xf32>
    %cst_43 = arith.constant dense<0.000000e+00> : vector<2x128xf32>
    %213 = tpu.matmul %190, %8, %cst_43 {dimension_numbers = #tpu.dot_dimension_numbers<[1], [0], [0], [1], [0, 0, 1, 1], [], []>} : vector<2x32xf32>, vector<32x128xf32>, vector<2x128xf32> -> vector<2x128xf32>
    %214 = arith.addf %212, %213 : vector<2x128xf32>
    %215 = arith.negf %214 : vector<2x128xf32>
    %216 = math.exp %215 : vector<2x128xf32>
    %cst_44 = arith.constant 1.000000e+00 : f32
    %217 = vector.broadcast %cst_44 : f32 to vector<2x128xf32>
    %218 = arith.addf %217, %216 : vector<2x128xf32>
    %219 = arith.divf %217, %218 : vector<2x128xf32>
    %220 = math.tanh %214 : vector<2x128xf32>
    %221 = vector.extract_strided_slice %219 {offsets = [0, 0], sizes = [2, 32], strides = [1, 1]} : vector<2x128xf32> to vector<2x32xf32>
    %222 = vector.extract_strided_slice %219 {offsets = [0, 32], sizes = [2, 32], strides = [1, 1]} : vector<2x128xf32> to vector<2x32xf32>
    %223 = vector.extract_strided_slice %220 {offsets = [0, 64], sizes = [2, 32], strides = [1, 1]} : vector<2x128xf32> to vector<2x32xf32>
    %224 = vector.extract_strided_slice %219 {offsets = [0, 96], sizes = [2, 32], strides = [1, 1]} : vector<2x128xf32> to vector<2x32xf32>
    %225 = arith.mulf %222, %188 : vector<2x32xf32>
    %226 = arith.mulf %221, %223 : vector<2x32xf32>
    %227 = arith.addf %225, %226 : vector<2x32xf32>
    %228 = math.tanh %227 : vector<2x32xf32>
    %229 = arith.mulf %224, %228 : vector<2x32xf32>
    %cst_45 = arith.constant dense<0.000000e+00> : vector<2x128xf32>
    %230 = tpu.matmul %229, %9, %cst_45 {dimension_numbers = #tpu.dot_dimension_numbers<[1], [0], [0], [1], [0, 0, 1, 1], [], []>} : vector<2x32xf32>, vector<32x128xf32>, vector<2x128xf32> -> vector<2x128xf32>
    %231 = vector.broadcast %11 : vector<1x128xf32> to vector<2x128xf32>
    %232 = arith.addf %230, %231 : vector<2x128xf32>
    %cst_46 = arith.constant dense<0.000000e+00> : vector<2x128xf32>
    %233 = tpu.matmul %210, %10, %cst_46 {dimension_numbers = #tpu.dot_dimension_numbers<[1], [0], [0], [1], [0, 0, 1, 1], [], []>} : vector<2x32xf32>, vector<32x128xf32>, vector<2x128xf32> -> vector<2x128xf32>
    %234 = arith.addf %232, %233 : vector<2x128xf32>
    %235 = arith.negf %234 : vector<2x128xf32>
    %236 = math.exp %235 : vector<2x128xf32>
    %cst_47 = arith.constant 1.000000e+00 : f32
    %237 = vector.broadcast %cst_47 : f32 to vector<2x128xf32>
    %238 = arith.addf %237, %236 : vector<2x128xf32>
    %239 = arith.divf %237, %238 : vector<2x128xf32>
    %240 = math.tanh %234 : vector<2x128xf32>
    %241 = vector.extract_strided_slice %239 {offsets = [0, 0], sizes = [2, 32], strides = [1, 1]} : vector<2x128xf32> to vector<2x32xf32>
    %242 = vector.extract_strided_slice %239 {offsets = [0, 32], sizes = [2, 32], strides = [1, 1]} : vector<2x128xf32> to vector<2x32xf32>
    %243 = vector.extract_strided_slice %240 {offsets = [0, 64], sizes = [2, 32], strides = [1, 1]} : vector<2x128xf32> to vector<2x32xf32>
    %244 = vector.extract_strided_slice %239 {offsets = [0, 96], sizes = [2, 32], strides = [1, 1]} : vector<2x128xf32> to vector<2x32xf32>
    %245 = arith.mulf %242, %208 : vector<2x32xf32>
    %246 = arith.mulf %241, %243 : vector<2x32xf32>
    %247 = arith.addf %245, %246 : vector<2x32xf32>
    %248 = math.tanh %247 : vector<2x32xf32>
    %249 = arith.mulf %244, %248 : vector<2x32xf32>
    %250 = vector.extract_strided_slice %7 {offsets = [0, 6, 0], sizes = [2, 1, 128], strides = [1, 1, 1]} : vector<2x8x128xf32> to vector<2x1x128xf32>
    %251 = vector.shape_cast %250 : vector<2x1x128xf32> to vector<2x128xf32>
    %cst_48 = arith.constant dense<0.000000e+00> : vector<2x128xf32>
    %252 = tpu.matmul %229, %8, %cst_48 {dimension_numbers = #tpu.dot_dimension_numbers<[1], [0], [0], [1], [0, 0, 1, 1], [], []>} : vector<2x32xf32>, vector<32x128xf32>, vector<2x128xf32> -> vector<2x128xf32>
    %253 = arith.addf %251, %252 : vector<2x128xf32>
    %254 = arith.negf %253 : vector<2x128xf32>
    %255 = math.exp %254 : vector<2x128xf32>
    %cst_49 = arith.constant 1.000000e+00 : f32
    %256 = vector.broadcast %cst_49 : f32 to vector<2x128xf32>
    %257 = arith.addf %256, %255 : vector<2x128xf32>
    %258 = arith.divf %256, %257 : vector<2x128xf32>
    %259 = math.tanh %253 : vector<2x128xf32>
    %260 = vector.extract_strided_slice %258 {offsets = [0, 0], sizes = [2, 32], strides = [1, 1]} : vector<2x128xf32> to vector<2x32xf32>
    %261 = vector.extract_strided_slice %258 {offsets = [0, 32], sizes = [2, 32], strides = [1, 1]} : vector<2x128xf32> to vector<2x32xf32>
    %262 = vector.extract_strided_slice %259 {offsets = [0, 64], sizes = [2, 32], strides = [1, 1]} : vector<2x128xf32> to vector<2x32xf32>
    %263 = vector.extract_strided_slice %258 {offsets = [0, 96], sizes = [2, 32], strides = [1, 1]} : vector<2x128xf32> to vector<2x32xf32>
    %264 = arith.mulf %261, %227 : vector<2x32xf32>
    %265 = arith.mulf %260, %262 : vector<2x32xf32>
    %266 = arith.addf %264, %265 : vector<2x32xf32>
    %267 = math.tanh %266 : vector<2x32xf32>
    %268 = arith.mulf %263, %267 : vector<2x32xf32>
    %cst_50 = arith.constant dense<0.000000e+00> : vector<2x128xf32>
    %269 = tpu.matmul %268, %9, %cst_50 {dimension_numbers = #tpu.dot_dimension_numbers<[1], [0], [0], [1], [0, 0, 1, 1], [], []>} : vector<2x32xf32>, vector<32x128xf32>, vector<2x128xf32> -> vector<2x128xf32>
    %270 = vector.broadcast %11 : vector<1x128xf32> to vector<2x128xf32>
    %271 = arith.addf %269, %270 : vector<2x128xf32>
    %cst_51 = arith.constant dense<0.000000e+00> : vector<2x128xf32>
    %272 = tpu.matmul %249, %10, %cst_51 {dimension_numbers = #tpu.dot_dimension_numbers<[1], [0], [0], [1], [0, 0, 1, 1], [], []>} : vector<2x32xf32>, vector<32x128xf32>, vector<2x128xf32> -> vector<2x128xf32>
    %273 = arith.addf %271, %272 : vector<2x128xf32>
    %274 = arith.negf %273 : vector<2x128xf32>
    %275 = math.exp %274 : vector<2x128xf32>
    %cst_52 = arith.constant 1.000000e+00 : f32
    %276 = vector.broadcast %cst_52 : f32 to vector<2x128xf32>
    %277 = arith.addf %276, %275 : vector<2x128xf32>
    %278 = arith.divf %276, %277 : vector<2x128xf32>
    %279 = math.tanh %273 : vector<2x128xf32>
    %280 = vector.extract_strided_slice %278 {offsets = [0, 0], sizes = [2, 32], strides = [1, 1]} : vector<2x128xf32> to vector<2x32xf32>
    %281 = vector.extract_strided_slice %278 {offsets = [0, 32], sizes = [2, 32], strides = [1, 1]} : vector<2x128xf32> to vector<2x32xf32>
    %282 = vector.extract_strided_slice %279 {offsets = [0, 64], sizes = [2, 32], strides = [1, 1]} : vector<2x128xf32> to vector<2x32xf32>
    %283 = vector.extract_strided_slice %278 {offsets = [0, 96], sizes = [2, 32], strides = [1, 1]} : vector<2x128xf32> to vector<2x32xf32>
    %284 = arith.mulf %281, %247 : vector<2x32xf32>
    %285 = arith.mulf %280, %282 : vector<2x32xf32>
    %286 = arith.addf %284, %285 : vector<2x32xf32>
    %287 = math.tanh %286 : vector<2x32xf32>
    %288 = arith.mulf %283, %287 : vector<2x32xf32>
    %289 = vector.extract_strided_slice %7 {offsets = [0, 7, 0], sizes = [2, 1, 128], strides = [1, 1, 1]} : vector<2x8x128xf32> to vector<2x1x128xf32>
    %290 = vector.shape_cast %289 : vector<2x1x128xf32> to vector<2x128xf32>
    %cst_53 = arith.constant dense<0.000000e+00> : vector<2x128xf32>
    %291 = tpu.matmul %268, %8, %cst_53 {dimension_numbers = #tpu.dot_dimension_numbers<[1], [0], [0], [1], [0, 0, 1, 1], [], []>} : vector<2x32xf32>, vector<32x128xf32>, vector<2x128xf32> -> vector<2x128xf32>
    %292 = arith.addf %290, %291 : vector<2x128xf32>
    %293 = arith.negf %292 : vector<2x128xf32>
    %294 = math.exp %293 : vector<2x128xf32>
    %cst_54 = arith.constant 1.000000e+00 : f32
    %295 = vector.broadcast %cst_54 : f32 to vector<2x128xf32>
    %296 = arith.addf %295, %294 : vector<2x128xf32>
    %297 = arith.divf %295, %296 : vector<2x128xf32>
    %298 = math.tanh %292 : vector<2x128xf32>
    %299 = vector.extract_strided_slice %297 {offsets = [0, 0], sizes = [2, 32], strides = [1, 1]} : vector<2x128xf32> to vector<2x32xf32>
    %300 = vector.extract_strided_slice %297 {offsets = [0, 32], sizes = [2, 32], strides = [1, 1]} : vector<2x128xf32> to vector<2x32xf32>
    %301 = vector.extract_strided_slice %298 {offsets = [0, 64], sizes = [2, 32], strides = [1, 1]} : vector<2x128xf32> to vector<2x32xf32>
    %302 = vector.extract_strided_slice %297 {offsets = [0, 96], sizes = [2, 32], strides = [1, 1]} : vector<2x128xf32> to vector<2x32xf32>
    %303 = arith.mulf %300, %266 : vector<2x32xf32>
    %304 = arith.mulf %299, %301 : vector<2x32xf32>
    %305 = arith.addf %303, %304 : vector<2x32xf32>
    %306 = math.tanh %305 : vector<2x32xf32>
    %307 = arith.mulf %302, %306 : vector<2x32xf32>
    %cst_55 = arith.constant dense<0.000000e+00> : vector<2x128xf32>
    %308 = tpu.matmul %307, %9, %cst_55 {dimension_numbers = #tpu.dot_dimension_numbers<[1], [0], [0], [1], [0, 0, 1, 1], [], []>} : vector<2x32xf32>, vector<32x128xf32>, vector<2x128xf32> -> vector<2x128xf32>
    %309 = vector.broadcast %11 : vector<1x128xf32> to vector<2x128xf32>
    %310 = arith.addf %308, %309 : vector<2x128xf32>
    %cst_56 = arith.constant dense<0.000000e+00> : vector<2x128xf32>
    %311 = tpu.matmul %288, %10, %cst_56 {dimension_numbers = #tpu.dot_dimension_numbers<[1], [0], [0], [1], [0, 0, 1, 1], [], []>} : vector<2x32xf32>, vector<32x128xf32>, vector<2x128xf32> -> vector<2x128xf32>
    %312 = arith.addf %310, %311 : vector<2x128xf32>
    %313 = arith.negf %312 : vector<2x128xf32>
    %314 = math.exp %313 : vector<2x128xf32>
    %cst_57 = arith.constant 1.000000e+00 : f32
    %315 = vector.broadcast %cst_57 : f32 to vector<2x128xf32>
    %316 = arith.addf %315, %314 : vector<2x128xf32>
    %317 = arith.divf %315, %316 : vector<2x128xf32>
    %318 = math.tanh %312 : vector<2x128xf32>
    %319 = vector.extract_strided_slice %317 {offsets = [0, 0], sizes = [2, 32], strides = [1, 1]} : vector<2x128xf32> to vector<2x32xf32>
    %320 = vector.extract_strided_slice %317 {offsets = [0, 32], sizes = [2, 32], strides = [1, 1]} : vector<2x128xf32> to vector<2x32xf32>
    %321 = vector.extract_strided_slice %318 {offsets = [0, 64], sizes = [2, 32], strides = [1, 1]} : vector<2x128xf32> to vector<2x32xf32>
    %322 = vector.extract_strided_slice %317 {offsets = [0, 96], sizes = [2, 32], strides = [1, 1]} : vector<2x128xf32> to vector<2x32xf32>
    %323 = arith.mulf %320, %286 : vector<2x32xf32>
    %324 = arith.mulf %319, %321 : vector<2x32xf32>
    %325 = arith.addf %323, %324 : vector<2x32xf32>
    %326 = math.tanh %325 : vector<2x32xf32>
    %327 = arith.mulf %322, %326 : vector<2x32xf32>
    %328 = vector.shape_cast %54 : vector<2x32xf32> to vector<2x1x32xf32>
    %329 = vector.shape_cast %93 : vector<2x32xf32> to vector<2x1x32xf32>
    %330 = vector.shape_cast %132 : vector<2x32xf32> to vector<2x1x32xf32>
    %331 = vector.shape_cast %171 : vector<2x32xf32> to vector<2x1x32xf32>
    %332 = vector.shape_cast %210 : vector<2x32xf32> to vector<2x1x32xf32>
    %333 = vector.shape_cast %249 : vector<2x32xf32> to vector<2x1x32xf32>
    %334 = vector.shape_cast %288 : vector<2x32xf32> to vector<2x1x32xf32>
    %335 = vector.shape_cast %327 : vector<2x32xf32> to vector<2x1x32xf32>
    %336 = tpu.concatenate %328, %329, %330, %331, %332, %333, %334, %335 in 1 : vector<2x1x32xf32>, vector<2x1x32xf32>, vector<2x1x32xf32>, vector<2x1x32xf32>, vector<2x1x32xf32>, vector<2x1x32xf32>, vector<2x1x32xf32>, vector<2x1x32xf32> -> vector<2x8x32xf32>
    %337 = vector.shape_cast %336 : vector<2x8x32xf32> to vector<16x32xf32>
    %c0_58 = arith.constant 0 : index
    %c0_59 = arith.constant 0 : index
    %338 = vector.load %arg7[%c0_58, %c0_59] : memref<32x96xf32, #tpu.memory_space<vmem>>, vector<32x96xf32>
    %cst_60 = arith.constant dense<0.000000e+00> : vector<16x96xf32>
    %339 = tpu.matmul %337, %338, %cst_60 {dimension_numbers = #tpu.dot_dimension_numbers<[1], [0], [0], [1], [0, 0, 1, 1], [], []>} : vector<16x32xf32>, vector<32x96xf32>, vector<16x96xf32> -> vector<16x96xf32>
    %c0_61 = arith.constant 0 : index
    %c0_62 = arith.constant 0 : index
    %340 = vector.load %arg8[%c0_61, %c0_62] : memref<1x96xf32, #tpu.memory_space<vmem>>, vector<1x96xf32>
    %341 = vector.broadcast %340 : vector<1x96xf32> to vector<16x96xf32>
    %342 = arith.addf %339, %341 : vector<16x96xf32>
    %cst_63 = arith.constant 0.000000e+00 : f32
    %343 = vector.broadcast %cst_63 : f32 to vector<16x8xf32>
    %344 = vector.extract_strided_slice %342 {offsets = [0, 0], sizes = [16, 8], strides = [1, 1]} : vector<16x96xf32> to vector<16x8xf32>
    %345 = vector.shape_cast %344 : vector<16x8xf32> to vector<2x8x8xf32>
    %346 = vector.extract_strided_slice %342 {offsets = [0, 32], sizes = [16, 8], strides = [1, 1]} : vector<16x96xf32> to vector<16x8xf32>
    %347 = vector.shape_cast %346 : vector<16x8xf32> to vector<2x8x8xf32>
    %348 = vector.extract_strided_slice %342 {offsets = [0, 64], sizes = [16, 8], strides = [1, 1]} : vector<16x96xf32> to vector<16x8xf32>
    %349 = vector.shape_cast %348 : vector<16x8xf32> to vector<2x8x8xf32>
    "tpu.trace_start"() <{level = 10 : i32, message = "bqd,bkd->bqk"}> : () -> ()
    %cst_64 = arith.constant dense<0.000000e+00> : vector<2x8x8xf32>
    %350 = tpu.matmul %345, %347, %cst_64 {dimension_numbers = #tpu.dot_dimension_numbers<[2], [2], [1], [1], [0, 0, 0, 1, 1, 1], [0], [0]>} : vector<2x8x8xf32>, vector<2x8x8xf32>, vector<2x8x8xf32> -> vector<2x8x8xf32>
    "tpu.trace_stop"() : () -> ()
    %cst_65 = arith.constant dense<0xFF800000> : vector<2x8xf32>
    %351 = vector.multi_reduction <maximumf>, %350, %cst_65 [2] : vector<2x8x8xf32> to vector<2x8xf32>
    %352 = vector.shape_cast %351 : vector<2x8xf32> to vector<2x8x1xf32>
    %353 = vector.broadcast %352 : vector<2x8x1xf32> to vector<2x8x8xf32>
    %354 = arith.subf %350, %353 : vector<2x8x8xf32>
    %355 = math.exp %354 : vector<2x8x8xf32>
    %cst_66 = arith.constant dense<0.000000e+00> : vector<2x8xf32>
    %356 = vector.multi_reduction <add>, %355, %cst_66 [2] : vector<2x8x8xf32> to vector<2x8xf32>
    %357 = vector.shape_cast %356 : vector<2x8xf32> to vector<2x8x1xf32>
    %358 = tpu.reciprocal %357 {approx = true} : vector<2x8x1xf32> -> vector<2x8x1xf32>
    %359 = vector.broadcast %358 : vector<2x8x1xf32> to vector<2x8x8xf32>
    %360 = arith.mulf %355, %359 : vector<2x8x8xf32>
    "tpu.trace_start"() <{level = 10 : i32, message = "bqk,bkd->bqd"}> : () -> ()
    %cst_67 = arith.constant dense<0.000000e+00> : vector<2x8x8xf32>
    %361 = tpu.matmul %360, %349, %cst_67 {dimension_numbers = #tpu.dot_dimension_numbers<[2], [1], [1], [2], [0, 0, 0, 1, 1, 2], [0], [0]>} : vector<2x8x8xf32>, vector<2x8x8xf32>, vector<2x8x8xf32> -> vector<2x8x8xf32>
    "tpu.trace_stop"() : () -> ()
    %362 = vector.shape_cast %361 : vector<2x8x8xf32> to vector<16x8xf32>
    %c0_68 = arith.constant 0 : index
    %c0_69 = arith.constant 0 : index
    %c0_70 = arith.constant 0 : index
    %363 = vector.load %arg9[%c0_68, %c0_69, %c0_70] : memref<4x8x8xf32, #tpu.memory_space<vmem>>, vector<1x8x8xf32>
    %364 = vector.shape_cast %363 : vector<1x8x8xf32> to vector<8x8xf32>
    %cst_71 = arith.constant dense<0.000000e+00> : vector<16x8xf32>
    %365 = tpu.matmul %362, %364, %cst_71 {dimension_numbers = #tpu.dot_dimension_numbers<[1], [0], [0], [1], [0, 0, 1, 1], [], []>} : vector<16x8xf32>, vector<8x8xf32>, vector<16x8xf32> -> vector<16x8xf32>
    %366 = arith.addf %343, %365 : vector<16x8xf32>
    %367 = vector.extract_strided_slice %342 {offsets = [0, 8], sizes = [16, 8], strides = [1, 1]} : vector<16x96xf32> to vector<16x8xf32>
    %368 = vector.shape_cast %367 : vector<16x8xf32> to vector<2x8x8xf32>
    %369 = vector.extract_strided_slice %342 {offsets = [0, 40], sizes = [16, 8], strides = [1, 1]} : vector<16x96xf32> to vector<16x8xf32>
    %370 = vector.shape_cast %369 : vector<16x8xf32> to vector<2x8x8xf32>
    %371 = vector.extract_strided_slice %342 {offsets = [0, 72], sizes = [16, 8], strides = [1, 1]} : vector<16x96xf32> to vector<16x8xf32>
    %372 = vector.shape_cast %371 : vector<16x8xf32> to vector<2x8x8xf32>
    "tpu.trace_start"() <{level = 10 : i32, message = "bqd,bkd->bqk"}> : () -> ()
    %cst_72 = arith.constant dense<0.000000e+00> : vector<2x8x8xf32>
    %373 = tpu.matmul %368, %370, %cst_72 {dimension_numbers = #tpu.dot_dimension_numbers<[2], [2], [1], [1], [0, 0, 0, 1, 1, 1], [0], [0]>} : vector<2x8x8xf32>, vector<2x8x8xf32>, vector<2x8x8xf32> -> vector<2x8x8xf32>
    "tpu.trace_stop"() : () -> ()
    %cst_73 = arith.constant dense<0xFF800000> : vector<2x8xf32>
    %374 = vector.multi_reduction <maximumf>, %373, %cst_73 [2] : vector<2x8x8xf32> to vector<2x8xf32>
    %375 = vector.shape_cast %374 : vector<2x8xf32> to vector<2x8x1xf32>
    %376 = vector.broadcast %375 : vector<2x8x1xf32> to vector<2x8x8xf32>
    %377 = arith.subf %373, %376 : vector<2x8x8xf32>
    %378 = math.exp %377 : vector<2x8x8xf32>
    %cst_74 = arith.constant dense<0.000000e+00> : vector<2x8xf32>
    %379 = vector.multi_reduction <add>, %378, %cst_74 [2] : vector<2x8x8xf32> to vector<2x8xf32>
    %380 = vector.shape_cast %379 : vector<2x8xf32> to vector<2x8x1xf32>
    %381 = tpu.reciprocal %380 {approx = true} : vector<2x8x1xf32> -> vector<2x8x1xf32>
    %382 = vector.broadcast %381 : vector<2x8x1xf32> to vector<2x8x8xf32>
    %383 = arith.mulf %378, %382 : vector<2x8x8xf32>
    "tpu.trace_start"() <{level = 10 : i32, message = "bqk,bkd->bqd"}> : () -> ()
    %cst_75 = arith.constant dense<0.000000e+00> : vector<2x8x8xf32>
    %384 = tpu.matmul %383, %372, %cst_75 {dimension_numbers = #tpu.dot_dimension_numbers<[2], [1], [1], [2], [0, 0, 0, 1, 1, 2], [0], [0]>} : vector<2x8x8xf32>, vector<2x8x8xf32>, vector<2x8x8xf32> -> vector<2x8x8xf32>
    "tpu.trace_stop"() : () -> ()
    %385 = vector.shape_cast %384 : vector<2x8x8xf32> to vector<16x8xf32>
    %c1 = arith.constant 1 : index
    %c0_76 = arith.constant 0 : index
    %c0_77 = arith.constant 0 : index
    %386 = vector.load %arg9[%c1, %c0_76, %c0_77] : memref<4x8x8xf32, #tpu.memory_space<vmem>>, vector<1x8x8xf32>
    %387 = vector.shape_cast %386 : vector<1x8x8xf32> to vector<8x8xf32>
    %cst_78 = arith.constant dense<0.000000e+00> : vector<16x8xf32>
    %388 = tpu.matmul %385, %387, %cst_78 {dimension_numbers = #tpu.dot_dimension_numbers<[1], [0], [0], [1], [0, 0, 1, 1], [], []>} : vector<16x8xf32>, vector<8x8xf32>, vector<16x8xf32> -> vector<16x8xf32>
    %389 = arith.addf %366, %388 : vector<16x8xf32>
    %390 = vector.extract_strided_slice %342 {offsets = [0, 16], sizes = [16, 8], strides = [1, 1]} : vector<16x96xf32> to vector<16x8xf32>
    %391 = vector.shape_cast %390 : vector<16x8xf32> to vector<2x8x8xf32>
    %392 = vector.extract_strided_slice %342 {offsets = [0, 48], sizes = [16, 8], strides = [1, 1]} : vector<16x96xf32> to vector<16x8xf32>
    %393 = vector.shape_cast %392 : vector<16x8xf32> to vector<2x8x8xf32>
    %394 = vector.extract_strided_slice %342 {offsets = [0, 80], sizes = [16, 8], strides = [1, 1]} : vector<16x96xf32> to vector<16x8xf32>
    %395 = vector.shape_cast %394 : vector<16x8xf32> to vector<2x8x8xf32>
    "tpu.trace_start"() <{level = 10 : i32, message = "bqd,bkd->bqk"}> : () -> ()
    %cst_79 = arith.constant dense<0.000000e+00> : vector<2x8x8xf32>
    %396 = tpu.matmul %391, %393, %cst_79 {dimension_numbers = #tpu.dot_dimension_numbers<[2], [2], [1], [1], [0, 0, 0, 1, 1, 1], [0], [0]>} : vector<2x8x8xf32>, vector<2x8x8xf32>, vector<2x8x8xf32> -> vector<2x8x8xf32>
    "tpu.trace_stop"() : () -> ()
    %cst_80 = arith.constant dense<0xFF800000> : vector<2x8xf32>
    %397 = vector.multi_reduction <maximumf>, %396, %cst_80 [2] : vector<2x8x8xf32> to vector<2x8xf32>
    %398 = vector.shape_cast %397 : vector<2x8xf32> to vector<2x8x1xf32>
    %399 = vector.broadcast %398 : vector<2x8x1xf32> to vector<2x8x8xf32>
    %400 = arith.subf %396, %399 : vector<2x8x8xf32>
    %401 = math.exp %400 : vector<2x8x8xf32>
    %cst_81 = arith.constant dense<0.000000e+00> : vector<2x8xf32>
    %402 = vector.multi_reduction <add>, %401, %cst_81 [2] : vector<2x8x8xf32> to vector<2x8xf32>
    %403 = vector.shape_cast %402 : vector<2x8xf32> to vector<2x8x1xf32>
    %404 = tpu.reciprocal %403 {approx = true} : vector<2x8x1xf32> -> vector<2x8x1xf32>
    %405 = vector.broadcast %404 : vector<2x8x1xf32> to vector<2x8x8xf32>
    %406 = arith.mulf %401, %405 : vector<2x8x8xf32>
    "tpu.trace_start"() <{level = 10 : i32, message = "bqk,bkd->bqd"}> : () -> ()
    %cst_82 = arith.constant dense<0.000000e+00> : vector<2x8x8xf32>
    %407 = tpu.matmul %406, %395, %cst_82 {dimension_numbers = #tpu.dot_dimension_numbers<[2], [1], [1], [2], [0, 0, 0, 1, 1, 2], [0], [0]>} : vector<2x8x8xf32>, vector<2x8x8xf32>, vector<2x8x8xf32> -> vector<2x8x8xf32>
    "tpu.trace_stop"() : () -> ()
    %408 = vector.shape_cast %407 : vector<2x8x8xf32> to vector<16x8xf32>
    %c2 = arith.constant 2 : index
    %c0_83 = arith.constant 0 : index
    %c0_84 = arith.constant 0 : index
    %409 = vector.load %arg9[%c2, %c0_83, %c0_84] : memref<4x8x8xf32, #tpu.memory_space<vmem>>, vector<1x8x8xf32>
    %410 = vector.shape_cast %409 : vector<1x8x8xf32> to vector<8x8xf32>
    %cst_85 = arith.constant dense<0.000000e+00> : vector<16x8xf32>
    %411 = tpu.matmul %408, %410, %cst_85 {dimension_numbers = #tpu.dot_dimension_numbers<[1], [0], [0], [1], [0, 0, 1, 1], [], []>} : vector<16x8xf32>, vector<8x8xf32>, vector<16x8xf32> -> vector<16x8xf32>
    %412 = arith.addf %389, %411 : vector<16x8xf32>
    %413 = vector.extract_strided_slice %342 {offsets = [0, 24], sizes = [16, 8], strides = [1, 1]} : vector<16x96xf32> to vector<16x8xf32>
    %414 = vector.shape_cast %413 : vector<16x8xf32> to vector<2x8x8xf32>
    %415 = vector.extract_strided_slice %342 {offsets = [0, 56], sizes = [16, 8], strides = [1, 1]} : vector<16x96xf32> to vector<16x8xf32>
    %416 = vector.shape_cast %415 : vector<16x8xf32> to vector<2x8x8xf32>
    %417 = vector.extract_strided_slice %342 {offsets = [0, 88], sizes = [16, 8], strides = [1, 1]} : vector<16x96xf32> to vector<16x8xf32>
    %418 = vector.shape_cast %417 : vector<16x8xf32> to vector<2x8x8xf32>
    "tpu.trace_start"() <{level = 10 : i32, message = "bqd,bkd->bqk"}> : () -> ()
    %cst_86 = arith.constant dense<0.000000e+00> : vector<2x8x8xf32>
    %419 = tpu.matmul %414, %416, %cst_86 {dimension_numbers = #tpu.dot_dimension_numbers<[2], [2], [1], [1], [0, 0, 0, 1, 1, 1], [0], [0]>} : vector<2x8x8xf32>, vector<2x8x8xf32>, vector<2x8x8xf32> -> vector<2x8x8xf32>
    "tpu.trace_stop"() : () -> ()
    %cst_87 = arith.constant dense<0xFF800000> : vector<2x8xf32>
    %420 = vector.multi_reduction <maximumf>, %419, %cst_87 [2] : vector<2x8x8xf32> to vector<2x8xf32>
    %421 = vector.shape_cast %420 : vector<2x8xf32> to vector<2x8x1xf32>
    %422 = vector.broadcast %421 : vector<2x8x1xf32> to vector<2x8x8xf32>
    %423 = arith.subf %419, %422 : vector<2x8x8xf32>
    %424 = math.exp %423 : vector<2x8x8xf32>
    %cst_88 = arith.constant dense<0.000000e+00> : vector<2x8xf32>
    %425 = vector.multi_reduction <add>, %424, %cst_88 [2] : vector<2x8x8xf32> to vector<2x8xf32>
    %426 = vector.shape_cast %425 : vector<2x8xf32> to vector<2x8x1xf32>
    %427 = tpu.reciprocal %426 {approx = true} : vector<2x8x1xf32> -> vector<2x8x1xf32>
    %428 = vector.broadcast %427 : vector<2x8x1xf32> to vector<2x8x8xf32>
    %429 = arith.mulf %424, %428 : vector<2x8x8xf32>
    "tpu.trace_start"() <{level = 10 : i32, message = "bqk,bkd->bqd"}> : () -> ()
    %cst_89 = arith.constant dense<0.000000e+00> : vector<2x8x8xf32>
    %430 = tpu.matmul %429, %418, %cst_89 {dimension_numbers = #tpu.dot_dimension_numbers<[2], [1], [1], [2], [0, 0, 0, 1, 1, 2], [0], [0]>} : vector<2x8x8xf32>, vector<2x8x8xf32>, vector<2x8x8xf32> -> vector<2x8x8xf32>
    "tpu.trace_stop"() : () -> ()
    %431 = vector.shape_cast %430 : vector<2x8x8xf32> to vector<16x8xf32>
    %c3 = arith.constant 3 : index
    %c0_90 = arith.constant 0 : index
    %c0_91 = arith.constant 0 : index
    %432 = vector.load %arg9[%c3, %c0_90, %c0_91] : memref<4x8x8xf32, #tpu.memory_space<vmem>>, vector<1x8x8xf32>
    %433 = vector.shape_cast %432 : vector<1x8x8xf32> to vector<8x8xf32>
    %cst_92 = arith.constant dense<0.000000e+00> : vector<16x8xf32>
    %434 = tpu.matmul %431, %433, %cst_92 {dimension_numbers = #tpu.dot_dimension_numbers<[1], [0], [0], [1], [0, 0, 1, 1], [], []>} : vector<16x8xf32>, vector<8x8xf32>, vector<16x8xf32> -> vector<16x8xf32>
    %435 = arith.addf %412, %434 : vector<16x8xf32>
    %c0_93 = arith.constant 0 : index
    %c0_94 = arith.constant 0 : index
    %436 = vector.load %arg10[%c0_93, %c0_94] : memref<1x8xf32, #tpu.memory_space<vmem>>, vector<1x8xf32>
    %437 = vector.broadcast %436 : vector<1x8xf32> to vector<16x8xf32>
    %438 = arith.addf %435, %437 : vector<16x8xf32>
    %c0_95 = arith.constant 0 : index
    %c0_96 = arith.constant 0 : index
    %439 = vector.load %arg11[%c0_95, %c0_96] : memref<8x128xf32, #tpu.memory_space<vmem>>, vector<8x128xf32>
    %cst_97 = arith.constant dense<0.000000e+00> : vector<16x128xf32>
    %440 = tpu.matmul %438, %439, %cst_97 {dimension_numbers = #tpu.dot_dimension_numbers<[1], [0], [0], [1], [0, 0, 1, 1], [], []>} : vector<16x8xf32>, vector<8x128xf32>, vector<16x128xf32> -> vector<16x128xf32>
    %c0_98 = arith.constant 0 : index
    %c0_99 = arith.constant 0 : index
    %441 = vector.load %arg13[%c0_98, %c0_99] : memref<1x128xf32, #tpu.memory_space<vmem>>, vector<1x128xf32>
    %442 = vector.broadcast %441 : vector<1x128xf32> to vector<16x128xf32>
    %443 = arith.addf %440, %442 : vector<16x128xf32>
    %444 = vector.shape_cast %443 : vector<16x128xf32> to vector<2x8x128xf32>
    %c0_100 = arith.constant 0 : index
    %c0_101 = arith.constant 0 : index
    %445 = vector.load %arg12[%c0_100, %c0_101] : memref<32x128xf32, #tpu.memory_space<vmem>>, vector<32x128xf32>
    %c0_102 = arith.constant 0 : index
    %c0_103 = arith.constant 0 : index
    %446 = vector.load %arg14[%c0_102, %c0_103] : memref<32x128xf32, #tpu.memory_space<vmem>>, vector<32x128xf32>
    %c0_104 = arith.constant 0 : index
    %c0_105 = arith.constant 0 : index
    %447 = vector.load %arg15[%c0_104, %c0_105] : memref<32x128xf32, #tpu.memory_space<vmem>>, vector<32x128xf32>
    %c0_106 = arith.constant 0 : index
    %c0_107 = arith.constant 0 : index
    %448 = vector.load %arg16[%c0_106, %c0_107] : memref<1x128xf32, #tpu.memory_space<vmem>>, vector<1x128xf32>
    %cst_108 = arith.constant 0.000000e+00 : f32
    %449 = vector.broadcast %cst_108 : f32 to vector<2x32xf32>
    %cst_109 = arith.constant 0.000000e+00 : f32
    %450 = vector.broadcast %cst_109 : f32 to vector<2x32xf32>
    %cst_110 = arith.constant 0.000000e+00 : f32
    %451 = vector.broadcast %cst_110 : f32 to vector<2x32xf32>
    %cst_111 = arith.constant 0.000000e+00 : f32
    %452 = vector.broadcast %cst_111 : f32 to vector<2x32xf32>
    %453 = vector.extract_strided_slice %444 {offsets = [0, 0, 0], sizes = [2, 1, 128], strides = [1, 1, 1]} : vector<2x8x128xf32> to vector<2x1x128xf32>
    %454 = vector.shape_cast %453 : vector<2x1x128xf32> to vector<2x128xf32>
    %cst_112 = arith.constant dense<0.000000e+00> : vector<2x128xf32>
    %455 = tpu.matmul %449, %445, %cst_112 {dimension_numbers = #tpu.dot_dimension_numbers<[1], [0], [0], [1], [0, 0, 1, 1], [], []>} : vector<2x32xf32>, vector<32x128xf32>, vector<2x128xf32> -> vector<2x128xf32>
    %456 = arith.addf %454, %455 : vector<2x128xf32>
    %457 = arith.negf %456 : vector<2x128xf32>
    %458 = math.exp %457 : vector<2x128xf32>
    %cst_113 = arith.constant 1.000000e+00 : f32
    %459 = vector.broadcast %cst_113 : f32 to vector<2x128xf32>
    %460 = arith.addf %459, %458 : vector<2x128xf32>
    %461 = arith.divf %459, %460 : vector<2x128xf32>
    %462 = math.tanh %456 : vector<2x128xf32>
    %463 = vector.extract_strided_slice %461 {offsets = [0, 0], sizes = [2, 32], strides = [1, 1]} : vector<2x128xf32> to vector<2x32xf32>
    %464 = vector.extract_strided_slice %461 {offsets = [0, 32], sizes = [2, 32], strides = [1, 1]} : vector<2x128xf32> to vector<2x32xf32>
    %465 = vector.extract_strided_slice %462 {offsets = [0, 64], sizes = [2, 32], strides = [1, 1]} : vector<2x128xf32> to vector<2x32xf32>
    %466 = vector.extract_strided_slice %461 {offsets = [0, 96], sizes = [2, 32], strides = [1, 1]} : vector<2x128xf32> to vector<2x32xf32>
    %467 = arith.mulf %464, %451 : vector<2x32xf32>
    %468 = arith.mulf %463, %465 : vector<2x32xf32>
    %469 = arith.addf %467, %468 : vector<2x32xf32>
    %470 = math.tanh %469 : vector<2x32xf32>
    %471 = arith.mulf %466, %470 : vector<2x32xf32>
    %cst_114 = arith.constant dense<0.000000e+00> : vector<2x128xf32>
    %472 = tpu.matmul %471, %446, %cst_114 {dimension_numbers = #tpu.dot_dimension_numbers<[1], [0], [0], [1], [0, 0, 1, 1], [], []>} : vector<2x32xf32>, vector<32x128xf32>, vector<2x128xf32> -> vector<2x128xf32>
    %473 = vector.broadcast %448 : vector<1x128xf32> to vector<2x128xf32>
    %474 = arith.addf %472, %473 : vector<2x128xf32>
    %cst_115 = arith.constant dense<0.000000e+00> : vector<2x128xf32>
    %475 = tpu.matmul %450, %447, %cst_115 {dimension_numbers = #tpu.dot_dimension_numbers<[1], [0], [0], [1], [0, 0, 1, 1], [], []>} : vector<2x32xf32>, vector<32x128xf32>, vector<2x128xf32> -> vector<2x128xf32>
    %476 = arith.addf %474, %475 : vector<2x128xf32>
    %477 = arith.negf %476 : vector<2x128xf32>
    %478 = math.exp %477 : vector<2x128xf32>
    %cst_116 = arith.constant 1.000000e+00 : f32
    %479 = vector.broadcast %cst_116 : f32 to vector<2x128xf32>
    %480 = arith.addf %479, %478 : vector<2x128xf32>
    %481 = arith.divf %479, %480 : vector<2x128xf32>
    %482 = math.tanh %476 : vector<2x128xf32>
    %483 = vector.extract_strided_slice %481 {offsets = [0, 0], sizes = [2, 32], strides = [1, 1]} : vector<2x128xf32> to vector<2x32xf32>
    %484 = vector.extract_strided_slice %481 {offsets = [0, 32], sizes = [2, 32], strides = [1, 1]} : vector<2x128xf32> to vector<2x32xf32>
    %485 = vector.extract_strided_slice %482 {offsets = [0, 64], sizes = [2, 32], strides = [1, 1]} : vector<2x128xf32> to vector<2x32xf32>
    %486 = vector.extract_strided_slice %481 {offsets = [0, 96], sizes = [2, 32], strides = [1, 1]} : vector<2x128xf32> to vector<2x32xf32>
    %487 = arith.mulf %484, %452 : vector<2x32xf32>
    %488 = arith.mulf %483, %485 : vector<2x32xf32>
    %489 = arith.addf %487, %488 : vector<2x32xf32>
    %490 = math.tanh %489 : vector<2x32xf32>
    %491 = arith.mulf %486, %490 : vector<2x32xf32>
    %492 = vector.extract_strided_slice %444 {offsets = [0, 1, 0], sizes = [2, 1, 128], strides = [1, 1, 1]} : vector<2x8x128xf32> to vector<2x1x128xf32>
    %493 = vector.shape_cast %492 : vector<2x1x128xf32> to vector<2x128xf32>
    %cst_117 = arith.constant dense<0.000000e+00> : vector<2x128xf32>
    %494 = tpu.matmul %471, %445, %cst_117 {dimension_numbers = #tpu.dot_dimension_numbers<[1], [0], [0], [1], [0, 0, 1, 1], [], []>} : vector<2x32xf32>, vector<32x128xf32>, vector<2x128xf32> -> vector<2x128xf32>
    %495 = arith.addf %493, %494 : vector<2x128xf32>
    %496 = arith.negf %495 : vector<2x128xf32>
    %497 = math.exp %496 : vector<2x128xf32>
    %cst_118 = arith.constant 1.000000e+00 : f32
    %498 = vector.broadcast %cst_118 : f32 to vector<2x128xf32>
    %499 = arith.addf %498, %497 : vector<2x128xf32>
    %500 = arith.divf %498, %499 : vector<2x128xf32>
    %501 = math.tanh %495 : vector<2x128xf32>
    %502 = vector.extract_strided_slice %500 {offsets = [0, 0], sizes = [2, 32], strides = [1, 1]} : vector<2x128xf32> to vector<2x32xf32>
    %503 = vector.extract_strided_slice %500 {offsets = [0, 32], sizes = [2, 32], strides = [1, 1]} : vector<2x128xf32> to vector<2x32xf32>
    %504 = vector.extract_strided_slice %501 {offsets = [0, 64], sizes = [2, 32], strides = [1, 1]} : vector<2x128xf32> to vector<2x32xf32>
    %505 = vector.extract_strided_slice %500 {offsets = [0, 96], sizes = [2, 32], strides = [1, 1]} : vector<2x128xf32> to vector<2x32xf32>
    %506 = arith.mulf %503, %469 : vector<2x32xf32>
    %507 = arith.mulf %502, %504 : vector<2x32xf32>
    %508 = arith.addf %506, %507 : vector<2x32xf32>
    %509 = math.tanh %508 : vector<2x32xf32>
    %510 = arith.mulf %505, %509 : vector<2x32xf32>
    %cst_119 = arith.constant dense<0.000000e+00> : vector<2x128xf32>
    %511 = tpu.matmul %510, %446, %cst_119 {dimension_numbers = #tpu.dot_dimension_numbers<[1], [0], [0], [1], [0, 0, 1, 1], [], []>} : vector<2x32xf32>, vector<32x128xf32>, vector<2x128xf32> -> vector<2x128xf32>
    %512 = vector.broadcast %448 : vector<1x128xf32> to vector<2x128xf32>
    %513 = arith.addf %511, %512 : vector<2x128xf32>
    %cst_120 = arith.constant dense<0.000000e+00> : vector<2x128xf32>
    %514 = tpu.matmul %491, %447, %cst_120 {dimension_numbers = #tpu.dot_dimension_numbers<[1], [0], [0], [1], [0, 0, 1, 1], [], []>} : vector<2x32xf32>, vector<32x128xf32>, vector<2x128xf32> -> vector<2x128xf32>
    %515 = arith.addf %513, %514 : vector<2x128xf32>
    %516 = arith.negf %515 : vector<2x128xf32>
    %517 = math.exp %516 : vector<2x128xf32>
    %cst_121 = arith.constant 1.000000e+00 : f32
    %518 = vector.broadcast %cst_121 : f32 to vector<2x128xf32>
    %519 = arith.addf %518, %517 : vector<2x128xf32>
    %520 = arith.divf %518, %519 : vector<2x128xf32>
    %521 = math.tanh %515 : vector<2x128xf32>
    %522 = vector.extract_strided_slice %520 {offsets = [0, 0], sizes = [2, 32], strides = [1, 1]} : vector<2x128xf32> to vector<2x32xf32>
    %523 = vector.extract_strided_slice %520 {offsets = [0, 32], sizes = [2, 32], strides = [1, 1]} : vector<2x128xf32> to vector<2x32xf32>
    %524 = vector.extract_strided_slice %521 {offsets = [0, 64], sizes = [2, 32], strides = [1, 1]} : vector<2x128xf32> to vector<2x32xf32>
    %525 = vector.extract_strided_slice %520 {offsets = [0, 96], sizes = [2, 32], strides = [1, 1]} : vector<2x128xf32> to vector<2x32xf32>
    %526 = arith.mulf %523, %489 : vector<2x32xf32>
    %527 = arith.mulf %522, %524 : vector<2x32xf32>
    %528 = arith.addf %526, %527 : vector<2x32xf32>
    %529 = math.tanh %528 : vector<2x32xf32>
    %530 = arith.mulf %525, %529 : vector<2x32xf32>
    %531 = vector.extract_strided_slice %444 {offsets = [0, 2, 0], sizes = [2, 1, 128], strides = [1, 1, 1]} : vector<2x8x128xf32> to vector<2x1x128xf32>
    %532 = vector.shape_cast %531 : vector<2x1x128xf32> to vector<2x128xf32>
    %cst_122 = arith.constant dense<0.000000e+00> : vector<2x128xf32>
    %533 = tpu.matmul %510, %445, %cst_122 {dimension_numbers = #tpu.dot_dimension_numbers<[1], [0], [0], [1], [0, 0, 1, 1], [], []>} : vector<2x32xf32>, vector<32x128xf32>, vector<2x128xf32> -> vector<2x128xf32>
    %534 = arith.addf %532, %533 : vector<2x128xf32>
    %535 = arith.negf %534 : vector<2x128xf32>
    %536 = math.exp %535 : vector<2x128xf32>
    %cst_123 = arith.constant 1.000000e+00 : f32
    %537 = vector.broadcast %cst_123 : f32 to vector<2x128xf32>
    %538 = arith.addf %537, %536 : vector<2x128xf32>
    %539 = arith.divf %537, %538 : vector<2x128xf32>
    %540 = math.tanh %534 : vector<2x128xf32>
    %541 = vector.extract_strided_slice %539 {offsets = [0, 0], sizes = [2, 32], strides = [1, 1]} : vector<2x128xf32> to vector<2x32xf32>
    %542 = vector.extract_strided_slice %539 {offsets = [0, 32], sizes = [2, 32], strides = [1, 1]} : vector<2x128xf32> to vector<2x32xf32>
    %543 = vector.extract_strided_slice %540 {offsets = [0, 64], sizes = [2, 32], strides = [1, 1]} : vector<2x128xf32> to vector<2x32xf32>
    %544 = vector.extract_strided_slice %539 {offsets = [0, 96], sizes = [2, 32], strides = [1, 1]} : vector<2x128xf32> to vector<2x32xf32>
    %545 = arith.mulf %542, %508 : vector<2x32xf32>
    %546 = arith.mulf %541, %543 : vector<2x32xf32>
    %547 = arith.addf %545, %546 : vector<2x32xf32>
    %548 = math.tanh %547 : vector<2x32xf32>
    %549 = arith.mulf %544, %548 : vector<2x32xf32>
    %cst_124 = arith.constant dense<0.000000e+00> : vector<2x128xf32>
    %550 = tpu.matmul %549, %446, %cst_124 {dimension_numbers = #tpu.dot_dimension_numbers<[1], [0], [0], [1], [0, 0, 1, 1], [], []>} : vector<2x32xf32>, vector<32x128xf32>, vector<2x128xf32> -> vector<2x128xf32>
    %551 = vector.broadcast %448 : vector<1x128xf32> to vector<2x128xf32>
    %552 = arith.addf %550, %551 : vector<2x128xf32>
    %cst_125 = arith.constant dense<0.000000e+00> : vector<2x128xf32>
    %553 = tpu.matmul %530, %447, %cst_125 {dimension_numbers = #tpu.dot_dimension_numbers<[1], [0], [0], [1], [0, 0, 1, 1], [], []>} : vector<2x32xf32>, vector<32x128xf32>, vector<2x128xf32> -> vector<2x128xf32>
    %554 = arith.addf %552, %553 : vector<2x128xf32>
    %555 = arith.negf %554 : vector<2x128xf32>
    %556 = math.exp %555 : vector<2x128xf32>
    %cst_126 = arith.constant 1.000000e+00 : f32
    %557 = vector.broadcast %cst_126 : f32 to vector<2x128xf32>
    %558 = arith.addf %557, %556 : vector<2x128xf32>
    %559 = arith.divf %557, %558 : vector<2x128xf32>
    %560 = math.tanh %554 : vector<2x128xf32>
    %561 = vector.extract_strided_slice %559 {offsets = [0, 0], sizes = [2, 32], strides = [1, 1]} : vector<2x128xf32> to vector<2x32xf32>
    %562 = vector.extract_strided_slice %559 {offsets = [0, 32], sizes = [2, 32], strides = [1, 1]} : vector<2x128xf32> to vector<2x32xf32>
    %563 = vector.extract_strided_slice %560 {offsets = [0, 64], sizes = [2, 32], strides = [1, 1]} : vector<2x128xf32> to vector<2x32xf32>
    %564 = vector.extract_strided_slice %559 {offsets = [0, 96], sizes = [2, 32], strides = [1, 1]} : vector<2x128xf32> to vector<2x32xf32>
    %565 = arith.mulf %562, %528 : vector<2x32xf32>
    %566 = arith.mulf %561, %563 : vector<2x32xf32>
    %567 = arith.addf %565, %566 : vector<2x32xf32>
    %568 = math.tanh %567 : vector<2x32xf32>
    %569 = arith.mulf %564, %568 : vector<2x32xf32>
    %570 = vector.extract_strided_slice %444 {offsets = [0, 3, 0], sizes = [2, 1, 128], strides = [1, 1, 1]} : vector<2x8x128xf32> to vector<2x1x128xf32>
    %571 = vector.shape_cast %570 : vector<2x1x128xf32> to vector<2x128xf32>
    %cst_127 = arith.constant dense<0.000000e+00> : vector<2x128xf32>
    %572 = tpu.matmul %549, %445, %cst_127 {dimension_numbers = #tpu.dot_dimension_numbers<[1], [0], [0], [1], [0, 0, 1, 1], [], []>} : vector<2x32xf32>, vector<32x128xf32>, vector<2x128xf32> -> vector<2x128xf32>
    %573 = arith.addf %571, %572 : vector<2x128xf32>
    %574 = arith.negf %573 : vector<2x128xf32>
    %575 = math.exp %574 : vector<2x128xf32>
    %cst_128 = arith.constant 1.000000e+00 : f32
    %576 = vector.broadcast %cst_128 : f32 to vector<2x128xf32>
    %577 = arith.addf %576, %575 : vector<2x128xf32>
    %578 = arith.divf %576, %577 : vector<2x128xf32>
    %579 = math.tanh %573 : vector<2x128xf32>
    %580 = vector.extract_strided_slice %578 {offsets = [0, 0], sizes = [2, 32], strides = [1, 1]} : vector<2x128xf32> to vector<2x32xf32>
    %581 = vector.extract_strided_slice %578 {offsets = [0, 32], sizes = [2, 32], strides = [1, 1]} : vector<2x128xf32> to vector<2x32xf32>
    %582 = vector.extract_strided_slice %579 {offsets = [0, 64], sizes = [2, 32], strides = [1, 1]} : vector<2x128xf32> to vector<2x32xf32>
    %583 = vector.extract_strided_slice %578 {offsets = [0, 96], sizes = [2, 32], strides = [1, 1]} : vector<2x128xf32> to vector<2x32xf32>
    %584 = arith.mulf %581, %547 : vector<2x32xf32>
    %585 = arith.mulf %580, %582 : vector<2x32xf32>
    %586 = arith.addf %584, %585 : vector<2x32xf32>
    %587 = math.tanh %586 : vector<2x32xf32>
    %588 = arith.mulf %583, %587 : vector<2x32xf32>
    %cst_129 = arith.constant dense<0.000000e+00> : vector<2x128xf32>
    %589 = tpu.matmul %588, %446, %cst_129 {dimension_numbers = #tpu.dot_dimension_numbers<[1], [0], [0], [1], [0, 0, 1, 1], [], []>} : vector<2x32xf32>, vector<32x128xf32>, vector<2x128xf32> -> vector<2x128xf32>
    %590 = vector.broadcast %448 : vector<1x128xf32> to vector<2x128xf32>
    %591 = arith.addf %589, %590 : vector<2x128xf32>
    %cst_130 = arith.constant dense<0.000000e+00> : vector<2x128xf32>
    %592 = tpu.matmul %569, %447, %cst_130 {dimension_numbers = #tpu.dot_dimension_numbers<[1], [0], [0], [1], [0, 0, 1, 1], [], []>} : vector<2x32xf32>, vector<32x128xf32>, vector<2x128xf32> -> vector<2x128xf32>
    %593 = arith.addf %591, %592 : vector<2x128xf32>
    %594 = arith.negf %593 : vector<2x128xf32>
    %595 = math.exp %594 : vector<2x128xf32>
    %cst_131 = arith.constant 1.000000e+00 : f32
    %596 = vector.broadcast %cst_131 : f32 to vector<2x128xf32>
    %597 = arith.addf %596, %595 : vector<2x128xf32>
    %598 = arith.divf %596, %597 : vector<2x128xf32>
    %599 = math.tanh %593 : vector<2x128xf32>
    %600 = vector.extract_strided_slice %598 {offsets = [0, 0], sizes = [2, 32], strides = [1, 1]} : vector<2x128xf32> to vector<2x32xf32>
    %601 = vector.extract_strided_slice %598 {offsets = [0, 32], sizes = [2, 32], strides = [1, 1]} : vector<2x128xf32> to vector<2x32xf32>
    %602 = vector.extract_strided_slice %599 {offsets = [0, 64], sizes = [2, 32], strides = [1, 1]} : vector<2x128xf32> to vector<2x32xf32>
    %603 = vector.extract_strided_slice %598 {offsets = [0, 96], sizes = [2, 32], strides = [1, 1]} : vector<2x128xf32> to vector<2x32xf32>
    %604 = arith.mulf %601, %567 : vector<2x32xf32>
    %605 = arith.mulf %600, %602 : vector<2x32xf32>
    %606 = arith.addf %604, %605 : vector<2x32xf32>
    %607 = math.tanh %606 : vector<2x32xf32>
    %608 = arith.mulf %603, %607 : vector<2x32xf32>
    %609 = vector.extract_strided_slice %444 {offsets = [0, 4, 0], sizes = [2, 1, 128], strides = [1, 1, 1]} : vector<2x8x128xf32> to vector<2x1x128xf32>
    %610 = vector.shape_cast %609 : vector<2x1x128xf32> to vector<2x128xf32>
    %cst_132 = arith.constant dense<0.000000e+00> : vector<2x128xf32>
    %611 = tpu.matmul %588, %445, %cst_132 {dimension_numbers = #tpu.dot_dimension_numbers<[1], [0], [0], [1], [0, 0, 1, 1], [], []>} : vector<2x32xf32>, vector<32x128xf32>, vector<2x128xf32> -> vector<2x128xf32>
    %612 = arith.addf %610, %611 : vector<2x128xf32>
    %613 = arith.negf %612 : vector<2x128xf32>
    %614 = math.exp %613 : vector<2x128xf32>
    %cst_133 = arith.constant 1.000000e+00 : f32
    %615 = vector.broadcast %cst_133 : f32 to vector<2x128xf32>
    %616 = arith.addf %615, %614 : vector<2x128xf32>
    %617 = arith.divf %615, %616 : vector<2x128xf32>
    %618 = math.tanh %612 : vector<2x128xf32>
    %619 = vector.extract_strided_slice %617 {offsets = [0, 0], sizes = [2, 32], strides = [1, 1]} : vector<2x128xf32> to vector<2x32xf32>
    %620 = vector.extract_strided_slice %617 {offsets = [0, 32], sizes = [2, 32], strides = [1, 1]} : vector<2x128xf32> to vector<2x32xf32>
    %621 = vector.extract_strided_slice %618 {offsets = [0, 64], sizes = [2, 32], strides = [1, 1]} : vector<2x128xf32> to vector<2x32xf32>
    %622 = vector.extract_strided_slice %617 {offsets = [0, 96], sizes = [2, 32], strides = [1, 1]} : vector<2x128xf32> to vector<2x32xf32>
    %623 = arith.mulf %620, %586 : vector<2x32xf32>
    %624 = arith.mulf %619, %621 : vector<2x32xf32>
    %625 = arith.addf %623, %624 : vector<2x32xf32>
    %626 = math.tanh %625 : vector<2x32xf32>
    %627 = arith.mulf %622, %626 : vector<2x32xf32>
    %cst_134 = arith.constant dense<0.000000e+00> : vector<2x128xf32>
    %628 = tpu.matmul %627, %446, %cst_134 {dimension_numbers = #tpu.dot_dimension_numbers<[1], [0], [0], [1], [0, 0, 1, 1], [], []>} : vector<2x32xf32>, vector<32x128xf32>, vector<2x128xf32> -> vector<2x128xf32>
    %629 = vector.broadcast %448 : vector<1x128xf32> to vector<2x128xf32>
    %630 = arith.addf %628, %629 : vector<2x128xf32>
    %cst_135 = arith.constant dense<0.000000e+00> : vector<2x128xf32>
    %631 = tpu.matmul %608, %447, %cst_135 {dimension_numbers = #tpu.dot_dimension_numbers<[1], [0], [0], [1], [0, 0, 1, 1], [], []>} : vector<2x32xf32>, vector<32x128xf32>, vector<2x128xf32> -> vector<2x128xf32>
    %632 = arith.addf %630, %631 : vector<2x128xf32>
    %633 = arith.negf %632 : vector<2x128xf32>
    %634 = math.exp %633 : vector<2x128xf32>
    %cst_136 = arith.constant 1.000000e+00 : f32
    %635 = vector.broadcast %cst_136 : f32 to vector<2x128xf32>
    %636 = arith.addf %635, %634 : vector<2x128xf32>
    %637 = arith.divf %635, %636 : vector<2x128xf32>
    %638 = math.tanh %632 : vector<2x128xf32>
    %639 = vector.extract_strided_slice %637 {offsets = [0, 0], sizes = [2, 32], strides = [1, 1]} : vector<2x128xf32> to vector<2x32xf32>
    %640 = vector.extract_strided_slice %637 {offsets = [0, 32], sizes = [2, 32], strides = [1, 1]} : vector<2x128xf32> to vector<2x32xf32>
    %641 = vector.extract_strided_slice %638 {offsets = [0, 64], sizes = [2, 32], strides = [1, 1]} : vector<2x128xf32> to vector<2x32xf32>
    %642 = vector.extract_strided_slice %637 {offsets = [0, 96], sizes = [2, 32], strides = [1, 1]} : vector<2x128xf32> to vector<2x32xf32>
    %643 = arith.mulf %640, %606 : vector<2x32xf32>
    %644 = arith.mulf %639, %641 : vector<2x32xf32>
    %645 = arith.addf %643, %644 : vector<2x32xf32>
    %646 = math.tanh %645 : vector<2x32xf32>
    %647 = arith.mulf %642, %646 : vector<2x32xf32>
    %648 = vector.extract_strided_slice %444 {offsets = [0, 5, 0], sizes = [2, 1, 128], strides = [1, 1, 1]} : vector<2x8x128xf32> to vector<2x1x128xf32>
    %649 = vector.shape_cast %648 : vector<2x1x128xf32> to vector<2x128xf32>
    %cst_137 = arith.constant dense<0.000000e+00> : vector<2x128xf32>
    %650 = tpu.matmul %627, %445, %cst_137 {dimension_numbers = #tpu.dot_dimension_numbers<[1], [0], [0], [1], [0, 0, 1, 1], [], []>} : vector<2x32xf32>, vector<32x128xf32>, vector<2x128xf32> -> vector<2x128xf32>
    %651 = arith.addf %649, %650 : vector<2x128xf32>
    %652 = arith.negf %651 : vector<2x128xf32>
    %653 = math.exp %652 : vector<2x128xf32>
    %cst_138 = arith.constant 1.000000e+00 : f32
    %654 = vector.broadcast %cst_138 : f32 to vector<2x128xf32>
    %655 = arith.addf %654, %653 : vector<2x128xf32>
    %656 = arith.divf %654, %655 : vector<2x128xf32>
    %657 = math.tanh %651 : vector<2x128xf32>
    %658 = vector.extract_strided_slice %656 {offsets = [0, 0], sizes = [2, 32], strides = [1, 1]} : vector<2x128xf32> to vector<2x32xf32>
    %659 = vector.extract_strided_slice %656 {offsets = [0, 32], sizes = [2, 32], strides = [1, 1]} : vector<2x128xf32> to vector<2x32xf32>
    %660 = vector.extract_strided_slice %657 {offsets = [0, 64], sizes = [2, 32], strides = [1, 1]} : vector<2x128xf32> to vector<2x32xf32>
    %661 = vector.extract_strided_slice %656 {offsets = [0, 96], sizes = [2, 32], strides = [1, 1]} : vector<2x128xf32> to vector<2x32xf32>
    %662 = arith.mulf %659, %625 : vector<2x32xf32>
    %663 = arith.mulf %658, %660 : vector<2x32xf32>
    %664 = arith.addf %662, %663 : vector<2x32xf32>
    %665 = math.tanh %664 : vector<2x32xf32>
    %666 = arith.mulf %661, %665 : vector<2x32xf32>
    %cst_139 = arith.constant dense<0.000000e+00> : vector<2x128xf32>
    %667 = tpu.matmul %666, %446, %cst_139 {dimension_numbers = #tpu.dot_dimension_numbers<[1], [0], [0], [1], [0, 0, 1, 1], [], []>} : vector<2x32xf32>, vector<32x128xf32>, vector<2x128xf32> -> vector<2x128xf32>
    %668 = vector.broadcast %448 : vector<1x128xf32> to vector<2x128xf32>
    %669 = arith.addf %667, %668 : vector<2x128xf32>
    %cst_140 = arith.constant dense<0.000000e+00> : vector<2x128xf32>
    %670 = tpu.matmul %647, %447, %cst_140 {dimension_numbers = #tpu.dot_dimension_numbers<[1], [0], [0], [1], [0, 0, 1, 1], [], []>} : vector<2x32xf32>, vector<32x128xf32>, vector<2x128xf32> -> vector<2x128xf32>
    %671 = arith.addf %669, %670 : vector<2x128xf32>
    %672 = arith.negf %671 : vector<2x128xf32>
    %673 = math.exp %672 : vector<2x128xf32>
    %cst_141 = arith.constant 1.000000e+00 : f32
    %674 = vector.broadcast %cst_141 : f32 to vector<2x128xf32>
    %675 = arith.addf %674, %673 : vector<2x128xf32>
    %676 = arith.divf %674, %675 : vector<2x128xf32>
    %677 = math.tanh %671 : vector<2x128xf32>
    %678 = vector.extract_strided_slice %676 {offsets = [0, 0], sizes = [2, 32], strides = [1, 1]} : vector<2x128xf32> to vector<2x32xf32>
    %679 = vector.extract_strided_slice %676 {offsets = [0, 32], sizes = [2, 32], strides = [1, 1]} : vector<2x128xf32> to vector<2x32xf32>
    %680 = vector.extract_strided_slice %677 {offsets = [0, 64], sizes = [2, 32], strides = [1, 1]} : vector<2x128xf32> to vector<2x32xf32>
    %681 = vector.extract_strided_slice %676 {offsets = [0, 96], sizes = [2, 32], strides = [1, 1]} : vector<2x128xf32> to vector<2x32xf32>
    %682 = arith.mulf %679, %645 : vector<2x32xf32>
    %683 = arith.mulf %678, %680 : vector<2x32xf32>
    %684 = arith.addf %682, %683 : vector<2x32xf32>
    %685 = math.tanh %684 : vector<2x32xf32>
    %686 = arith.mulf %681, %685 : vector<2x32xf32>
    %687 = vector.extract_strided_slice %444 {offsets = [0, 6, 0], sizes = [2, 1, 128], strides = [1, 1, 1]} : vector<2x8x128xf32> to vector<2x1x128xf32>
    %688 = vector.shape_cast %687 : vector<2x1x128xf32> to vector<2x128xf32>
    %cst_142 = arith.constant dense<0.000000e+00> : vector<2x128xf32>
    %689 = tpu.matmul %666, %445, %cst_142 {dimension_numbers = #tpu.dot_dimension_numbers<[1], [0], [0], [1], [0, 0, 1, 1], [], []>} : vector<2x32xf32>, vector<32x128xf32>, vector<2x128xf32> -> vector<2x128xf32>
    %690 = arith.addf %688, %689 : vector<2x128xf32>
    %691 = arith.negf %690 : vector<2x128xf32>
    %692 = math.exp %691 : vector<2x128xf32>
    %cst_143 = arith.constant 1.000000e+00 : f32
    %693 = vector.broadcast %cst_143 : f32 to vector<2x128xf32>
    %694 = arith.addf %693, %692 : vector<2x128xf32>
    %695 = arith.divf %693, %694 : vector<2x128xf32>
    %696 = math.tanh %690 : vector<2x128xf32>
    %697 = vector.extract_strided_slice %695 {offsets = [0, 0], sizes = [2, 32], strides = [1, 1]} : vector<2x128xf32> to vector<2x32xf32>
    %698 = vector.extract_strided_slice %695 {offsets = [0, 32], sizes = [2, 32], strides = [1, 1]} : vector<2x128xf32> to vector<2x32xf32>
    %699 = vector.extract_strided_slice %696 {offsets = [0, 64], sizes = [2, 32], strides = [1, 1]} : vector<2x128xf32> to vector<2x32xf32>
    %700 = vector.extract_strided_slice %695 {offsets = [0, 96], sizes = [2, 32], strides = [1, 1]} : vector<2x128xf32> to vector<2x32xf32>
    %701 = arith.mulf %698, %664 : vector<2x32xf32>
    %702 = arith.mulf %697, %699 : vector<2x32xf32>
    %703 = arith.addf %701, %702 : vector<2x32xf32>
    %704 = math.tanh %703 : vector<2x32xf32>
    %705 = arith.mulf %700, %704 : vector<2x32xf32>
    %cst_144 = arith.constant dense<0.000000e+00> : vector<2x128xf32>
    %706 = tpu.matmul %705, %446, %cst_144 {dimension_numbers = #tpu.dot_dimension_numbers<[1], [0], [0], [1], [0, 0, 1, 1], [], []>} : vector<2x32xf32>, vector<32x128xf32>, vector<2x128xf32> -> vector<2x128xf32>
    %707 = vector.broadcast %448 : vector<1x128xf32> to vector<2x128xf32>
    %708 = arith.addf %706, %707 : vector<2x128xf32>
    %cst_145 = arith.constant dense<0.000000e+00> : vector<2x128xf32>
    %709 = tpu.matmul %686, %447, %cst_145 {dimension_numbers = #tpu.dot_dimension_numbers<[1], [0], [0], [1], [0, 0, 1, 1], [], []>} : vector<2x32xf32>, vector<32x128xf32>, vector<2x128xf32> -> vector<2x128xf32>
    %710 = arith.addf %708, %709 : vector<2x128xf32>
    %711 = arith.negf %710 : vector<2x128xf32>
    %712 = math.exp %711 : vector<2x128xf32>
    %cst_146 = arith.constant 1.000000e+00 : f32
    %713 = vector.broadcast %cst_146 : f32 to vector<2x128xf32>
    %714 = arith.addf %713, %712 : vector<2x128xf32>
    %715 = arith.divf %713, %714 : vector<2x128xf32>
    %716 = math.tanh %710 : vector<2x128xf32>
    %717 = vector.extract_strided_slice %715 {offsets = [0, 0], sizes = [2, 32], strides = [1, 1]} : vector<2x128xf32> to vector<2x32xf32>
    %718 = vector.extract_strided_slice %715 {offsets = [0, 32], sizes = [2, 32], strides = [1, 1]} : vector<2x128xf32> to vector<2x32xf32>
    %719 = vector.extract_strided_slice %716 {offsets = [0, 64], sizes = [2, 32], strides = [1, 1]} : vector<2x128xf32> to vector<2x32xf32>
    %720 = vector.extract_strided_slice %715 {offsets = [0, 96], sizes = [2, 32], strides = [1, 1]} : vector<2x128xf32> to vector<2x32xf32>
    %721 = arith.mulf %718, %684 : vector<2x32xf32>
    %722 = arith.mulf %717, %719 : vector<2x32xf32>
    %723 = arith.addf %721, %722 : vector<2x32xf32>
    %724 = math.tanh %723 : vector<2x32xf32>
    %725 = arith.mulf %720, %724 : vector<2x32xf32>
    %726 = vector.extract_strided_slice %444 {offsets = [0, 7, 0], sizes = [2, 1, 128], strides = [1, 1, 1]} : vector<2x8x128xf32> to vector<2x1x128xf32>
    %727 = vector.shape_cast %726 : vector<2x1x128xf32> to vector<2x128xf32>
    %cst_147 = arith.constant dense<0.000000e+00> : vector<2x128xf32>
    %728 = tpu.matmul %705, %445, %cst_147 {dimension_numbers = #tpu.dot_dimension_numbers<[1], [0], [0], [1], [0, 0, 1, 1], [], []>} : vector<2x32xf32>, vector<32x128xf32>, vector<2x128xf32> -> vector<2x128xf32>
    %729 = arith.addf %727, %728 : vector<2x128xf32>
    %730 = arith.negf %729 : vector<2x128xf32>
    %731 = math.exp %730 : vector<2x128xf32>
    %cst_148 = arith.constant 1.000000e+00 : f32
    %732 = vector.broadcast %cst_148 : f32 to vector<2x128xf32>
    %733 = arith.addf %732, %731 : vector<2x128xf32>
    %734 = arith.divf %732, %733 : vector<2x128xf32>
    %735 = math.tanh %729 : vector<2x128xf32>
    %736 = vector.extract_strided_slice %734 {offsets = [0, 0], sizes = [2, 32], strides = [1, 1]} : vector<2x128xf32> to vector<2x32xf32>
    %737 = vector.extract_strided_slice %734 {offsets = [0, 32], sizes = [2, 32], strides = [1, 1]} : vector<2x128xf32> to vector<2x32xf32>
    %738 = vector.extract_strided_slice %735 {offsets = [0, 64], sizes = [2, 32], strides = [1, 1]} : vector<2x128xf32> to vector<2x32xf32>
    %739 = vector.extract_strided_slice %734 {offsets = [0, 96], sizes = [2, 32], strides = [1, 1]} : vector<2x128xf32> to vector<2x32xf32>
    %740 = arith.mulf %737, %703 : vector<2x32xf32>
    %741 = arith.mulf %736, %738 : vector<2x32xf32>
    %742 = arith.addf %740, %741 : vector<2x32xf32>
    %743 = math.tanh %742 : vector<2x32xf32>
    %744 = arith.mulf %739, %743 : vector<2x32xf32>
    %cst_149 = arith.constant dense<0.000000e+00> : vector<2x128xf32>
    %745 = tpu.matmul %744, %446, %cst_149 {dimension_numbers = #tpu.dot_dimension_numbers<[1], [0], [0], [1], [0, 0, 1, 1], [], []>} : vector<2x32xf32>, vector<32x128xf32>, vector<2x128xf32> -> vector<2x128xf32>
    %746 = vector.broadcast %448 : vector<1x128xf32> to vector<2x128xf32>
    %747 = arith.addf %745, %746 : vector<2x128xf32>
    %cst_150 = arith.constant dense<0.000000e+00> : vector<2x128xf32>
    %748 = tpu.matmul %725, %447, %cst_150 {dimension_numbers = #tpu.dot_dimension_numbers<[1], [0], [0], [1], [0, 0, 1, 1], [], []>} : vector<2x32xf32>, vector<32x128xf32>, vector<2x128xf32> -> vector<2x128xf32>
    %749 = arith.addf %747, %748 : vector<2x128xf32>
    %750 = arith.negf %749 : vector<2x128xf32>
    %751 = math.exp %750 : vector<2x128xf32>
    %cst_151 = arith.constant 1.000000e+00 : f32
    %752 = vector.broadcast %cst_151 : f32 to vector<2x128xf32>
    %753 = arith.addf %752, %751 : vector<2x128xf32>
    %754 = arith.divf %752, %753 : vector<2x128xf32>
    %755 = math.tanh %749 : vector<2x128xf32>
    %756 = vector.extract_strided_slice %754 {offsets = [0, 0], sizes = [2, 32], strides = [1, 1]} : vector<2x128xf32> to vector<2x32xf32>
    %757 = vector.extract_strided_slice %754 {offsets = [0, 32], sizes = [2, 32], strides = [1, 1]} : vector<2x128xf32> to vector<2x32xf32>
    %758 = vector.extract_strided_slice %755 {offsets = [0, 64], sizes = [2, 32], strides = [1, 1]} : vector<2x128xf32> to vector<2x32xf32>
    %759 = vector.extract_strided_slice %754 {offsets = [0, 96], sizes = [2, 32], strides = [1, 1]} : vector<2x128xf32> to vector<2x32xf32>
    %760 = arith.mulf %757, %723 : vector<2x32xf32>
    %761 = arith.mulf %756, %758 : vector<2x32xf32>
    %762 = arith.addf %760, %761 : vector<2x32xf32>
    %763 = math.tanh %762 : vector<2x32xf32>
    %764 = arith.mulf %759, %763 : vector<2x32xf32>
    %c0_152 = arith.constant 0 : index
    %c0_153 = arith.constant 0 : index
    %765 = vector.load %arg17[%c0_152, %c0_153] : memref<32x8xf32, #tpu.memory_space<vmem>>, vector<32x8xf32>
    %cst_154 = arith.constant dense<0.000000e+00> : vector<2x8xf32>
    %766 = tpu.matmul %764, %765, %cst_154 {dimension_numbers = #tpu.dot_dimension_numbers<[1], [0], [0], [1], [0, 0, 1, 1], [], []>} : vector<2x32xf32>, vector<32x8xf32>, vector<2x8xf32> -> vector<2x8xf32>
    %c0_155 = arith.constant 0 : index
    %c0_156 = arith.constant 0 : index
    %767 = vector.load %arg18[%c0_155, %c0_156] : memref<1x8xf32, #tpu.memory_space<vmem>>, vector<1x8xf32>
    %768 = vector.broadcast %767 : vector<1x8xf32> to vector<2x8xf32>
    %769 = arith.addf %766, %768 : vector<2x8xf32>
    %c0_157 = arith.constant 0 : index
    %c0_158 = arith.constant 0 : index
    %770 = vector.load %arg19[%c0_157, %c0_158] : memref<2x8xf32, #tpu.memory_space<vmem>>, vector<2x8xf32>
    tpu.vector_store %arg19[%c0_157, %c0_158], %769 {strides = array<i32>} : memref<2x8xf32, #tpu.memory_space<vmem>>, vector<2x8xf32>,
    return
  }
}

</mosaic_0001>

<llo_original>
// kernel: tpu_custom_call.1
$region0: #{tpu_custom_call.1}
  #allocation0 [shape = 'u32[]', space=smem, size = 0x4, offset = 0x4, fixed_abs, tag = 'smem constant byte address 0x4 - core index']
  #allocation1 [shape = 'u32[72,128]{1,0:T(1,128)}', space=vmem, size = 0x9000, scoped, tag = 'internal scratch']
  %s0 = inlined_call_operand.hbm [shape: f32[2,8,16], index: 0, kind: input, shape index: {}]
  %s1 = inlined_call_operand.hbm [shape: f32[16,128], index: 1, kind: input, shape index: {}]
  %s2 = inlined_call_operand.vmem [shape: f32[32,128], index: 2, kind: input, shape index: {}]
  %s3 = inlined_call_operand.vmem [shape: f32[1,128], index: 3, kind: input, shape index: {}]
  %s4 = inlined_call_operand.hbm [shape: f32[32,128], index: 4, kind: input, shape index: {}]
  %s5 = inlined_call_operand.hbm [shape: f32[32,128], index: 5, kind: input, shape index: {}]
  %s6 = inlined_call_operand.vmem [shape: f32[1,128], index: 6, kind: input, shape index: {}]
  %s7 = inlined_call_operand.hbm [shape: f32[32,96], index: 7, kind: input, shape index: {}]
  %s8 = inlined_call_operand.vmem [shape: f32[1,96], index: 8, kind: input, shape index: {}]
  %s9 = inlined_call_operand.hbm [shape: f32[4,8,8], index: 9, kind: input, shape index: {}]
  %s10 = inlined_call_operand.vmem [shape: f32[1,8], index: 10, kind: input, shape index: {}]
  %s11 = inlined_call_operand.vmem [shape: f32[8,128], index: 11, kind: input, shape index: {}]
  %s12 = inlined_call_operand.hbm [shape: f32[32,128], index: 12, kind: input, shape index: {}]
  %s13 = inlined_call_operand.vmem [shape: f32[1,128], index: 13, kind: input, shape index: {}]
  %s14 = inlined_call_operand.hbm [shape: f32[32,128], index: 14, kind: input, shape index: {}]
  %s15 = inlined_call_operand.hbm [shape: f32[32,128], index: 15, kind: input, shape index: {}]
  %s16 = inlined_call_operand.vmem [shape: f32[1,128], index: 16, kind: input, shape index: {}]
  %s17 = inlined_call_operand.vmem [shape: f32[32,8], index: 17, kind: input, shape index: {}]
  %s18 = inlined_call_operand.vmem [shape: f32[1,8], index: 18, kind: input, shape index: {}]
  %s19 = inlined_call_operand.hbm [shape: f32[2,8], index: 19, kind: output, shape index: {}]
  %s20 = sld [smem:[#allocation0]]
  $region122: #{tpu_custom_call.1} parent=0
    _
  %s22 = ssub.s32 1, %s20
  %s23 = scalar_select 0, %s22, %s20
  $region1: #{tpu_custom_call.1} parent=0
    #allocation2 [shape = 'u8[8192]{0}', space=vmem, size = 0x2000, scoped, tag = 'input window, operand 0, single buffered']
    #allocation3 [shape = 's32[1]{0}', space=sflag, size = 0x4, scoped, tag = 'scoped memory for tpu_custom_call.1']
    #allocation4 [shape = 's32[1]{0}', space=sflag, size = 0x4, scoped, tag = 'scoped memory for tpu_custom_call.1']
    #allocation5 [shape = 'u8[8192]{0}', space=vmem, size = 0x2000, scoped, tag = 'input window, operand 1, single buffered']
    #allocation6 [shape = 's32[1]{0}', space=sflag, size = 0x4, scoped, tag = 'scoped memory for tpu_custom_call.1']
    #allocation7 [shape = 'u8[16384]{0}', space=vmem, size = 0x4000, scoped, tag = 'input window, operand 4, single buffered']
    #allocation8 [shape = 'u8[16384]{0}', space=vmem, size = 0x4000, scoped, tag = 'input window, operand 5, single buffered']
    #allocation9 [shape = 's32[1]{0}', space=sflag, size = 0x4, scoped, tag = 'scoped memory for tpu_custom_call.1']
    #allocation10 [shape = 'u8[16384]{0}', space=vmem, size = 0x4000, scoped, tag = 'input window, operand 7, single buffered']
    #allocation11 [shape = 'u8[16384]{0}', space=vmem, size = 0x4000, scoped, tag = 'input window, operand 9, single buffered']
    #allocation12 [shape = 's32[1]{0}', space=sflag, size = 0x4, scoped, tag = 'scoped memory for tpu_custom_call.1']
    #allocation13 [shape = 'u8[16384]{0}', space=vmem, size = 0x4000, scoped, tag = 'input window, operand 12, single buffered']
    #allocation14 [shape = 'u8[16384]{0}', space=vmem, size = 0x4000, scoped, tag = 'input window, operand 14, single buffered']
    #allocation15 [shape = 's32[1]{0}', space=sflag, size = 0x4, scoped, tag = 'scoped memory for tpu_custom_call.1']
    #allocation16 [shape = 'u8[16384]{0}', space=vmem, size = 0x4000, scoped, tag = 'input window, operand 15, single buffered']
    #allocation17 [shape = 'u8[1024]{0}', space=vmem, size = 0x400, scoped, tag = 'output window, operand 0, single buffered']
    %24 = vsyncpa [#allocation3], 0
    %25 = vsyncpa [#allocation6], 0
    %26 = vsyncpa [#allocation9], 0
    %27 = vsyncpa [#allocation12], 0
    %28 = vsyncpa [#allocation15], 0
    %29 = vsyncpa [#allocation4], 0
    // Predicated region
    $region2: #{tpu_custom_call.1} parent=1 // pred_check
      _
    $region3: #{tpu_custom_call.1} parent=1 // pred_check_branch
      %31 = sbr.rel (0) target = $region5
    $region4: #{tpu_custom_call.1} parent=1 // pred_region
      %33 = vsyncadd [#allocation3], 0
      %s34 = sshll.u32 %s0, 4
      %s35 = int_to_ptr.hbm [resolvable:$true] %s34
      %s36 = sshll.u32 [#allocation2], 4
      %s37 = int_to_ptr.vmem [resolvable:$true] %s36
      %42 = dma.hbm_to_vmem [thread:$0]  %s35, 256, %s37, [#allocation3], 128, 128, 8
    $region5: #{tpu_custom_call.1} parent=1 // pred_fallthru
      _
    // Predicated region
    $region6: #{tpu_custom_call.1} parent=1 // pred_check
      _
    $region7: #{tpu_custom_call.1} parent=1 // pred_check_branch
      %44 = sbr.rel (0) target = $region9
    $region8: #{tpu_custom_call.1} parent=1 // pred_region
      %46 = vsyncadd [#allocation6], 0
      %s47 = sshll.u32 %s1, 4
      %s48 = int_to_ptr.hbm [resolvable:$true] %s47
      %s49 = sshll.u32 [#allocation5], 4
      %s50 = int_to_ptr.vmem [resolvable:$true] %s49
      %55 = dma.hbm_to_vmem [thread:$0]  %s48, 256, %s50, [#allocation6], 128, 128, 8
    $region9: #{tpu_custom_call.1} parent=1 // pred_fallthru
      _
    // Predicated region
    $region10: #{tpu_custom_call.1} parent=1 // pred_check
      _
    $region11: #{tpu_custom_call.1} parent=1 // pred_check_branch
      %57 = sbr.rel (0) target = $region13
    $region12: #{tpu_custom_call.1} parent=1 // pred_region
      _
    $region13: #{tpu_custom_call.1} parent=1 // pred_fallthru
      _
    // Predicated region
    $region14: #{tpu_custom_call.1} parent=1 // pred_check
      _
    $region15: #{tpu_custom_call.1} parent=1 // pred_check_branch
      %59 = sbr.rel (0) target = $region17
    $region16: #{tpu_custom_call.1} parent=1 // pred_region
      _
    $region17: #{tpu_custom_call.1} parent=1 // pred_fallthru
      _
    // Predicated region
    $region18: #{tpu_custom_call.1} parent=1 // pred_check
      _
    $region19: #{tpu_custom_call.1} parent=1 // pred_check_branch
      %61 = sbr.rel (0) target = $region21
    $region20: #{tpu_custom_call.1} parent=1 // pred_region
      %63 = vsyncadd [#allocation6], 0
      %s64 = sshll.u32 %s4, 4
      %s65 = int_to_ptr.hbm [resolvable:$true] %s64
      %s66 = sshll.u32 [#allocation7], 4
      %s67 = int_to_ptr.vmem [resolvable:$true] %s66
      %72 = dma.hbm_to_vmem [thread:$0]  %s65, 512, %s67, [#allocation6], 128, 128, 8
    $region21: #{tpu_custom_call.1} parent=1 // pred_fallthru
      _
    // Predicated region
    $region22: #{tpu_custom_call.1} parent=1 // pred_check
      _
    $region23: #{tpu_custom_call.1} parent=1 // pred_check_branch
      %74 = sbr.rel (0) target = $region25
    $region24: #{tpu_custom_call.1} parent=1 // pred_region
      %76 = vsyncadd [#allocation9], 0
      %s77 = sshll.u32 %s5, 4
      %s78 = int_to_ptr.hbm [resolvable:$true] %s77
      %s79 = sshll.u32 [#allocation8], 4
      %s80 = int_to_ptr.vmem [resolvable:$true] %s79
      %85 = dma.hbm_to_vmem [thread:$0]  %s78, 512, %s80, [#allocation9], 128, 128, 8
    $region25: #{tpu_custom_call.1} parent=1 // pred_fallthru
      _
    // Predicated region
    $region26: #{tpu_custom_call.1} parent=1 // pred_check
      _
    $region27: #{tpu_custom_call.1} parent=1 // pred_check_branch
      %87 = sbr.rel (0) target = $region29
    $region28: #{tpu_custom_call.1} parent=1 // pred_region
      _
    $region29: #{tpu_custom_call.1} parent=1 // pred_fallthru
      _
    // Predicated region
    $region30: #{tpu_custom_call.1} parent=1 // pred_check
      _
    $region31: #{tpu_custom_call.1} parent=1 // pred_check_branch
      %89 = sbr.rel (0) target = $region33
    $region32: #{tpu_custom_call.1} parent=1 // pred_region
      %91 = vsyncadd [#allocation9], 0
      %s92 = sshll.u32 %s7, 4
      %s93 = int_to_ptr.hbm [resolvable:$true] %s92
      %s94 = sshll.u32 [#allocation10], 4
      %s95 = int_to_ptr.vmem [resolvable:$true] %s94
      %100 = dma.hbm_to_vmem [thread:$0]  %s93, 512, %s95, [#allocation9], 128, 128, 8
    $region33: #{tpu_custom_call.1} parent=1 // pred_fallthru
      _
    // Predicated region
    $region34: #{tpu_custom_call.1} parent=1 // pred_check
      _
    $region35: #{tpu_custom_call.1} parent=1 // pred_check_branch
      %102 = sbr.rel (0) target = $region37
    $region36: #{tpu_custom_call.1} parent=1 // pred_region
      _
    $region37: #{tpu_custom_call.1} parent=1 // pred_fallthru
      _
    // Predicated region
    $region38: #{tpu_custom_call.1} parent=1 // pred_check
      _
    $region39: #{tpu_custom_call.1} parent=1 // pred_check_branch
      %104 = sbr.rel (0) target = $region41
    $region40: #{tpu_custom_call.1} parent=1 // pred_region
      %106 = vsyncadd [#allocation12], 0
      %s107 = sshll.u32 %s9, 4
      %s108 = int_to_ptr.hbm [resolvable:$true] %s107
      %s109 = sshll.u32 [#allocation11], 4
      %s110 = int_to_ptr.vmem [resolvable:$true] %s109
      %115 = dma.hbm_to_vmem [thread:$0]  %s108, 512, %s110, [#allocation12], 128, 128, 8
    $region41: #{tpu_custom_call.1} parent=1 // pred_fallthru
      _
    // Predicated region
    $region42: #{tpu_custom_call.1} parent=1 // pred_check
      _
    $region43: #{tpu_custom_call.1} parent=1 // pred_check_branch
      %117 = sbr.rel (0) target = $region45
    $region44: #{tpu_custom_call.1} parent=1 // pred_region
      _
    $region45: #{tpu_custom_call.1} parent=1 // pred_fallthru
      _
    // Predicated region
    $region46: #{tpu_custom_call.1} parent=1 // pred_check
      _
    $region47: #{tpu_custom_call.1} parent=1 // pred_check_branch
      %119 = sbr.rel (0) target = $region49
    $region48: #{tpu_custom_call.1} parent=1 // pred_region
      _
    $region49: #{tpu_custom_call.1} parent=1 // pred_fallthru
      _
    // Predicated region
    $region50: #{tpu_custom_call.1} parent=1 // pred_check
      _
    $region51: #{tpu_custom_call.1} parent=1 // pred_check_branch
      %121 = sbr.rel (0) target = $region53
    $region52: #{tpu_custom_call.1} parent=1 // pred_region
      %123 = vsyncadd [#allocation12], 0
      %s124 = sshll.u32 %s12, 4
      %s125 = int_to_ptr.hbm [resolvable:$true] %s124
      %s126 = sshll.u32 [#allocation13], 4
      %s127 = int_to_ptr.vmem [resolvable:$true] %s126
      %132 = dma.hbm_to_vmem [thread:$0]  %s125, 512, %s127, [#allocation12], 128, 128, 8
    $region53: #{tpu_custom_call.1} parent=1 // pred_fallthru
      _
    // Predicated region
    $region54: #{tpu_custom_call.1} parent=1 // pred_check
      _
    $region55: #{tpu_custom_call.1} parent=1 // pred_check_branch
      %134 = sbr.rel (0) target = $region57
    $region56: #{tpu_custom_call.1} parent=1 // pred_region
      _
    $region57: #{tpu_custom_call.1} parent=1 // pred_fallthru
      _
    // Predicated region
    $region58: #{tpu_custom_call.1} parent=1 // pred_check
      _
    $region59: #{tpu_custom_call.1} parent=1 // pred_check_branch
      %136 = sbr.rel (0) target = $region61
    $region60: #{tpu_custom_call.1} parent=1 // pred_region
      %138 = vsyncadd [#allocation15], 0
      %s139 = sshll.u32 %s14, 4
      %s140 = int_to_ptr.hbm [resolvable:$true] %s139
      %s141 = sshll.u32 [#allocation14], 4
      %s142 = int_to_ptr.vmem [resolvable:$true] %s141
      %147 = dma.hbm_to_vmem [thread:$0]  %s140, 512, %s142, [#allocation15], 128, 128, 8
    $region61: #{tpu_custom_call.1} parent=1 // pred_fallthru
      _
    // Predicated region
    $region62: #{tpu_custom_call.1} parent=1 // pred_check
      _
    $region63: #{tpu_custom_call.1} parent=1 // pred_check_branch
      %149 = sbr.rel (0) target = $region65
    $region64: #{tpu_custom_call.1} parent=1 // pred_region
      %151 = vsyncadd [#allocation15], 0
      %s152 = sshll.u32 %s15, 4
      %s153 = int_to_ptr.hbm [resolvable:$true] %s152
      %s154 = sshll.u32 [#allocation16], 4
      %s155 = int_to_ptr.vmem [resolvable:$true] %s154
      %160 = dma.hbm_to_vmem [thread:$0]  %s153, 512, %s155, [#allocation15], 128, 128, 8
    $region65: #{tpu_custom_call.1} parent=1 // pred_fallthru
      _
    // Predicated region
    $region66: #{tpu_custom_call.1} parent=1 // pred_check
      _
    $region67: #{tpu_custom_call.1} parent=1 // pred_check_branch
      %162 = sbr.rel (0) target = $region69
    $region68: #{tpu_custom_call.1} parent=1 // pred_region
      _
    $region69: #{tpu_custom_call.1} parent=1 // pred_fallthru
      _
    // Predicated region
    $region70: #{tpu_custom_call.1} parent=1 // pred_check
      _
    $region71: #{tpu_custom_call.1} parent=1 // pred_check_branch
      %164 = sbr.rel (0) target = $region73
    $region72: #{tpu_custom_call.1} parent=1 // pred_region
      _
    $region73: #{tpu_custom_call.1} parent=1 // pred_fallthru
      _
    // Predicated region
    $region74: #{tpu_custom_call.1} parent=1 // pred_check
      _
    $region75: #{tpu_custom_call.1} parent=1 // pred_check_branch
      %166 = sbr.rel (0) target = $region77
    $region76: #{tpu_custom_call.1} parent=1 // pred_region
      _
    $region77: #{tpu_custom_call.1} parent=1 // pred_fallthru
      _
    // Predicated region
    $region78: #{tpu_custom_call.1} parent=1 // pred_check
      _
    $region79: #{tpu_custom_call.1} parent=1 // pred_check_branch
      %168 = sbr.rel (0) target = $region81
    $region80: #{tpu_custom_call.1} parent=1 // pred_region
      %170 = dma.done [#allocation3], 256
    $region81: #{tpu_custom_call.1} parent=1 // pred_fallthru
      _
    // Predicated region
    $region82: #{tpu_custom_call.1} parent=1 // pred_check
      _
    $region83: #{tpu_custom_call.1} parent=1 // pred_check_branch
      %172 = sbr.rel (0) target = $region85
    $region84: #{tpu_custom_call.1} parent=1 // pred_region
      %174 = dma.done [#allocation6], 256
    $region85: #{tpu_custom_call.1} parent=1 // pred_fallthru
      _
    // Predicated region
    $region86: #{tpu_custom_call.1} parent=1 // pred_check
      _
    $region87: #{tpu_custom_call.1} parent=1 // pred_check_branch
      %176 = sbr.rel (0) target = $region89
    $region88: #{tpu_custom_call.1} parent=1 // pred_region
      %178 = dma.done [#allocation6], 512
    $region89: #{tpu_custom_call.1} parent=1 // pred_fallthru
      _
    // Predicated region
    $region90: #{tpu_custom_call.1} parent=1 // pred_check
      _
    $region91: #{tpu_custom_call.1} parent=1 // pred_check_branch
      %180 = sbr.rel (0) target = $region93
    $region92: #{tpu_custom_call.1} parent=1 // pred_region
      %182 = dma.done [#allocation9], 512
    $region93: #{tpu_custom_call.1} parent=1 // pred_fallthru
      _
    // Predicated region
    $region94: #{tpu_custom_call.1} parent=1 // pred_check
      _
    $region95: #{tpu_custom_call.1} parent=1 // pred_check_branch
      %184 = sbr.rel (0) target = $region97
    $region96: #{tpu_custom_call.1} parent=1 // pred_region
      %186 = dma.done [#allocation9], 512
    $region97: #{tpu_custom_call.1} parent=1 // pred_fallthru
      _
    // Predicated region
    $region98: #{tpu_custom_call.1} parent=1 // pred_check
      _
    $region99: #{tpu_custom_call.1} parent=1 // pred_check_branch
      %188 = sbr.rel (0) target = $region101
    $region100: #{tpu_custom_call.1} parent=1 // pred_region
      %190 = dma.done [#allocation12], 512
    $region101: #{tpu_custom_call.1} parent=1 // pred_fallthru
      _
    // Predicated region
    $region102: #{tpu_custom_call.1} parent=1 // pred_check
      _
    $region103: #{tpu_custom_call.1} parent=1 // pred_check_branch
      %192 = sbr.rel (0) target = $region105
    $region104: #{tpu_custom_call.1} parent=1 // pred_region
      %194 = dma.done [#allocation12], 512
    $region105: #{tpu_custom_call.1} parent=1 // pred_fallthru
      _
    // Predicated region
    $region106: #{tpu_custom_call.1} parent=1 // pred_check
      _
    $region107: #{tpu_custom_call.1} parent=1 // pred_check_branch
      %196 = sbr.rel (0) target = $region109
    $region108: #{tpu_custom_call.1} parent=1 // pred_region
      %198 = dma.done [#allocation15], 512
    $region109: #{tpu_custom_call.1} parent=1 // pred_fallthru
      _
    // Predicated region
    $region110: #{tpu_custom_call.1} parent=1 // pred_check
      _
    $region111: #{tpu_custom_call.1} parent=1 // pred_check_branch
      %200 = sbr.rel (0) target = $region113
    $region112: #{tpu_custom_call.1} parent=1 // pred_region
      %202 = dma.done [#allocation15], 512
    $region113: #{tpu_custom_call.1} parent=1 // pred_fallthru
      _
    %v203 = vld [vmem:[#allocation2] sm:$0xff]
    %v204 = vld [vmem:[#allocation2 + $0x8] sm:$0xff]
    %v205 = vld [vmem:[#allocation5] sm:$0xff]
    %v206 = vld [vmem:[#allocation5 + $0x8] sm:$0xff]
    %v207 = vld [vmem:[%s3] sm:$0x1]
    %v209 = vperm.slane %v207, 0
    %vm211 = vcmask 130048
    %v213 = vsel %vm211, %v203, 0
    %v216 = vsel %vm211, %v204, 0
    %218 = vmatpush.msra.mxu0 0.0
    %219 = vmatpush.msra.mxu0 0.0
    %220 = vmatpush.msra.mxu0 0.0
    %221 = vmatpush.msra.mxu0 0.0
    %222 = vmatpush.msra.mxu0 0.0
    %223 = vmatpush.msra.mxu0 0.0
    %224 = vmatpush.msra.mxu0 0.0
    %225 = vmatpush.msra.mxu0 0.0
    %226 = vmatpush.msra.mxu0 0.0
    %227 = vmatpush.msra.mxu0 0.0
    %228 = vmatpush.msra.mxu0 0.0
    %229 = vmatpush.msra.mxu0 0.0
    %230 = vmatpush.msra.mxu0 0.0
    %231 = vmatpush.msra.mxu0 0.0
    %232 = vmatpush.msra.mxu0 %v206
    %233 = vmatpush.msra.mxu0 %v205
    %234 = vmatmul.f32.gmra.mxu0 %v213
    %v235 = vpop.f32.mrf.mxu0
    %v236 = vadd.f32 %v209, %v235
    %237 = vmatmul.f32.gmra.mxu0 %v216
    %v238 = vpop.f32.mrf.mxu0
    %v239 = vadd.f32 %v209, %v238
    %240 = vdwg.mxu0
    %v241 = vld [vmem:[%s2] sm:$0xff]
    %v242 = vld [vmem:[%s2 + $0x8] sm:$0xff]
    %v243 = vld [vmem:[%s2 + $0x10] sm:$0xff]
    %v244 = vld [vmem:[%s2 + $0x18] sm:$0xff]
    %v245 = vld [vmem:[#allocation7] sm:$0xff]
    %v246 = vld [vmem:[#allocation7 + $0x8] sm:$0xff]
    %v247 = vld [vmem:[#allocation7 + $0x10] sm:$0xff]
    %v248 = vld [vmem:[#allocation7 + $0x18] sm:$0xff]
    %v249 = vld [vmem:[#allocation8] sm:$0xff]
    %v250 = vld [vmem:[#allocation8 + $0x8] sm:$0xff]
    %v251 = vld [vmem:[#allocation8 + $0x10] sm:$0xff]
    %v252 = vld [vmem:[#allocation8 + $0x18] sm:$0xff]
    %v253 = vld [vmem:[%s6] sm:$0x1]
    %vm254 = vcmask 261120
    %v256 = vsel %vm254, 0.0, 0
    %258 = vmatpush.msra.mxu0 0.0
    %259 = vmatpush.msra.mxu0 0.0
    %260 = vmatpush.msra.mxu0 0.0
    %261 = vmatpush.msra.mxu0 0.0
    %262 = vmatpush.msra.mxu0 0.0
    %263 = vmatpush.msra.mxu0 0.0
    %264 = vmatpush.msra.mxu0 0.0
    %265 = vmatpush.msra.mxu0 0.0
    %266 = vmatpush.msra.mxu0 0.0
    %267 = vmatpush.msra.mxu0 0.0
    %268 = vmatpush.msra.mxu0 0.0
    %269 = vmatpush.msra.mxu0 0.0
    %270 = vmatpush.msra.mxu0 %v244
    %271 = vmatpush.msra.mxu0 %v243
    %272 = vmatpush.msra.mxu0 %v242
    %273 = vmatpush.msra.mxu0 %v241
    %274 = vmatmul.f32.gmra.mxu0 %v256
    %v275 = vpop.f32.mrf.mxu0
    %v276 = vadd.f32 0.0, %v275
    %277 = vdwg.mxu0
    %v279 = vrot.slane %v276, 1
    %v282 = vadd.f32 %v236, %v276
    %v283 = vadd.f32 %v239, %v279
    %v284 = vxor.u32 %v282, 2147483648
    %v285 = vxor.u32 %v283, 2147483648
    %v286 = vmul.f32 %v284, 1.442695
    %v287 = vpow.pop %v286
    %v288 = vmul.f32 %v285, 1.442695
    %v289 = vpow.pop %v288
    %v290 = vadd.f32 %v287, 1.0
    %v291 = vadd.f32 %v289, 1.0
    %v292 = vrcp.pop %v290
    %v293 = vmul.f32 %v290, %v292
    %v294 = vsub.f32 1.0, %v293
    %v295 = vmul.f32 %v292, %v294
    %v296 = vadd.f32 %v292, %v295
    %vm297 = vweird.f32 %v290
    %vm298 = vweird.f32 %v292
    %vm299 = vmor %vm297, %vm298
    %v300 = vsel %vm299, %v292, %v296
    %v301 = vand.u32 2147483647, %v290
    %vm302 = vcmp.eq.f32.partialorder %v301, 8.507059e+37
    %v303 = vand.u32 %v290, 2147483648
    %v304 = vor.u32 1.1754944e-38, %v303
    %v305 = vsel %vm302, %v304, %v300
    %v306 = vmul.f32 1.0, %v305
    %v307 = vrcp.pop %v291
    %v308 = vmul.f32 %v291, %v307
    %v309 = vsub.f32 1.0, %v308
    %v310 = vmul.f32 %v307, %v309
    %v311 = vadd.f32 %v307, %v310
    %vm312 = vweird.f32 %v291
    %vm313 = vweird.f32 %v307
    %vm314 = vmor %vm312, %vm313
    %v315 = vsel %vm314, %v307, %v311
    %v316 = vand.u32 2147483647, %v291
    %vm317 = vcmp.eq.f32.partialorder %v316, 8.507059e+37
    %v318 = vand.u32 %v291, 2147483648
    %v319 = vor.u32 1.1754944e-38, %v318
    %v320 = vsel %vm317, %v319, %v315
    %v321 = vmul.f32 1.0, %v320
    %v322 = vtanh.pop %v282
    %v323 = vtanh.pop %v283
    %v324 = vmul.f32 %v306, 0.0
    %v325 = vmul.f32 %v321, 0.0
    %328 = vrot.lane.b32.xlu0 %v322, 64
    %v329 = vpop.permute.xlu0 %328
    %330 = vrot.lane.b32.xlu0 %v323, 64
    %v331 = vpop.permute.xlu0 %330
    %v334 = vmul.f32 %v306, %v329
    %v335 = vmul.f32 %v321, %v331
    %338 = vrot.lane.b32.xlu0 %v334, 32
    %v339 = vpop.permute.xlu0 %338
    %340 = vrot.lane.b32.xlu0 %v335, 32
    %v341 = vpop.permute.xlu0 %340
    %v344 = vadd.f32 %v324, %v339
    %v345 = vadd.f32 %v325, %v341
    %v346 = vtanh.pop %v344
    %v347 = vtanh.pop %v345
    %350 = vrot.lane.b32.xlu0 %v346, 64
    %v351 = vpop.permute.xlu0 %350
    %352 = vrot.lane.b32.xlu0 %v347, 64
    %v353 = vpop.permute.xlu0 %352
    %v356 = vmul.f32 %v306, %v351
    %v357 = vmul.f32 %v321, %v353
    %v359 = vperm.slane %v253, 0
    %v363 = vrot.slane %v357, 7
    %vm364 = vcmask 1041409
    %v365 = vsel %vm364, %v363, %v356
    %366 = vrot.lane.b32.xlu0 %v365, 32
    %v367 = vpop.permute.xlu0 %366
    %v368 = vsel %vm254, %v367, 0
    %370 = vmatpush.msra.mxu0 0.0
    %371 = vmatpush.msra.mxu0 0.0
    %372 = vmatpush.msra.mxu0 0.0
    %373 = vmatpush.msra.mxu0 0.0
    %374 = vmatpush.msra.mxu0 0.0
    %375 = vmatpush.msra.mxu0 0.0
    %376 = vmatpush.msra.mxu0 0.0
    %377 = vmatpush.msra.mxu0 0.0
    %378 = vmatpush.msra.mxu0 0.0
    %379 = vmatpush.msra.mxu0 0.0
    %380 = vmatpush.msra.mxu0 0.0
    %381 = vmatpush.msra.mxu0 0.0
    %382 = vmatpush.msra.mxu0 %v248
    %383 = vmatpush.msra.mxu0 %v247
    %384 = vmatpush.msra.mxu0 %v246
    %385 = vmatpush.msra.mxu0 %v245
    %386 = vmatmul.f32.gmra.mxu0 %v368
    %v387 = vpop.f32.mrf.mxu0
    %v388 = vadd.f32 %v359, %v387
    %389 = vdwg.mxu0
    %390 = vmatpush.msra.mxu0 0.0
    %391 = vmatpush.msra.mxu0 0.0
    %392 = vmatpush.msra.mxu0 0.0
    %393 = vmatpush.msra.mxu0 0.0
    %394 = vmatpush.msra.mxu0 0.0
    %395 = vmatpush.msra.mxu0 0.0
    %396 = vmatpush.msra.mxu0 0.0
    %397 = vmatpush.msra.mxu0 0.0
    %398 = vmatpush.msra.mxu0 0.0
    %399 = vmatpush.msra.mxu0 0.0
    %400 = vmatpush.msra.mxu0 0.0
    %401 = vmatpush.msra.mxu0 0.0
    %402 = vmatpush.msra.mxu0 %v252
    %403 = vmatpush.msra.mxu0 %v251
    %404 = vmatpush.msra.mxu0 %v250
    %405 = vmatpush.msra.mxu0 %v249
    %406 = vmatmul.f32.gmra.mxu0 %v256
    %v407 = vpop.f32.mrf.mxu0
    %v408 = vadd.f32 0.0, %v407
    %409 = vdwg.mxu0
    %v410 = vadd.f32 %v388, %v408
    %v411 = vxor.u32 %v410, 2147483648
    %v412 = vmul.f32 %v411, 1.442695
    %v413 = vpow.pop %v412
    %v414 = vadd.f32 %v413, 1.0
    %v415 = vrcp.pop %v414
    %v416 = vmul.f32 %v414, %v415
    %v417 = vsub.f32 1.0, %v416
    %v418 = vmul.f32 %v415, %v417
    %v419 = vadd.f32 %v415, %v418
    %vm420 = vweird.f32 %v414
    %vm421 = vweird.f32 %v415
    %vm422 = vmor %vm420, %vm421
    %v423 = vsel %vm422, %v415, %v419
    %v424 = vand.u32 2147483647, %v414
    %vm425 = vcmp.eq.f32.partialorder %v424, 8.507059e+37
    %v426 = vand.u32 %v414, 2147483648
    %v427 = vor.u32 1.1754944e-38, %v426
    %v428 = vsel %vm425, %v427, %v423
    %v429 = vmul.f32 1.0, %v428
    %v430 = vtanh.pop %v410
    %v431 = vmul.f32 %v429, 0.0
    %433 = vrot.lane.b32.xlu0 %v430, 64
    %v434 = vpop.permute.xlu0 %433
    %v436 = vmul.f32 %v429, %v434
    %438 = vrot.lane.b32.xlu0 %v436, 32
    %v439 = vpop.permute.xlu0 %438
    %v441 = vadd.f32 %v431, %v439
    %v442 = vtanh.pop %v441
    %444 = vrot.lane.b32.xlu0 %v442, 64
    %v445 = vpop.permute.xlu0 %444
    %v447 = vmul.f32 %v429, %v445
    %448 = vmatpush.msra.mxu0 0.0
    %449 = vmatpush.msra.mxu0 0.0
    %450 = vmatpush.msra.mxu0 0.0
    %451 = vmatpush.msra.mxu0 0.0
    %452 = vmatpush.msra.mxu0 0.0
    %453 = vmatpush.msra.mxu0 0.0
    %454 = vmatpush.msra.mxu0 0.0
    %455 = vmatpush.msra.mxu0 0.0
    %456 = vmatpush.msra.mxu0 0.0
    %457 = vmatpush.msra.mxu0 0.0
    %458 = vmatpush.msra.mxu0 0.0
    %459 = vmatpush.msra.mxu0 0.0
    %460 = vmatpush.msra.mxu0 %v244
    %461 = vmatpush.msra.mxu0 %v243
    %462 = vmatpush.msra.mxu0 %v242
    %463 = vmatpush.msra.mxu0 %v241
    %464 = vmatmul.f32.gmra.mxu0 %v368
    %v465 = vpop.f32.mrf.mxu0
    %v466 = vadd.f32 0.0, %v465
    %467 = vdwg.mxu0
    %v469 = vrot.slane %v466, 7
    %v472 = vadd.f32 %v236, %v469
    %v473 = vadd.f32 %v239, %v466
    %v474 = vxor.u32 %v472, 2147483648
    %v475 = vxor.u32 %v473, 2147483648
    %v476 = vmul.f32 %v474, 1.442695
    %v477 = vpow.pop %v476
    %v478 = vmul.f32 %v475, 1.442695
    %v479 = vpow.pop %v478
    %v480 = vadd.f32 %v477, 1.0
    %v481 = vadd.f32 %v479, 1.0
    %v482 = vrcp.pop %v480
    %v483 = vmul.f32 %v480, %v482
    %v484 = vsub.f32 1.0, %v483
    %v485 = vmul.f32 %v482, %v484
    %v486 = vadd.f32 %v482, %v485
    %vm487 = vweird.f32 %v480
    %vm488 = vweird.f32 %v482
    %vm489 = vmor %vm487, %vm488
    %v490 = vsel %vm489, %v482, %v486
    %v491 = vand.u32 2147483647, %v480
    %vm492 = vcmp.eq.f32.partialorder %v491, 8.507059e+37
    %v493 = vand.u32 %v480, 2147483648
    %v494 = vor.u32 1.1754944e-38, %v493
    %v495 = vsel %vm492, %v494, %v490
    %v496 = vmul.f32 1.0, %v495
    %v497 = vrcp.pop %v481
    %v498 = vmul.f32 %v481, %v497
    %v499 = vsub.f32 1.0, %v498
    %v500 = vmul.f32 %v497, %v499
    %v501 = vadd.f32 %v497, %v500
    %vm502 = vweird.f32 %v481
    %vm503 = vweird.f32 %v497
    %vm504 = vmor %vm502, %vm503
    %v505 = vsel %vm504, %v497, %v501
    %v506 = vand.u32 2147483647, %v481
    %vm507 = vcmp.eq.f32.partialorder %v506, 8.507059e+37
    %v508 = vand.u32 %v481, 2147483648
    %v509 = vor.u32 1.1754944e-38, %v508
    %v510 = vsel %vm507, %v509, %v505
    %v511 = vmul.f32 1.0, %v510
    %v512 = vtanh.pop %v472
    %v513 = vtanh.pop %v473
    %v516 = vrot.slane %v344, 7
    %v517 = vrot.slane %v345, 7
    %v520 = vmul.f32 %v496, %v516
    %v521 = vmul.f32 %v511, %v517
    %524 = vrot.lane.b32.xlu0 %v512, 64
    %v525 = vpop.permute.xlu0 %524
    %526 = vrot.lane.b32.xlu0 %v513, 64
    %v527 = vpop.permute.xlu0 %526
    %v530 = vmul.f32 %v496, %v525
    %v531 = vmul.f32 %v511, %v527
    %534 = vrot.lane.b32.xlu0 %v530, 32
    %v535 = vpop.permute.xlu0 %534
    %536 = vrot.lane.b32.xlu0 %v531, 32
    %v537 = vpop.permute.xlu0 %536
    %v540 = vadd.f32 %v520, %v535
    %v541 = vadd.f32 %v521, %v537
    %v542 = vtanh.pop %v540
    %v543 = vtanh.pop %v541
    %546 = vrot.lane.b32.xlu0 %v542, 64
    %v547 = vpop.permute.xlu0 %546
    %548 = vrot.lane.b32.xlu0 %v543, 64
    %v549 = vpop.permute.xlu0 %548
    %v552 = vmul.f32 %v496, %v547
    %v553 = vmul.f32 %v511, %v549
    %v556 = vrot.slane %v552, 1
    %v557 = vsel %vm364, %v553, %v556
    %558 = vrot.lane.b32.xlu0 %v557, 32
    %v559 = vpop.permute.xlu0 %558
    %v560 = vsel %vm254, %v559, 0
    %562 = vmatpush.msra.mxu0 0.0
    %563 = vmatpush.msra.mxu0 0.0
    %564 = vmatpush.msra.mxu0 0.0
    %565 = vmatpush.msra.mxu0 0.0
    %566 = vmatpush.msra.mxu0 0.0
    %567 = vmatpush.msra.mxu0 0.0
    %568 = vmatpush.msra.mxu0 0.0
    %569 = vmatpush.msra.mxu0 0.0
    %570 = vmatpush.msra.mxu0 0.0
    %571 = vmatpush.msra.mxu0 0.0
    %572 = vmatpush.msra.mxu0 0.0
    %573 = vmatpush.msra.mxu0 0.0
    %574 = vmatpush.msra.mxu0 %v248
    %575 = vmatpush.msra.mxu0 %v247
    %576 = vmatpush.msra.mxu0 %v246
    %577 = vmatpush.msra.mxu0 %v245
    %578 = vmatmul.f32.gmra.mxu0 %v560
    %v579 = vpop.f32.mrf.mxu0
    %v580 = vadd.f32 %v359, %v579
    %581 = vdwg.mxu0
    %583 = vrot.lane.b32.xlu0 %v447, 32
    %v584 = vpop.permute.xlu0 %583
    %v585 = vsel %vm254, %v584, 0
    %587 = vmatpush.msra.mxu0 0.0
    %588 = vmatpush.msra.mxu0 0.0
    %589 = vmatpush.msra.mxu0 0.0
    %590 = vmatpush.msra.mxu0 0.0
    %591 = vmatpush.msra.mxu0 0.0
    %592 = vmatpush.msra.mxu0 0.0
    %593 = vmatpush.msra.mxu0 0.0
    %594 = vmatpush.msra.mxu0 0.0
    %595 = vmatpush.msra.mxu0 0.0
    %596 = vmatpush.msra.mxu0 0.0
    %597 = vmatpush.msra.mxu0 0.0
    %598 = vmatpush.msra.mxu0 0.0
    %599 = vmatpush.msra.mxu0 %v252
    %600 = vmatpush.msra.mxu0 %v251
    %601 = vmatpush.msra.mxu0 %v250
    %602 = vmatpush.msra.mxu0 %v249
    %603 = vmatmul.f32.gmra.mxu0 %v585
    %v604 = vpop.f32.mrf.mxu0
    %v605 = vadd.f32 0.0, %v604
    %606 = vdwg.mxu0
    %v607 = vadd.f32 %v580, %v605
    %v608 = vxor.u32 %v607, 2147483648
    %v609 = vmul.f32 %v608, 1.442695
    %v610 = vpow.pop %v609
    %v611 = vadd.f32 %v610, 1.0
    %v612 = vrcp.pop %v611
    %v613 = vmul.f32 %v611, %v612
    %v614 = vsub.f32 1.0, %v613
    %v615 = vmul.f32 %v612, %v614
    %v616 = vadd.f32 %v612, %v615
    %vm617 = vweird.f32 %v611
    %vm618 = vweird.f32 %v612
    %vm619 = vmor %vm617, %vm618
    %v620 = vsel %vm619, %v612, %v616
    %v621 = vand.u32 2147483647, %v611
    %vm622 = vcmp.eq.f32.partialorder %v621, 8.507059e+37
    %v623 = vand.u32 %v611, 2147483648
    %v624 = vor.u32 1.1754944e-38, %v623
    %v625 = vsel %vm622, %v624, %v620
    %v626 = vmul.f32 1.0, %v625
    %v627 = vtanh.pop %v607
    %v628 = vmul.f32 %v626, %v441
    %630 = vrot.lane.b32.xlu0 %v627, 64
    %v631 = vpop.permute.xlu0 %630
    %v633 = vmul.f32 %v626, %v631
    %635 = vrot.lane.b32.xlu0 %v633, 32
    %v636 = vpop.permute.xlu0 %635
    %v638 = vadd.f32 %v628, %v636
    %v639 = vtanh.pop %v638
    %641 = vrot.lane.b32.xlu0 %v639, 64
    %v642 = vpop.permute.xlu0 %641
    %v644 = vmul.f32 %v626, %v642
    %645 = vmatpush.msra.mxu0 0.0
    %646 = vmatpush.msra.mxu0 0.0
    %647 = vmatpush.msra.mxu0 0.0
    %648 = vmatpush.msra.mxu0 0.0
    %649 = vmatpush.msra.mxu0 0.0
    %650 = vmatpush.msra.mxu0 0.0
    %651 = vmatpush.msra.mxu0 0.0
    %652 = vmatpush.msra.mxu0 0.0
    %653 = vmatpush.msra.mxu0 0.0
    %654 = vmatpush.msra.mxu0 0.0
    %655 = vmatpush.msra.mxu0 0.0
    %656 = vmatpush.msra.mxu0 0.0
    %657 = vmatpush.msra.mxu0 %v244
    %658 = vmatpush.msra.mxu0 %v243
    %659 = vmatpush.msra.mxu0 %v242
    %660 = vmatpush.msra.mxu0 %v241
    %661 = vmatmul.f32.gmra.mxu0 %v560
    %v662 = vpop.f32.mrf.mxu0
    %v663 = vadd.f32 0.0, %v662
    %664 = vdwg.mxu0
    %v666 = vrot.slane %v663, 6
    %v667 = vrot.slane %v663, 7
    %v670 = vadd.f32 %v236, %v666
    %v671 = vadd.f32 %v239, %v667
    %v672 = vxor.u32 %v670, 2147483648
    %v673 = vxor.u32 %v671, 2147483648
    %v674 = vmul.f32 %v672, 1.442695
    %v675 = vpow.pop %v674
    %v676 = vmul.f32 %v673, 1.442695
    %v677 = vpow.pop %v676
    %v678 = vadd.f32 %v675, 1.0
    %v679 = vadd.f32 %v677, 1.0
    %v680 = vrcp.pop %v678
    %v681 = vmul.f32 %v678, %v680
    %v682 = vsub.f32 1.0, %v681
    %v683 = vmul.f32 %v680, %v682
    %v684 = vadd.f32 %v680, %v683
    %vm685 = vweird.f32 %v678
    %vm686 = vweird.f32 %v680
    %vm687 = vmor %vm685, %vm686
    %v688 = vsel %vm687, %v680, %v684
    %v689 = vand.u32 2147483647, %v678
    %vm690 = vcmp.eq.f32.partialorder %v689, 8.507059e+37
    %v691 = vand.u32 %v678, 2147483648
    %v692 = vor.u32 1.1754944e-38, %v691
    %v693 = vsel %vm690, %v692, %v688
    %v694 = vmul.f32 1.0, %v693
    %v695 = vrcp.pop %v679
    %v696 = vmul.f32 %v679, %v695
    %v697 = vsub.f32 1.0, %v696
    %v698 = vmul.f32 %v695, %v697
    %v699 = vadd.f32 %v695, %v698
    %vm700 = vweird.f32 %v679
    %vm701 = vweird.f32 %v695
    %vm702 = vmor %vm700, %vm701
    %v703 = vsel %vm702, %v695, %v699
    %v704 = vand.u32 2147483647, %v679
    %vm705 = vcmp.eq.f32.partialorder %v704, 8.507059e+37
    %v706 = vand.u32 %v679, 2147483648
    %v707 = vor.u32 1.1754944e-38, %v706
    %v708 = vsel %vm705, %v707, %v703
    %v709 = vmul.f32 1.0, %v708
    %v710 = vtanh.pop %v670
    %v711 = vtanh.pop %v671
    %v714 = vrot.slane %v540, 7
    %v715 = vrot.slane %v541, 7
    %v718 = vmul.f32 %v694, %v714
    %v719 = vmul.f32 %v709, %v715
    %722 = vrot.lane.b32.xlu0 %v710, 64
    %v723 = vpop.permute.xlu0 %722
    %724 = vrot.lane.b32.xlu0 %v711, 64
    %v725 = vpop.permute.xlu0 %724
    %v728 = vmul.f32 %v694, %v723
    %v729 = vmul.f32 %v709, %v725
    %732 = vrot.lane.b32.xlu0 %v728, 32
    %v733 = vpop.permute.xlu0 %732
    %734 = vrot.lane.b32.xlu0 %v729, 32
    %v735 = vpop.permute.xlu0 %734
    %v738 = vadd.f32 %v718, %v733
    %v739 = vadd.f32 %v719, %v735
    %v740 = vtanh.pop %v738
    %v741 = vtanh.pop %v739
    %744 = vrot.lane.b32.xlu0 %v740, 64
    %v745 = vpop.permute.xlu0 %744
    %746 = vrot.lane.b32.xlu0 %v741, 64
    %v747 = vpop.permute.xlu0 %746
    %v750 = vmul.f32 %v694, %v745
    %v751 = vmul.f32 %v709, %v747
    %v754 = vrot.slane %v750, 2
    %v755 = vrot.slane %v751, 1
    %v756 = vsel %vm364, %v755, %v754
    %757 = vrot.lane.b32.xlu0 %v756, 32
    %v758 = vpop.permute.xlu0 %757
    %v759 = vsel %vm254, %v758, 0
    %761 = vmatpush.msra.mxu0 0.0
    %762 = vmatpush.msra.mxu0 0.0
    %763 = vmatpush.msra.mxu0 0.0
    %764 = vmatpush.msra.mxu0 0.0
    %765 = vmatpush.msra.mxu0 0.0
    %766 = vmatpush.msra.mxu0 0.0
    %767 = vmatpush.msra.mxu0 0.0
    %768 = vmatpush.msra.mxu0 0.0
    %769 = vmatpush.msra.mxu0 0.0
    %770 = vmatpush.msra.mxu0 0.0
    %771 = vmatpush.msra.mxu0 0.0
    %772 = vmatpush.msra.mxu0 0.0
    %773 = vmatpush.msra.mxu0 %v248
    %774 = vmatpush.msra.mxu0 %v247
    %775 = vmatpush.msra.mxu0 %v246
    %776 = vmatpush.msra.mxu0 %v245
    %777 = vmatmul.f32.gmra.mxu0 %v759
    %v778 = vpop.f32.mrf.mxu0
    %v779 = vadd.f32 %v359, %v778
    %780 = vdwg.mxu0
    %782 = vrot.lane.b32.xlu0 %v644, 32
    %v783 = vpop.permute.xlu0 %782
    %v784 = vsel %vm254, %v783, 0
    %786 = vmatpush.msra.mxu0 0.0
    %787 = vmatpush.msra.mxu0 0.0
    %788 = vmatpush.msra.mxu0 0.0
    %789 = vmatpush.msra.mxu0 0.0
    %790 = vmatpush.msra.mxu0 0.0
    %791 = vmatpush.msra.mxu0 0.0
    %792 = vmatpush.msra.mxu0 0.0
    %793 = vmatpush.msra.mxu0 0.0
    %794 = vmatpush.msra.mxu0 0.0
    %795 = vmatpush.msra.mxu0 0.0
    %796 = vmatpush.msra.mxu0 0.0
    %797 = vmatpush.msra.mxu0 0.0
    %798 = vmatpush.msra.mxu0 %v252
    %799 = vmatpush.msra.mxu0 %v251
    %800 = vmatpush.msra.mxu0 %v250
    %801 = vmatpush.msra.mxu0 %v249
    %802 = vmatmul.f32.gmra.mxu0 %v784
    %v803 = vpop.f32.mrf.mxu0
    %v804 = vadd.f32 0.0, %v803
    %805 = vdwg.mxu0
    %v806 = vadd.f32 %v779, %v804
    %v807 = vxor.u32 %v806, 2147483648
    %v808 = vmul.f32 %v807, 1.442695
    %v809 = vpow.pop %v808
    %v810 = vadd.f32 %v809, 1.0
    %v811 = vrcp.pop %v810
    %v812 = vmul.f32 %v810, %v811
    %v813 = vsub.f32 1.0, %v812
    %v814 = vmul.f32 %v811, %v813
    %v815 = vadd.f32 %v811, %v814
    %vm816 = vweird.f32 %v810
    %vm817 = vweird.f32 %v811
    %vm818 = vmor %vm816, %vm817
    %v819 = vsel %vm818, %v811, %v815
    %v820 = vand.u32 2147483647, %v810
    %vm821 = vcmp.eq.f32.partialorder %v820, 8.507059e+37
    %v822 = vand.u32 %v810, 2147483648
    %v823 = vor.u32 1.1754944e-38, %v822
    %v824 = vsel %vm821, %v823, %v819
    %v825 = vmul.f32 1.0, %v824
    %v826 = vtanh.pop %v806
    %v827 = vmul.f32 %v825, %v638
    %829 = vrot.lane.b32.xlu0 %v826, 64
    %v830 = vpop.permute.xlu0 %829
    %v832 = vmul.f32 %v825, %v830
    %834 = vrot.lane.b32.xlu0 %v832, 32
    %v835 = vpop.permute.xlu0 %834
    %v837 = vadd.f32 %v827, %v835
    %v838 = vtanh.pop %v837
    %840 = vrot.lane.b32.xlu0 %v838, 64
    %v841 = vpop.permute.xlu0 %840
    %v843 = vmul.f32 %v825, %v841
    %844 = vmatpush.msra.mxu0 0.0
    %845 = vmatpush.msra.mxu0 0.0
    %846 = vmatpush.msra.mxu0 0.0
    %847 = vmatpush.msra.mxu0 0.0
    %848 = vmatpush.msra.mxu0 0.0
    %849 = vmatpush.msra.mxu0 0.0
    %850 = vmatpush.msra.mxu0 0.0
    %851 = vmatpush.msra.mxu0 0.0
    %852 = vmatpush.msra.mxu0 0.0
    %853 = vmatpush.msra.mxu0 0.0
    %854 = vmatpush.msra.mxu0 0.0
    %855 = vmatpush.msra.mxu0 0.0
    %856 = vmatpush.msra.mxu0 %v244
    %857 = vmatpush.msra.mxu0 %v243
    %858 = vmatpush.msra.mxu0 %v242
    %859 = vmatpush.msra.mxu0 %v241
    %860 = vmatmul.f32.gmra.mxu0 %v759
    %v861 = vpop.f32.mrf.mxu0
    %v862 = vadd.f32 0.0, %v861
    %863 = vdwg.mxu0
    %v865 = vrot.slane %v862, 5
    %v866 = vrot.slane %v862, 6
    %v869 = vadd.f32 %v236, %v865
    %v870 = vadd.f32 %v239, %v866
    %v871 = vxor.u32 %v869, 2147483648
    %v872 = vxor.u32 %v870, 2147483648
    %v873 = vmul.f32 %v871, 1.442695
    %v874 = vpow.pop %v873
    %v875 = vmul.f32 %v872, 1.442695
    %v876 = vpow.pop %v875
    %v877 = vadd.f32 %v874, 1.0
    %v878 = vadd.f32 %v876, 1.0
    %v879 = vrcp.pop %v877
    %v880 = vmul.f32 %v877, %v879
    %v881 = vsub.f32 1.0, %v880
    %v882 = vmul.f32 %v879, %v881
    %v883 = vadd.f32 %v879, %v882
    %vm884 = vweird.f32 %v877
    %vm885 = vweird.f32 %v879
    %vm886 = vmor %vm884, %vm885
    %v887 = vsel %vm886, %v879, %v883
    %v888 = vand.u32 2147483647, %v877
    %vm889 = vcmp.eq.f32.partialorder %v888, 8.507059e+37
    %v890 = vand.u32 %v877, 2147483648
    %v891 = vor.u32 1.1754944e-38, %v890
    %v892 = vsel %vm889, %v891, %v887
    %v893 = vmul.f32 1.0, %v892
    %v894 = vrcp.pop %v878
    %v895 = vmul.f32 %v878, %v894
    %v896 = vsub.f32 1.0, %v895
    %v897 = vmul.f32 %v894, %v896
    %v898 = vadd.f32 %v894, %v897
    %vm899 = vweird.f32 %v878
    %vm900 = vweird.f32 %v894
    %vm901 = vmor %vm899, %vm900
    %v902 = vsel %vm901, %v894, %v898
    %v903 = vand.u32 2147483647, %v878
    %vm904 = vcmp.eq.f32.partialorder %v903, 8.507059e+37
    %v905 = vand.u32 %v878, 2147483648
    %v906 = vor.u32 1.1754944e-38, %v905
    %v907 = vsel %vm904, %v906, %v902
    %v908 = vmul.f32 1.0, %v907
    %v909 = vtanh.pop %v869
    %v910 = vtanh.pop %v870
    %v913 = vrot.slane %v738, 7
    %v914 = vrot.slane %v739, 7
    %v917 = vmul.f32 %v893, %v913
    %v918 = vmul.f32 %v908, %v914
    %921 = vrot.lane.b32.xlu0 %v909, 64
    %v922 = vpop.permute.xlu0 %921
    %923 = vrot.lane.b32.xlu0 %v910, 64
    %v924 = vpop.permute.xlu0 %923
    %v927 = vmul.f32 %v893, %v922
    %v928 = vmul.f32 %v908, %v924
    %931 = vrot.lane.b32.xlu0 %v927, 32
    %v932 = vpop.permute.xlu0 %931
    %933 = vrot.lane.b32.xlu0 %v928, 32
    %v934 = vpop.permute.xlu0 %933
    %v937 = vadd.f32 %v917, %v932
    %v938 = vadd.f32 %v918, %v934
    %v939 = vtanh.pop %v937
    %v940 = vtanh.pop %v938
    %943 = vrot.lane.b32.xlu0 %v939, 64
    %v944 = vpop.permute.xlu0 %943
    %945 = vrot.lane.b32.xlu0 %v940, 64
    %v946 = vpop.permute.xlu0 %945
    %v949 = vmul.f32 %v893, %v944
    %v950 = vmul.f32 %v908, %v946
    %v953 = vrot.slane %v949, 3
    %v954 = vrot.slane %v950, 2
    %v955 = vsel %vm364, %v954, %v953
    %956 = vrot.lane.b32.xlu0 %v955, 32
    %v957 = vpop.permute.xlu0 %956
    %v958 = vsel %vm254, %v957, 0
    %960 = vmatpush.msra.mxu0 0.0
    %961 = vmatpush.msra.mxu0 0.0
    %962 = vmatpush.msra.mxu0 0.0
    %963 = vmatpush.msra.mxu0 0.0
    %964 = vmatpush.msra.mxu0 0.0
    %965 = vmatpush.msra.mxu0 0.0
    %966 = vmatpush.msra.mxu0 0.0
    %967 = vmatpush.msra.mxu0 0.0
    %968 = vmatpush.msra.mxu0 0.0
    %969 = vmatpush.msra.mxu0 0.0
    %970 = vmatpush.msra.mxu0 0.0
    %971 = vmatpush.msra.mxu0 0.0
    %972 = vmatpush.msra.mxu0 %v248
    %973 = vmatpush.msra.mxu0 %v247
    %974 = vmatpush.msra.mxu0 %v246
    %975 = vmatpush.msra.mxu0 %v245
    %976 = vmatmul.f32.gmra.mxu0 %v958
    %v977 = vpop.f32.mrf.mxu0
    %v978 = vadd.f32 %v359, %v977
    %979 = vdwg.mxu0
    %981 = vrot.lane.b32.xlu0 %v843, 32
    %v982 = vpop.permute.xlu0 %981
    %v983 = vsel %vm254, %v982, 0
    %985 = vmatpush.msra.mxu0 0.0
    %986 = vmatpush.msra.mxu0 0.0
    %987 = vmatpush.msra.mxu0 0.0
    %988 = vmatpush.msra.mxu0 0.0
    %989 = vmatpush.msra.mxu0 0.0
    %990 = vmatpush.msra.mxu0 0.0
    %991 = vmatpush.msra.mxu0 0.0
    %992 = vmatpush.msra.mxu0 0.0
    %993 = vmatpush.msra.mxu0 0.0
    %994 = vmatpush.msra.mxu0 0.0
    %995 = vmatpush.msra.mxu0 0.0
    %996 = vmatpush.msra.mxu0 0.0
    %997 = vmatpush.msra.mxu0 %v252
    %998 = vmatpush.msra.mxu0 %v251
    %999 = vmatpush.msra.mxu0 %v250
    %1000 = vmatpush.msra.mxu0 %v249
    %1001 = vmatmul.f32.gmra.mxu0 %v983
    %v1002 = vpop.f32.mrf.mxu0
    %v1003 = vadd.f32 0.0, %v1002
    %1004 = vdwg.mxu0
    %v1005 = vadd.f32 %v978, %v1003
    %v1006 = vxor.u32 %v1005, 2147483648
    %v1007 = vmul.f32 %v1006, 1.442695
    %v1008 = vpow.pop %v1007
    %v1009 = vadd.f32 %v1008, 1.0
    %v1010 = vrcp.pop %v1009
    %v1011 = vmul.f32 %v1009, %v1010
    %v1012 = vsub.f32 1.0, %v1011
    %v1013 = vmul.f32 %v1010, %v1012
    %v1014 = vadd.f32 %v1010, %v1013
    %vm1015 = vweird.f32 %v1009
    %vm1016 = vweird.f32 %v1010
    %vm1017 = vmor %vm1015, %vm1016
    %v1018 = vsel %vm1017, %v1010, %v1014
    %v1019 = vand.u32 2147483647, %v1009
    %vm1020 = vcmp.eq.f32.partialorder %v1019, 8.507059e+37
    %v1021 = vand.u32 %v1009, 2147483648
    %v1022 = vor.u32 1.1754944e-38, %v1021
    %v1023 = vsel %vm1020, %v1022, %v1018
    %v1024 = vmul.f32 1.0, %v1023
    %v1025 = vtanh.pop %v1005
    %v1026 = vmul.f32 %v1024, %v837
    %1028 = vrot.lane.b32.xlu0 %v1025, 64
    %v1029 = vpop.permute.xlu0 %1028
    %v1031 = vmul.f32 %v1024, %v1029
    %1033 = vrot.lane.b32.xlu0 %v1031, 32
    %v1034 = vpop.permute.xlu0 %1033
    %v1036 = vadd.f32 %v1026, %v1034
    %v1037 = vtanh.pop %v1036
    %1039 = vrot.lane.b32.xlu0 %v1037, 64
    %v1040 = vpop.permute.xlu0 %1039
    %v1042 = vmul.f32 %v1024, %v1040
    %1043 = vmatpush.msra.mxu0 0.0
    %1044 = vmatpush.msra.mxu0 0.0
    %1045 = vmatpush.msra.mxu0 0.0
    %1046 = vmatpush.msra.mxu0 0.0
    %1047 = vmatpush.msra.mxu0 0.0
    %1048 = vmatpush.msra.mxu0 0.0
    %1049 = vmatpush.msra.mxu0 0.0
    %1050 = vmatpush.msra.mxu0 0.0
    %1051 = vmatpush.msra.mxu0 0.0
    %1052 = vmatpush.msra.mxu0 0.0
    %1053 = vmatpush.msra.mxu0 0.0
    %1054 = vmatpush.msra.mxu0 0.0
    %1055 = vmatpush.msra.mxu0 %v244
    %1056 = vmatpush.msra.mxu0 %v243
    %1057 = vmatpush.msra.mxu0 %v242
    %1058 = vmatpush.msra.mxu0 %v241
    %1059 = vmatmul.f32.gmra.mxu0 %v958
    %v1060 = vpop.f32.mrf.mxu0
    %v1061 = vadd.f32 0.0, %v1060
    %1062 = vdwg.mxu0
    %v1064 = vrot.slane %v1061, 4
    %v1065 = vrot.slane %v1061, 5
    %v1068 = vadd.f32 %v236, %v1064
    %v1069 = vadd.f32 %v239, %v1065
    %v1070 = vxor.u32 %v1068, 2147483648
    %v1071 = vxor.u32 %v1069, 2147483648
    %v1072 = vmul.f32 %v1070, 1.442695
    %v1073 = vpow.pop %v1072
    %v1074 = vmul.f32 %v1071, 1.442695
    %v1075 = vpow.pop %v1074
    %v1076 = vadd.f32 %v1073, 1.0
    %v1077 = vadd.f32 %v1075, 1.0
    %v1078 = vrcp.pop %v1076
    %v1079 = vmul.f32 %v1076, %v1078
    %v1080 = vsub.f32 1.0, %v1079
    %v1081 = vmul.f32 %v1078, %v1080
    %v1082 = vadd.f32 %v1078, %v1081
    %vm1083 = vweird.f32 %v1076
    %vm1084 = vweird.f32 %v1078
    %vm1085 = vmor %vm1083, %vm1084
    %v1086 = vsel %vm1085, %v1078, %v1082
    %v1087 = vand.u32 2147483647, %v1076
    %vm1088 = vcmp.eq.f32.partialorder %v1087, 8.507059e+37
    %v1089 = vand.u32 %v1076, 2147483648
    %v1090 = vor.u32 1.1754944e-38, %v1089
    %v1091 = vsel %vm1088, %v1090, %v1086
    %v1092 = vmul.f32 1.0, %v1091
    %v1093 = vrcp.pop %v1077
    %v1094 = vmul.f32 %v1077, %v1093
    %v1095 = vsub.f32 1.0, %v1094
    %v1096 = vmul.f32 %v1093, %v1095
    %v1097 = vadd.f32 %v1093, %v1096
    %vm1098 = vweird.f32 %v1077
    %vm1099 = vweird.f32 %v1093
    %vm1100 = vmor %vm1098, %vm1099
    %v1101 = vsel %vm1100, %v1093, %v1097
    %v1102 = vand.u32 2147483647, %v1077
    %vm1103 = vcmp.eq.f32.partialorder %v1102, 8.507059e+37
    %v1104 = vand.u32 %v1077, 2147483648
    %v1105 = vor.u32 1.1754944e-38, %v1104
    %v1106 = vsel %vm1103, %v1105, %v1101
    %v1107 = vmul.f32 1.0, %v1106
    %v1108 = vtanh.pop %v1068
    %v1109 = vtanh.pop %v1069
    %v1112 = vrot.slane %v937, 7
    %v1113 = vrot.slane %v938, 7
    %v1116 = vmul.f32 %v1092, %v1112
    %v1117 = vmul.f32 %v1107, %v1113
    %1120 = vrot.lane.b32.xlu0 %v1108, 64
    %v1121 = vpop.permute.xlu0 %1120
    %1122 = vrot.lane.b32.xlu0 %v1109, 64
    %v1123 = vpop.permute.xlu0 %1122
    %v1126 = vmul.f32 %v1092, %v1121
    %v1127 = vmul.f32 %v1107, %v1123
    %1130 = vrot.lane.b32.xlu0 %v1126, 32
    %v1131 = vpop.permute.xlu0 %1130
    %1132 = vrot.lane.b32.xlu0 %v1127, 32
    %v1133 = vpop.permute.xlu0 %1132
    %v1136 = vadd.f32 %v1116, %v1131
    %v1137 = vadd.f32 %v1117, %v1133
    %v1138 = vtanh.pop %v1136
    %v1139 = vtanh.pop %v1137
    %1142 = vrot.lane.b32.xlu0 %v1138, 64
    %v1143 = vpop.permute.xlu0 %1142
    %1144 = vrot.lane.b32.xlu0 %v1139, 64
    %v1145 = vpop.permute.xlu0 %1144
    %v1148 = vmul.f32 %v1092, %v1143
    %v1149 = vmul.f32 %v1107, %v1145
    %v1152 = vrot.slane %v1148, 4
    %v1153 = vrot.slane %v1149, 3
    %v1154 = vsel %vm364, %v1153, %v1152
    %1155 = vrot.lane.b32.xlu0 %v1154, 32
    %v1156 = vpop.permute.xlu0 %1155
    %v1157 = vsel %vm254, %v1156, 0
    %1159 = vmatpush.msra.mxu0 0.0
    %1160 = vmatpush.msra.mxu0 0.0
    %1161 = vmatpush.msra.mxu0 0.0
    %1162 = vmatpush.msra.mxu0 0.0
    %1163 = vmatpush.msra.mxu0 0.0
    %1164 = vmatpush.msra.mxu0 0.0
    %1165 = vmatpush.msra.mxu0 0.0
    %1166 = vmatpush.msra.mxu0 0.0
    %1167 = vmatpush.msra.mxu0 0.0
    %1168 = vmatpush.msra.mxu0 0.0
    %1169 = vmatpush.msra.mxu0 0.0
    %1170 = vmatpush.msra.mxu0 0.0
    %1171 = vmatpush.msra.mxu0 %v248
    %1172 = vmatpush.msra.mxu0 %v247
    %1173 = vmatpush.msra.mxu0 %v246
    %1174 = vmatpush.msra.mxu0 %v245
    %1175 = vmatmul.f32.gmra.mxu0 %v1157
    %v1176 = vpop.f32.mrf.mxu0
    %v1177 = vadd.f32 %v359, %v1176
    %1178 = vdwg.mxu0
    %1180 = vrot.lane.b32.xlu0 %v1042, 32
    %v1181 = vpop.permute.xlu0 %1180
    %v1182 = vsel %vm254, %v1181, 0
    %1184 = vmatpush.msra.mxu0 0.0
    %1185 = vmatpush.msra.mxu0 0.0
    %1186 = vmatpush.msra.mxu0 0.0
    %1187 = vmatpush.msra.mxu0 0.0
    %1188 = vmatpush.msra.mxu0 0.0
    %1189 = vmatpush.msra.mxu0 0.0
    %1190 = vmatpush.msra.mxu0 0.0
    %1191 = vmatpush.msra.mxu0 0.0
    %1192 = vmatpush.msra.mxu0 0.0
    %1193 = vmatpush.msra.mxu0 0.0
    %1194 = vmatpush.msra.mxu0 0.0
    %1195 = vmatpush.msra.mxu0 0.0
    %1196 = vmatpush.msra.mxu0 %v252
    %1197 = vmatpush.msra.mxu0 %v251
    %1198 = vmatpush.msra.mxu0 %v250
    %1199 = vmatpush.msra.mxu0 %v249
    %1200 = vmatmul.f32.gmra.mxu0 %v1182
    %v1201 = vpop.f32.mrf.mxu0
    %v1202 = vadd.f32 0.0, %v1201
    %1203 = vdwg.mxu0
    %v1204 = vadd.f32 %v1177, %v1202
    %v1205 = vxor.u32 %v1204, 2147483648
    %v1206 = vmul.f32 %v1205, 1.442695
    %v1207 = vpow.pop %v1206
    %v1208 = vadd.f32 %v1207, 1.0
    %v1209 = vrcp.pop %v1208
    %v1210 = vmul.f32 %v1208, %v1209
    %v1211 = vsub.f32 1.0, %v1210
    %v1212 = vmul.f32 %v1209, %v1211
    %v1213 = vadd.f32 %v1209, %v1212
    %vm1214 = vweird.f32 %v1208
    %vm1215 = vweird.f32 %v1209
    %vm1216 = vmor %vm1214, %vm1215
    %v1217 = vsel %vm1216, %v1209, %v1213
    %v1218 = vand.u32 2147483647, %v1208
    %vm1219 = vcmp.eq.f32.partialorder %v1218, 8.507059e+37
    %v1220 = vand.u32 %v1208, 2147483648
    %v1221 = vor.u32 1.1754944e-38, %v1220
    %v1222 = vsel %vm1219, %v1221, %v1217
    %v1223 = vmul.f32 1.0, %v1222
    %v1224 = vtanh.pop %v1204
    %v1225 = vmul.f32 %v1223, %v1036
    %1227 = vrot.lane.b32.xlu0 %v1224, 64
    %v1228 = vpop.permute.xlu0 %1227
    %v1230 = vmul.f32 %v1223, %v1228
    %1232 = vrot.lane.b32.xlu0 %v1230, 32
    %v1233 = vpop.permute.xlu0 %1232
    %v1235 = vadd.f32 %v1225, %v1233
    %v1236 = vtanh.pop %v1235
    %1238 = vrot.lane.b32.xlu0 %v1236, 64
    %v1239 = vpop.permute.xlu0 %1238
    %v1241 = vmul.f32 %v1223, %v1239
    %1242 = vmatpush.msra.mxu0 0.0
    %1243 = vmatpush.msra.mxu0 0.0
    %1244 = vmatpush.msra.mxu0 0.0
    %1245 = vmatpush.msra.mxu0 0.0
    %1246 = vmatpush.msra.mxu0 0.0
    %1247 = vmatpush.msra.mxu0 0.0
    %1248 = vmatpush.msra.mxu0 0.0
    %1249 = vmatpush.msra.mxu0 0.0
    %1250 = vmatpush.msra.mxu0 0.0
    %1251 = vmatpush.msra.mxu0 0.0
    %1252 = vmatpush.msra.mxu0 0.0
    %1253 = vmatpush.msra.mxu0 0.0
    %1254 = vmatpush.msra.mxu0 %v244
    %1255 = vmatpush.msra.mxu0 %v243
    %1256 = vmatpush.msra.mxu0 %v242
    %1257 = vmatpush.msra.mxu0 %v241
    %1258 = vmatmul.f32.gmra.mxu0 %v1157
    %v1259 = vpop.f32.mrf.mxu0
    %v1260 = vadd.f32 0.0, %v1259
    %1261 = vdwg.mxu0
    %v1263 = vrot.slane %v1260, 3
    %v1264 = vrot.slane %v1260, 4
    %v1267 = vadd.f32 %v236, %v1263
    %v1268 = vadd.f32 %v239, %v1264
    %v1269 = vxor.u32 %v1267, 2147483648
    %v1270 = vxor.u32 %v1268, 2147483648
    %v1271 = vmul.f32 %v1269, 1.442695
    %v1272 = vpow.pop %v1271
    %v1273 = vmul.f32 %v1270, 1.442695
    %v1274 = vpow.pop %v1273
    %v1275 = vadd.f32 %v1272, 1.0
    %v1276 = vadd.f32 %v1274, 1.0
    %v1277 = vrcp.pop %v1275
    %v1278 = vmul.f32 %v1275, %v1277
    %v1279 = vsub.f32 1.0, %v1278
    %v1280 = vmul.f32 %v1277, %v1279
    %v1281 = vadd.f32 %v1277, %v1280
    %vm1282 = vweird.f32 %v1275
    %vm1283 = vweird.f32 %v1277
    %vm1284 = vmor %vm1282, %vm1283
    %v1285 = vsel %vm1284, %v1277, %v1281
    %v1286 = vand.u32 2147483647, %v1275
    %vm1287 = vcmp.eq.f32.partialorder %v1286, 8.507059e+37
    %v1288 = vand.u32 %v1275, 2147483648
    %v1289 = vor.u32 1.1754944e-38, %v1288
    %v1290 = vsel %vm1287, %v1289, %v1285
    %v1291 = vmul.f32 1.0, %v1290
    %v1292 = vrcp.pop %v1276
    %v1293 = vmul.f32 %v1276, %v1292
    %v1294 = vsub.f32 1.0, %v1293
    %v1295 = vmul.f32 %v1292, %v1294
    %v1296 = vadd.f32 %v1292, %v1295
    %vm1297 = vweird.f32 %v1276
    %vm1298 = vweird.f32 %v1292
    %vm1299 = vmor %vm1297, %vm1298
    %v1300 = vsel %vm1299, %v1292, %v1296
    %v1301 = vand.u32 2147483647, %v1276
    %vm1302 = vcmp.eq.f32.partialorder %v1301, 8.507059e+37
    %v1303 = vand.u32 %v1276, 2147483648
    %v1304 = vor.u32 1.1754944e-38, %v1303
    %v1305 = vsel %vm1302, %v1304, %v1300
    %v1306 = vmul.f32 1.0, %v1305
    %v1307 = vtanh.pop %v1267
    %v1308 = vtanh.pop %v1268
    %v1311 = vrot.slane %v1136, 7
    %v1312 = vrot.slane %v1137, 7
    %v1315 = vmul.f32 %v1291, %v1311
    %v1316 = vmul.f32 %v1306, %v1312
    %1319 = vrot.lane.b32.xlu0 %v1307, 64
    %v1320 = vpop.permute.xlu0 %1319
    %1321 = vrot.lane.b32.xlu0 %v1308, 64
    %v1322 = vpop.permute.xlu0 %1321
    %v1325 = vmul.f32 %v1291, %v1320
    %v1326 = vmul.f32 %v1306, %v1322
    %1329 = vrot.lane.b32.xlu0 %v1325, 32
    %v1330 = vpop.permute.xlu0 %1329
    %1331 = vrot.lane.b32.xlu0 %v1326, 32
    %v1332 = vpop.permute.xlu0 %1331
    %v1335 = vadd.f32 %v1315, %v1330
    %v1336 = vadd.f32 %v1316, %v1332
    %v1337 = vtanh.pop %v1335
    %v1338 = vtanh.pop %v1336
    %1341 = vrot.lane.b32.xlu0 %v1337, 64
    %v1342 = vpop.permute.xlu0 %1341
    %1343 = vrot.lane.b32.xlu0 %v1338, 64
    %v1344 = vpop.permute.xlu0 %1343
    %v1347 = vmul.f32 %v1291, %v1342
    %v1348 = vmul.f32 %v1306, %v1344
    %v1351 = vrot.slane %v1347, 5
    %v1352 = vrot.slane %v1348, 4
    %v1353 = vsel %vm364, %v1352, %v1351
    %1354 = vrot.lane.b32.xlu0 %v1353, 32
    %v1355 = vpop.permute.xlu0 %1354
    %v1356 = vsel %vm254, %v1355, 0
    %1358 = vmatpush.msra.mxu0 0.0
    %1359 = vmatpush.msra.mxu0 0.0
    %1360 = vmatpush.msra.mxu0 0.0
    %1361 = vmatpush.msra.mxu0 0.0
    %1362 = vmatpush.msra.mxu0 0.0
    %1363 = vmatpush.msra.mxu0 0.0
    %1364 = vmatpush.msra.mxu0 0.0
    %1365 = vmatpush.msra.mxu0 0.0
    %1366 = vmatpush.msra.mxu0 0.0
    %1367 = vmatpush.msra.mxu0 0.0
    %1368 = vmatpush.msra.mxu0 0.0
    %1369 = vmatpush.msra.mxu0 0.0
    %1370 = vmatpush.msra.mxu0 %v248
    %1371 = vmatpush.msra.mxu0 %v247
    %1372 = vmatpush.msra.mxu0 %v246
    %1373 = vmatpush.msra.mxu0 %v245
    %1374 = vmatmul.f32.gmra.mxu0 %v1356
    %v1375 = vpop.f32.mrf.mxu0
    %v1376 = vadd.f32 %v359, %v1375
    %1377 = vdwg.mxu0
    %1379 = vrot.lane.b32.xlu0 %v1241, 32
    %v1380 = vpop.permute.xlu0 %1379
    %v1381 = vsel %vm254, %v1380, 0
    %1383 = vmatpush.msra.mxu0 0.0
    %1384 = vmatpush.msra.mxu0 0.0
    %1385 = vmatpush.msra.mxu0 0.0
    %1386 = vmatpush.msra.mxu0 0.0
    %1387 = vmatpush.msra.mxu0 0.0
    %1388 = vmatpush.msra.mxu0 0.0
    %1389 = vmatpush.msra.mxu0 0.0
    %1390 = vmatpush.msra.mxu0 0.0
    %1391 = vmatpush.msra.mxu0 0.0
    %1392 = vmatpush.msra.mxu0 0.0
    %1393 = vmatpush.msra.mxu0 0.0
    %1394 = vmatpush.msra.mxu0 0.0
    %1395 = vmatpush.msra.mxu0 %v252
    %1396 = vmatpush.msra.mxu0 %v251
    %1397 = vmatpush.msra.mxu0 %v250
    %1398 = vmatpush.msra.mxu0 %v249
    %1399 = vmatmul.f32.gmra.mxu0 %v1381
    %v1400 = vpop.f32.mrf.mxu0
    %v1401 = vadd.f32 0.0, %v1400
    %1402 = vdwg.mxu0
    %v1403 = vadd.f32 %v1376, %v1401
    %v1404 = vxor.u32 %v1403, 2147483648
    %v1405 = vmul.f32 %v1404, 1.442695
    %v1406 = vpow.pop %v1405
    %v1407 = vadd.f32 %v1406, 1.0
    %v1408 = vrcp.pop %v1407
    %v1409 = vmul.f32 %v1407, %v1408
    %v1410 = vsub.f32 1.0, %v1409
    %v1411 = vmul.f32 %v1408, %v1410
    %v1412 = vadd.f32 %v1408, %v1411
    %vm1413 = vweird.f32 %v1407
    %vm1414 = vweird.f32 %v1408
    %vm1415 = vmor %vm1413, %vm1414
    %v1416 = vsel %vm1415, %v1408, %v1412
    %v1417 = vand.u32 2147483647, %v1407
    %vm1418 = vcmp.eq.f32.partialorder %v1417, 8.507059e+37
    %v1419 = vand.u32 %v1407, 2147483648
    %v1420 = vor.u32 1.1754944e-38, %v1419
    %v1421 = vsel %vm1418, %v1420, %v1416
    %v1422 = vmul.f32 1.0, %v1421
    %v1423 = vtanh.pop %v1403
    %v1424 = vmul.f32 %v1422, %v1235
    %1426 = vrot.lane.b32.xlu0 %v1423, 64
    %v1427 = vpop.permute.xlu0 %1426
    %v1429 = vmul.f32 %v1422, %v1427
    %1431 = vrot.lane.b32.xlu0 %v1429, 32
    %v1432 = vpop.permute.xlu0 %1431
    %v1434 = vadd.f32 %v1424, %v1432
    %v1435 = vtanh.pop %v1434
    %1437 = vrot.lane.b32.xlu0 %v1435, 64
    %v1438 = vpop.permute.xlu0 %1437
    %v1440 = vmul.f32 %v1422, %v1438
    %1441 = vmatpush.msra.mxu0 0.0
    %1442 = vmatpush.msra.mxu0 0.0
    %1443 = vmatpush.msra.mxu0 0.0
    %1444 = vmatpush.msra.mxu0 0.0
    %1445 = vmatpush.msra.mxu0 0.0
    %1446 = vmatpush.msra.mxu0 0.0
    %1447 = vmatpush.msra.mxu0 0.0
    %1448 = vmatpush.msra.mxu0 0.0
    %1449 = vmatpush.msra.mxu0 0.0
    %1450 = vmatpush.msra.mxu0 0.0
    %1451 = vmatpush.msra.mxu0 0.0
    %1452 = vmatpush.msra.mxu0 0.0
    %1453 = vmatpush.msra.mxu0 %v244
    %1454 = vmatpush.msra.mxu0 %v243
    %1455 = vmatpush.msra.mxu0 %v242
    %1456 = vmatpush.msra.mxu0 %v241
    %1457 = vmatmul.f32.gmra.mxu0 %v1356
    %v1458 = vpop.f32.mrf.mxu0
    %v1459 = vadd.f32 0.0, %v1458
    %1460 = vdwg.mxu0
    %v1462 = vrot.slane %v1459, 2
    %v1463 = vrot.slane %v1459, 3
    %v1466 = vadd.f32 %v236, %v1462
    %v1467 = vadd.f32 %v239, %v1463
    %v1468 = vxor.u32 %v1466, 2147483648
    %v1469 = vxor.u32 %v1467, 2147483648
    %v1470 = vmul.f32 %v1468, 1.442695
    %v1471 = vpow.pop %v1470
    %v1472 = vmul.f32 %v1469, 1.442695
    %v1473 = vpow.pop %v1472
    %v1474 = vadd.f32 %v1471, 1.0
    %v1475 = vadd.f32 %v1473, 1.0
    %v1476 = vrcp.pop %v1474
    %v1477 = vmul.f32 %v1474, %v1476
    %v1478 = vsub.f32 1.0, %v1477
    %v1479 = vmul.f32 %v1476, %v1478
    %v1480 = vadd.f32 %v1476, %v1479
    %vm1481 = vweird.f32 %v1474
    %vm1482 = vweird.f32 %v1476
    %vm1483 = vmor %vm1481, %vm1482
    %v1484 = vsel %vm1483, %v1476, %v1480
    %v1485 = vand.u32 2147483647, %v1474
    %vm1486 = vcmp.eq.f32.partialorder %v1485, 8.507059e+37
    %v1487 = vand.u32 %v1474, 2147483648
    %v1488 = vor.u32 1.1754944e-38, %v1487
    %v1489 = vsel %vm1486, %v1488, %v1484
    %v1490 = vmul.f32 1.0, %v1489
    %v1491 = vrcp.pop %v1475
    %v1492 = vmul.f32 %v1475, %v1491
    %v1493 = vsub.f32 1.0, %v1492
    %v1494 = vmul.f32 %v1491, %v1493
    %v1495 = vadd.f32 %v1491, %v1494
    %vm1496 = vweird.f32 %v1475
    %vm1497 = vweird.f32 %v1491
    %vm1498 = vmor %vm1496, %vm1497
    %v1499 = vsel %vm1498, %v1491, %v1495
    %v1500 = vand.u32 2147483647, %v1475
    %vm1501 = vcmp.eq.f32.partialorder %v1500, 8.507059e+37
    %v1502 = vand.u32 %v1475, 2147483648
    %v1503 = vor.u32 1.1754944e-38, %v1502
    %v1504 = vsel %vm1501, %v1503, %v1499
    %v1505 = vmul.f32 1.0, %v1504
    %v1506 = vtanh.pop %v1466
    %v1507 = vtanh.pop %v1467
    %v1510 = vrot.slane %v1335, 7
    %v1511 = vrot.slane %v1336, 7
    %v1514 = vmul.f32 %v1490, %v1510
    %v1515 = vmul.f32 %v1505, %v1511
    %1518 = vrot.lane.b32.xlu0 %v1506, 64
    %v1519 = vpop.permute.xlu0 %1518
    %1520 = vrot.lane.b32.xlu0 %v1507, 64
    %v1521 = vpop.permute.xlu0 %1520
    %v1524 = vmul.f32 %v1490, %v1519
    %v1525 = vmul.f32 %v1505, %v1521
    %1528 = vrot.lane.b32.xlu0 %v1524, 32
    %v1529 = vpop.permute.xlu0 %1528
    %1530 = vrot.lane.b32.xlu0 %v1525, 32
    %v1531 = vpop.permute.xlu0 %1530
    %v1534 = vadd.f32 %v1514, %v1529
    %v1535 = vadd.f32 %v1515, %v1531
    %v1536 = vtanh.pop %v1534
    %v1537 = vtanh.pop %v1535
    %1540 = vrot.lane.b32.xlu0 %v1536, 64
    %v1541 = vpop.permute.xlu0 %1540
    %1542 = vrot.lane.b32.xlu0 %v1537, 64
    %v1543 = vpop.permute.xlu0 %1542
    %v1546 = vmul.f32 %v1490, %v1541
    %v1547 = vmul.f32 %v1505, %v1543
    %v1550 = vrot.slane %v1546, 6
    %v1551 = vrot.slane %v1547, 5
    %v1552 = vsel %vm364, %v1551, %v1550
    %1553 = vrot.lane.b32.xlu0 %v1552, 32
    %v1554 = vpop.permute.xlu0 %1553
    %v1555 = vsel %vm254, %v1554, 0
    %1557 = vmatpush.msra.mxu0 0.0
    %1558 = vmatpush.msra.mxu0 0.0
    %1559 = vmatpush.msra.mxu0 0.0
    %1560 = vmatpush.msra.mxu0 0.0
    %1561 = vmatpush.msra.mxu0 0.0
    %1562 = vmatpush.msra.mxu0 0.0
    %1563 = vmatpush.msra.mxu0 0.0
    %1564 = vmatpush.msra.mxu0 0.0
    %1565 = vmatpush.msra.mxu0 0.0
    %1566 = vmatpush.msra.mxu0 0.0
    %1567 = vmatpush.msra.mxu0 0.0
    %1568 = vmatpush.msra.mxu0 0.0
    %1569 = vmatpush.msra.mxu0 %v248
    %1570 = vmatpush.msra.mxu0 %v247
    %1571 = vmatpush.msra.mxu0 %v246
    %1572 = vmatpush.msra.mxu0 %v245
    %1573 = vmatmul.f32.gmra.mxu0 %v1555
    %v1574 = vpop.f32.mrf.mxu0
    %v1575 = vadd.f32 %v359, %v1574
    %1576 = vdwg.mxu0
    %1578 = vrot.lane.b32.xlu0 %v1440, 32
    %v1579 = vpop.permute.xlu0 %1578
    %v1580 = vsel %vm254, %v1579, 0
    %1582 = vmatpush.msra.mxu0 0.0
    %1583 = vmatpush.msra.mxu0 0.0
    %1584 = vmatpush.msra.mxu0 0.0
    %1585 = vmatpush.msra.mxu0 0.0
    %1586 = vmatpush.msra.mxu0 0.0
    %1587 = vmatpush.msra.mxu0 0.0
    %1588 = vmatpush.msra.mxu0 0.0
    %1589 = vmatpush.msra.mxu0 0.0
    %1590 = vmatpush.msra.mxu0 0.0
    %1591 = vmatpush.msra.mxu0 0.0
    %1592 = vmatpush.msra.mxu0 0.0
    %1593 = vmatpush.msra.mxu0 0.0
    %1594 = vmatpush.msra.mxu0 %v252
    %1595 = vmatpush.msra.mxu0 %v251
    %1596 = vmatpush.msra.mxu0 %v250
    %1597 = vmatpush.msra.mxu0 %v249
    %1598 = vmatmul.f32.gmra.mxu0 %v1580
    %v1599 = vpop.f32.mrf.mxu0
    %v1600 = vadd.f32 0.0, %v1599
    %1601 = vdwg.mxu0
    %v1602 = vadd.f32 %v1575, %v1600
    %v1603 = vxor.u32 %v1602, 2147483648
    %v1604 = vmul.f32 %v1603, 1.442695
    %v1605 = vpow.pop %v1604
    %v1606 = vadd.f32 %v1605, 1.0
    %v1607 = vrcp.pop %v1606
    %v1608 = vmul.f32 %v1606, %v1607
    %v1609 = vsub.f32 1.0, %v1608
    %v1610 = vmul.f32 %v1607, %v1609
    %v1611 = vadd.f32 %v1607, %v1610
    %vm1612 = vweird.f32 %v1606
    %vm1613 = vweird.f32 %v1607
    %vm1614 = vmor %vm1612, %vm1613
    %v1615 = vsel %vm1614, %v1607, %v1611
    %v1616 = vand.u32 2147483647, %v1606
    %vm1617 = vcmp.eq.f32.partialorder %v1616, 8.507059e+37
    %v1618 = vand.u32 %v1606, 2147483648
    %v1619 = vor.u32 1.1754944e-38, %v1618
    %v1620 = vsel %vm1617, %v1619, %v1615
    %v1621 = vmul.f32 1.0, %v1620
    %v1622 = vtanh.pop %v1602
    %v1623 = vmul.f32 %v1621, %v1434
    %1625 = vrot.lane.b32.xlu0 %v1622, 64
    %v1626 = vpop.permute.xlu0 %1625
    %v1628 = vmul.f32 %v1621, %v1626
    %1630 = vrot.lane.b32.xlu0 %v1628, 32
    %v1631 = vpop.permute.xlu0 %1630
    %v1633 = vadd.f32 %v1623, %v1631
    %v1634 = vtanh.pop %v1633
    %1636 = vrot.lane.b32.xlu0 %v1634, 64
    %v1637 = vpop.permute.xlu0 %1636
    %v1639 = vmul.f32 %v1621, %v1637
    %1640 = vmatpush.msra.mxu0 0.0
    %1641 = vmatpush.msra.mxu0 0.0
    %1642 = vmatpush.msra.mxu0 0.0
    %1643 = vmatpush.msra.mxu0 0.0
    %1644 = vmatpush.msra.mxu0 0.0
    %1645 = vmatpush.msra.mxu0 0.0
    %1646 = vmatpush.msra.mxu0 0.0
    %1647 = vmatpush.msra.mxu0 0.0
    %1648 = vmatpush.msra.mxu0 0.0
    %1649 = vmatpush.msra.mxu0 0.0
    %1650 = vmatpush.msra.mxu0 0.0
    %1651 = vmatpush.msra.mxu0 0.0
    %1652 = vmatpush.msra.mxu0 %v244
    %1653 = vmatpush.msra.mxu0 %v243
    %1654 = vmatpush.msra.mxu0 %v242
    %1655 = vmatpush.msra.mxu0 %v241
    %1656 = vmatmul.f32.gmra.mxu0 %v1555
    %v1657 = vpop.f32.mrf.mxu0
    %v1658 = vadd.f32 0.0, %v1657
    %1659 = vdwg.mxu0
    %v1661 = vrot.slane %v1658, 1
    %v1662 = vrot.slane %v1658, 2
    %v1665 = vadd.f32 %v236, %v1661
    %v1666 = vadd.f32 %v239, %v1662
    %v1667 = vxor.u32 %v1665, 2147483648
    %v1668 = vxor.u32 %v1666, 2147483648
    %v1669 = vmul.f32 %v1667, 1.442695
    %v1670 = vpow.pop %v1669
    %v1671 = vmul.f32 %v1668, 1.442695
    %v1672 = vpow.pop %v1671
    %v1673 = vadd.f32 %v1670, 1.0
    %v1674 = vadd.f32 %v1672, 1.0
    %v1675 = vrcp.pop %v1673
    %v1676 = vmul.f32 %v1673, %v1675
    %v1677 = vsub.f32 1.0, %v1676
    %v1678 = vmul.f32 %v1675, %v1677
    %v1679 = vadd.f32 %v1675, %v1678
    %vm1680 = vweird.f32 %v1673
    %vm1681 = vweird.f32 %v1675
    %vm1682 = vmor %vm1680, %vm1681
    %v1683 = vsel %vm1682, %v1675, %v1679
    %v1684 = vand.u32 2147483647, %v1673
    %vm1685 = vcmp.eq.f32.partialorder %v1684, 8.507059e+37
    %v1686 = vand.u32 %v1673, 2147483648
    %v1687 = vor.u32 1.1754944e-38, %v1686
    %v1688 = vsel %vm1685, %v1687, %v1683
    %v1689 = vmul.f32 1.0, %v1688
    %v1690 = vrcp.pop %v1674
    %v1691 = vmul.f32 %v1674, %v1690
    %v1692 = vsub.f32 1.0, %v1691
    %v1693 = vmul.f32 %v1690, %v1692
    %v1694 = vadd.f32 %v1690, %v1693
    %vm1695 = vweird.f32 %v1674
    %vm1696 = vweird.f32 %v1690
    %vm1697 = vmor %vm1695, %vm1696
    %v1698 = vsel %vm1697, %v1690, %v1694
    %v1699 = vand.u32 2147483647, %v1674
    %vm1700 = vcmp.eq.f32.partialorder %v1699, 8.507059e+37
    %v1701 = vand.u32 %v1674, 2147483648
    %v1702 = vor.u32 1.1754944e-38, %v1701
    %v1703 = vsel %vm1700, %v1702, %v1698
    %v1704 = vmul.f32 1.0, %v1703
    %v1705 = vtanh.pop %v1665
    %v1706 = vtanh.pop %v1666
    %v1709 = vrot.slane %v1534, 7
    %v1710 = vrot.slane %v1535, 7
    %v1713 = vmul.f32 %v1689, %v1709
    %v1714 = vmul.f32 %v1704, %v1710
    %1717 = vrot.lane.b32.xlu0 %v1705, 64
    %v1718 = vpop.permute.xlu0 %1717
    %1719 = vrot.lane.b32.xlu0 %v1706, 64
    %v1720 = vpop.permute.xlu0 %1719
    %v1723 = vmul.f32 %v1689, %v1718
    %v1724 = vmul.f32 %v1704, %v1720
    %1727 = vrot.lane.b32.xlu0 %v1723, 32
    %v1728 = vpop.permute.xlu0 %1727
    %1729 = vrot.lane.b32.xlu0 %v1724, 32
    %v1730 = vpop.permute.xlu0 %1729
    %v1733 = vadd.f32 %v1713, %v1728
    %v1734 = vadd.f32 %v1714, %v1730
    %v1735 = vtanh.pop %v1733
    %v1736 = vtanh.pop %v1734
    %1739 = vrot.lane.b32.xlu0 %v1735, 64
    %v1740 = vpop.permute.xlu0 %1739
    %1741 = vrot.lane.b32.xlu0 %v1736, 64
    %v1742 = vpop.permute.xlu0 %1741
    %v1745 = vmul.f32 %v1689, %v1740
    %v1746 = vmul.f32 %v1704, %v1742
    %v1749 = vrot.slane %v1745, 7
    %v1750 = vrot.slane %v1746, 6
    %v1751 = vsel %vm364, %v1750, %v1749
    %1752 = vrot.lane.b32.xlu0 %v1751, 32
    %v1753 = vpop.permute.xlu0 %1752
    %v1754 = vsel %vm254, %v1753, 0
    %1756 = vmatpush.msra.mxu0 0.0
    %1757 = vmatpush.msra.mxu0 0.0
    %1758 = vmatpush.msra.mxu0 0.0
    %1759 = vmatpush.msra.mxu0 0.0
    %1760 = vmatpush.msra.mxu0 0.0
    %1761 = vmatpush.msra.mxu0 0.0
    %1762 = vmatpush.msra.mxu0 0.0
    %1763 = vmatpush.msra.mxu0 0.0
    %1764 = vmatpush.msra.mxu0 0.0
    %1765 = vmatpush.msra.mxu0 0.0
    %1766 = vmatpush.msra.mxu0 0.0
    %1767 = vmatpush.msra.mxu0 0.0
    %1768 = vmatpush.msra.mxu0 %v248
    %1769 = vmatpush.msra.mxu0 %v247
    %1770 = vmatpush.msra.mxu0 %v246
    %1771 = vmatpush.msra.mxu0 %v245
    %1772 = vmatmul.f32.gmra.mxu0 %v1754
    %v1773 = vpop.f32.mrf.mxu0
    %v1774 = vadd.f32 %v359, %v1773
    %1775 = vdwg.mxu0
    %1777 = vrot.lane.b32.xlu0 %v1639, 32
    %v1778 = vpop.permute.xlu0 %1777
    %v1779 = vsel %vm254, %v1778, 0
    %1781 = vmatpush.msra.mxu0 0.0
    %1782 = vmatpush.msra.mxu0 0.0
    %1783 = vmatpush.msra.mxu0 0.0
    %1784 = vmatpush.msra.mxu0 0.0
    %1785 = vmatpush.msra.mxu0 0.0
    %1786 = vmatpush.msra.mxu0 0.0
    %1787 = vmatpush.msra.mxu0 0.0
    %1788 = vmatpush.msra.mxu0 0.0
    %1789 = vmatpush.msra.mxu0 0.0
    %1790 = vmatpush.msra.mxu0 0.0
    %1791 = vmatpush.msra.mxu0 0.0
    %1792 = vmatpush.msra.mxu0 0.0
    %1793 = vmatpush.msra.mxu0 %v252
    %1794 = vmatpush.msra.mxu0 %v251
    %1795 = vmatpush.msra.mxu0 %v250
    %1796 = vmatpush.msra.mxu0 %v249
    %1797 = vmatmul.f32.gmra.mxu0 %v1779
    %v1798 = vpop.f32.mrf.mxu0
    %v1799 = vadd.f32 0.0, %v1798
    %1800 = vdwg.mxu0
    %v1801 = vadd.f32 %v1774, %v1799
    %v1802 = vxor.u32 %v1801, 2147483648
    %v1803 = vmul.f32 %v1802, 1.442695
    %v1804 = vpow.pop %v1803
    %v1805 = vadd.f32 %v1804, 1.0
    %v1806 = vrcp.pop %v1805
    %v1807 = vmul.f32 %v1805, %v1806
    %v1808 = vsub.f32 1.0, %v1807
    %v1809 = vmul.f32 %v1806, %v1808
    %v1810 = vadd.f32 %v1806, %v1809
    %vm1811 = vweird.f32 %v1805
    %vm1812 = vweird.f32 %v1806
    %vm1813 = vmor %vm1811, %vm1812
    %v1814 = vsel %vm1813, %v1806, %v1810
    %v1815 = vand.u32 2147483647, %v1805
    %vm1816 = vcmp.eq.f32.partialorder %v1815, 8.507059e+37
    %v1817 = vand.u32 %v1805, 2147483648
    %v1818 = vor.u32 1.1754944e-38, %v1817
    %v1819 = vsel %vm1816, %v1818, %v1814
    %v1820 = vmul.f32 1.0, %v1819
    %v1821 = vtanh.pop %v1801
    %v1822 = vmul.f32 %v1820, %v1633
    %1824 = vrot.lane.b32.xlu0 %v1821, 64
    %v1825 = vpop.permute.xlu0 %1824
    %v1827 = vmul.f32 %v1820, %v1825
    %1829 = vrot.lane.b32.xlu0 %v1827, 32
    %v1830 = vpop.permute.xlu0 %1829
    %v1832 = vadd.f32 %v1822, %v1830
    %v1833 = vtanh.pop %v1832
    %1835 = vrot.lane.b32.xlu0 %v1833, 64
    %v1836 = vpop.permute.xlu0 %1835
    %v1838 = vmul.f32 %v1820, %v1836
    %v1839 = vrot.slane %v447, 1
    %v1841 = vrot.slane %v644, 1
    %v1842 = vrot.slane %v843, 1
    %v1843 = vrot.slane %v1042, 1
    %v1844 = vrot.slane %v1241, 1
    %v1845 = vrot.slane %v1440, 1
    %v1846 = vrot.slane %v1639, 1
    %v1848 = vrot.slane %v1838, 1
    %v1849 = vperm.slane %v644, 0
    %v1850 = vperm.slane %v1841, 0
    %v1853 = vperm.slane %v843, 0
    %v1854 = vperm.slane %v1842, 0
    %v1857 = vperm.slane %v1042, 0
    %v1858 = vperm.slane %v1843, 0
    %v1861 = vperm.slane %v1241, 0
    %v1862 = vperm.slane %v1844, 0
    %v1865 = vperm.slane %v1440, 0
    %v1866 = vperm.slane %v1845, 0
    %v1869 = vperm.slane %v1639, 0
    %v1870 = vperm.slane %v1846, 0
    %v1873 = vperm.slane %v1838, 0
    %v1874 = vperm.slane %v1848, 0
    %vm1877 = vcmask 1040384
    %v1878 = vsel %vm1877, %v447, %v1849
    %v1879 = vsel %vm1877, %v1839, %v1850
    %vm1880 = vcmask 1041408
    %v1881 = vsel %vm1880, %v1878, %v1853
    %v1882 = vsel %vm1880, %v1879, %v1854
    %vm1883 = vcmask 1042432
    %v1884 = vsel %vm1883, %v1881, %v1857
    %v1885 = vsel %vm1883, %v1882, %v1858
    %vm1886 = vcmask 1043456
    %v1887 = vsel %vm1886, %v1884, %v1861
    %v1888 = vsel %vm1886, %v1885, %v1862
    %vm1889 = vcmask 1044480
    %v1890 = vsel %vm1889, %v1887, %v1865
    %v1891 = vsel %vm1889, %v1888, %v1866
    %vm1892 = vcmask 1045504
    %v1893 = vsel %vm1892, %v1890, %v1869
    %v1894 = vsel %vm1892, %v1891, %v1870
    %vm1895 = vcmask 1046528
    %v1896 = vsel %vm1895, %v1893, %v1873
    %v1897 = vsel %vm1895, %v1894, %v1874
    %v1898 = vld [vmem:[#allocation10] sm:$0xff]
    %v1899 = vld [vmem:[#allocation10 + $0x8] sm:$0xff]
    %v1900 = vld [vmem:[#allocation10 + $0x10] sm:$0xff]
    %v1901 = vld [vmem:[#allocation10 + $0x18] sm:$0xff]
    %v1902 = vld [vmem:[%s8] sm:$0x1]
    %v1904 = vperm.slane %v1902, 0
    %1908 = vrot.lane.b32.xlu0 %v1896, 32
    %v1909 = vpop.permute.xlu0 %1908
    %1910 = vrot.lane.b32.xlu0 %v1897, 32
    %v1911 = vpop.permute.xlu0 %1910
    %v1912 = vsel %vm254, %v1909, 0
    %v1914 = vsel %vm254, %v1911, 0
    %1916 = vmatpush.msra.mxu0 0.0
    %1917 = vmatpush.msra.mxu0 0.0
    %1918 = vmatpush.msra.mxu0 0.0
    %1919 = vmatpush.msra.mxu0 0.0
    %1920 = vmatpush.msra.mxu0 0.0
    %1921 = vmatpush.msra.mxu0 0.0
    %1922 = vmatpush.msra.mxu0 0.0
    %1923 = vmatpush.msra.mxu0 0.0
    %1924 = vmatpush.msra.mxu0 0.0
    %1925 = vmatpush.msra.mxu0 0.0
    %1926 = vmatpush.msra.mxu0 0.0
    %1927 = vmatpush.msra.mxu0 0.0
    %1928 = vmatpush.msra.mxu0 %v1901
    %1929 = vmatpush.msra.mxu0 %v1900
    %1930 = vmatpush.msra.mxu0 %v1899
    %1931 = vmatpush.msra.mxu0 %v1898
    %1932 = vmatmul.f32.gmra.mxu0 %v1912
    %v1933 = vpop.f32.mrf.mxu0
    %v1934 = vadd.f32 %v1904, %v1933
    %1935 = vmatmul.f32.gmra.mxu0 %v1914
    %v1936 = vpop.f32.mrf.mxu0
    %v1937 = vadd.f32 %v1904, %v1936
    %1938 = vdwg.mxu0
    %1940 = vrot.lane.b32.xlu0 %v1934, 96
    %v1941 = vpop.permute.xlu0 %1940
    %vm1942 = vcmask 64512
    %v1943 = vsel %vm1942, %v1934, 0
    %v1945 = vsel %vm1942, %v1941, 0
    %1947 = vmatpush.xpose.msra.mxu0 0.0
    %1948 = vmatpush.xpose.msra.mxu0 0.0
    %1949 = vmatpush.xpose.msra.mxu0 0.0
    %1950 = vmatpush.xpose.msra.mxu0 0.0
    %1951 = vmatpush.xpose.msra.mxu0 0.0
    %1952 = vmatpush.xpose.msra.mxu0 0.0
    %1953 = vmatpush.xpose.msra.mxu0 0.0
    %1954 = vmatpush.xpose.msra.mxu0 0.0
    %1955 = vmatpush.xpose.msra.mxu0 0.0
    %1956 = vmatpush.xpose.msra.mxu0 0.0
    %1957 = vmatpush.xpose.msra.mxu0 0.0
    %1958 = vmatpush.xpose.msra.mxu0 0.0
    %1959 = vmatpush.xpose.msra.mxu0 0.0
    %1960 = vmatpush.xpose.msra.mxu0 0.0
    %1961 = vmatpush.xpose.msra.mxu0 0.0
    %1962 = vmatpush.xpose.msra.mxu0 %v1945
    %1963 = vmatmul.f32.gmra.mxu0 %v1943
    %v1964 = vpop.f32.mrf.mxu0
    %v1965 = vadd.f32 0.0, %v1964
    %1966 = vdwg.mxu0
    %1968 = vrot.lane.b32.xlu0 %v1937, 96
    %v1969 = vpop.permute.xlu0 %1968
    %v1970 = vsel %vm1942, %v1937, 0
    %v1972 = vsel %vm1942, %v1969, 0
    %1974 = vmatpush.xpose.msra.mxu0 0.0
    %1975 = vmatpush.xpose.msra.mxu0 0.0
    %1976 = vmatpush.xpose.msra.mxu0 0.0
    %1977 = vmatpush.xpose.msra.mxu0 0.0
    %1978 = vmatpush.xpose.msra.mxu0 0.0
    %1979 = vmatpush.xpose.msra.mxu0 0.0
    %1980 = vmatpush.xpose.msra.mxu0 0.0
    %1981 = vmatpush.xpose.msra.mxu0 0.0
    %1982 = vmatpush.xpose.msra.mxu0 0.0
    %1983 = vmatpush.xpose.msra.mxu0 0.0
    %1984 = vmatpush.xpose.msra.mxu0 0.0
    %1985 = vmatpush.xpose.msra.mxu0 0.0
    %1986 = vmatpush.xpose.msra.mxu0 0.0
    %1987 = vmatpush.xpose.msra.mxu0 0.0
    %1988 = vmatpush.xpose.msra.mxu0 0.0
    %1989 = vmatpush.xpose.msra.mxu0 %v1972
    %1990 = vmatmul.f32.gmra.mxu0 %v1970
    %v1991 = vpop.f32.mrf.mxu0
    %v1992 = vadd.f32 0.0, %v1991
    %1993 = vdwg.mxu0
    %v1994 = vsel %vm1942, %v1965, -inf
    %1995 = vmax.xlane.f32.xlu0 %v1994
    %v1996 = vpop.xlane.xlu0 %1995
    %v1997 = vsel %vm1942, %v1992, -inf
    %1998 = vmax.xlane.f32.xlu0 %v1997
    %v1999 = vpop.xlane.xlu0 %1998
    %v2000 = vsub.f32 %v1965, %v1996
    %v2001 = vsub.f32 %v1992, %v1999
    %v2002 = vmul.f32 %v2000, 1.442695
    %v2003 = vpow.pop %v2002
    %v2004 = vmul.f32 %v2001, 1.442695
    %v2005 = vpow.pop %v2004
    %v2006 = vsel %vm1942, %v2003, 0.0
    %2007 = vadd.xlane.f32.xlu0 %v2006
    %v2008 = vpop.xlane.xlu0 %2007
    %v2009 = vsel %vm1942, %v2005, 0.0
    %2010 = vadd.xlane.f32.xlu0 %v2009
    %v2011 = vpop.xlane.xlu0 %2010
    %v2012 = vrcp.pop %v2008
    %v2013 = vrcp.pop %v2011
    %v2014 = vmul.f32 %v2003, %v2012
    %v2015 = vmul.f32 %v2005, %v2013
    %2016 = vrot.lane.b32.xlu0 %v1934, 64
    %v2017 = vpop.permute.xlu0 %2016
    %v2020 = vsel %vm1942, %v2014, 0
    %2022 = vmatpush.msra.mxu0 0.0
    %2023 = vmatpush.msra.mxu0 0.0
    %2024 = vmatpush.msra.mxu0 0.0
    %2025 = vmatpush.msra.mxu0 0.0
    %2026 = vmatpush.msra.mxu0 0.0
    %2027 = vmatpush.msra.mxu0 0.0
    %2028 = vmatpush.msra.mxu0 0.0
    %2029 = vmatpush.msra.mxu0 0.0
    %2030 = vmatpush.msra.mxu0 0.0
    %2031 = vmatpush.msra.mxu0 0.0
    %2032 = vmatpush.msra.mxu0 0.0
    %2033 = vmatpush.msra.mxu0 0.0
    %2034 = vmatpush.msra.mxu0 0.0
    %2035 = vmatpush.msra.mxu0 0.0
    %2036 = vmatpush.msra.mxu0 0.0
    %2037 = vmatpush.msra.mxu0 %v2017
    %2038 = vmatmul.f32.gmra.mxu0 %v2020
    %v2039 = vpop.f32.mrf.mxu0
    %v2040 = vadd.f32 0.0, %v2039
    %2041 = vdwg.mxu0
    %2042 = vrot.lane.b32.xlu0 %v1937, 64
    %v2043 = vpop.permute.xlu0 %2042
    %v2046 = vsel %vm1942, %v2015, 0
    %2048 = vmatpush.msra.mxu0 0.0
    %2049 = vmatpush.msra.mxu0 0.0
    %2050 = vmatpush.msra.mxu0 0.0
    %2051 = vmatpush.msra.mxu0 0.0
    %2052 = vmatpush.msra.mxu0 0.0
    %2053 = vmatpush.msra.mxu0 0.0
    %2054 = vmatpush.msra.mxu0 0.0
    %2055 = vmatpush.msra.mxu0 0.0
    %2056 = vmatpush.msra.mxu0 0.0
    %2057 = vmatpush.msra.mxu0 0.0
    %2058 = vmatpush.msra.mxu0 0.0
    %2059 = vmatpush.msra.mxu0 0.0
    %2060 = vmatpush.msra.mxu0 0.0
    %2061 = vmatpush.msra.mxu0 0.0
    %2062 = vmatpush.msra.mxu0 0.0
    %2063 = vmatpush.msra.mxu0 %v2043
    %2064 = vmatmul.f32.gmra.mxu0 %v2046
    %v2065 = vpop.f32.mrf.mxu0
    %v2066 = vadd.f32 0.0, %v2065
    %2067 = vdwg.mxu0
    %v2068 = vld [vmem:[#allocation11] sm:$0xff]
    %2069 = vrot.lane.b32.xlu0 %v1934, 120
    %v2070 = vpop.permute.xlu0 %2069
    %2071 = vrot.lane.b32.xlu0 %v1934, 88
    %v2072 = vpop.permute.xlu0 %2071
    %v2073 = vsel %vm1942, %v2070, 0
    %v2075 = vsel %vm1942, %v2072, 0
    %2077 = vmatpush.xpose.msra.mxu0 0.0
    %2078 = vmatpush.xpose.msra.mxu0 0.0
    %2079 = vmatpush.xpose.msra.mxu0 0.0
    %2080 = vmatpush.xpose.msra.mxu0 0.0
    %2081 = vmatpush.xpose.msra.mxu0 0.0
    %2082 = vmatpush.xpose.msra.mxu0 0.0
    %2083 = vmatpush.xpose.msra.mxu0 0.0
    %2084 = vmatpush.xpose.msra.mxu0 0.0
    %2085 = vmatpush.xpose.msra.mxu0 0.0
    %2086 = vmatpush.xpose.msra.mxu0 0.0
    %2087 = vmatpush.xpose.msra.mxu0 0.0
    %2088 = vmatpush.xpose.msra.mxu0 0.0
    %2089 = vmatpush.xpose.msra.mxu0 0.0
    %2090 = vmatpush.xpose.msra.mxu0 0.0
    %2091 = vmatpush.xpose.msra.mxu0 0.0
    %2092 = vmatpush.xpose.msra.mxu0 %v2075
    %2093 = vmatmul.f32.gmra.mxu0 %v2073
    %v2094 = vpop.f32.mrf.mxu0
    %v2095 = vadd.f32 0.0, %v2094
    %2096 = vdwg.mxu0
    %2097 = vrot.lane.b32.xlu0 %v1937, 120
    %v2098 = vpop.permute.xlu0 %2097
    %2099 = vrot.lane.b32.xlu0 %v1937, 88
    %v2100 = vpop.permute.xlu0 %2099
    %v2101 = vsel %vm1942, %v2098, 0
    %v2103 = vsel %vm1942, %v2100, 0
    %2105 = vmatpush.xpose.msra.mxu0 0.0
    %2106 = vmatpush.xpose.msra.mxu0 0.0
    %2107 = vmatpush.xpose.msra.mxu0 0.0
    %2108 = vmatpush.xpose.msra.mxu0 0.0
    %2109 = vmatpush.xpose.msra.mxu0 0.0
    %2110 = vmatpush.xpose.msra.mxu0 0.0
    %2111 = vmatpush.xpose.msra.mxu0 0.0
    %2112 = vmatpush.xpose.msra.mxu0 0.0
    %2113 = vmatpush.xpose.msra.mxu0 0.0
    %2114 = vmatpush.xpose.msra.mxu0 0.0
    %2115 = vmatpush.xpose.msra.mxu0 0.0
    %2116 = vmatpush.xpose.msra.mxu0 0.0
    %2117 = vmatpush.xpose.msra.mxu0 0.0
    %2118 = vmatpush.xpose.msra.mxu0 0.0
    %2119 = vmatpush.xpose.msra.mxu0 0.0
    %2120 = vmatpush.xpose.msra.mxu0 %v2103
    %2121 = vmatmul.f32.gmra.mxu0 %v2101
    %v2122 = vpop.f32.mrf.mxu0
    %v2123 = vadd.f32 0.0, %v2122
    %2124 = vdwg.mxu0
    %v2125 = vsel %vm1942, %v2095, -inf
    %2126 = vmax.xlane.f32.xlu0 %v2125
    %v2127 = vpop.xlane.xlu0 %2126
    %v2128 = vsel %vm1942, %v2123, -inf
    %2129 = vmax.xlane.f32.xlu0 %v2128
    %v2130 = vpop.xlane.xlu0 %2129
    %v2131 = vsub.f32 %v2095, %v2127
    %v2132 = vsub.f32 %v2123, %v2130
    %v2133 = vmul.f32 %v2131, 1.442695
    %v2134 = vpow.pop %v2133
    %v2135 = vmul.f32 %v2132, 1.442695
    %v2136 = vpow.pop %v2135
    %v2137 = vsel %vm1942, %v2134, 0.0
    %2138 = vadd.xlane.f32.xlu0 %v2137
    %v2139 = vpop.xlane.xlu0 %2138
    %v2140 = vsel %vm1942, %v2136, 0.0
    %2141 = vadd.xlane.f32.xlu0 %v2140
    %v2142 = vpop.xlane.xlu0 %2141
    %v2143 = vrcp.pop %v2139
    %v2144 = vrcp.pop %v2142
    %v2145 = vmul.f32 %v2134, %v2143
    %v2146 = vmul.f32 %v2136, %v2144
    %2147 = vrot.lane.b32.xlu0 %v1934, 56
    %v2148 = vpop.permute.xlu0 %2147
    %v2151 = vsel %vm1942, %v2145, 0
    %2153 = vmatpush.msra.mxu0 0.0
    %2154 = vmatpush.msra.mxu0 0.0
    %2155 = vmatpush.msra.mxu0 0.0
    %2156 = vmatpush.msra.mxu0 0.0
    %2157 = vmatpush.msra.mxu0 0.0
    %2158 = vmatpush.msra.mxu0 0.0
    %2159 = vmatpush.msra.mxu0 0.0
    %2160 = vmatpush.msra.mxu0 0.0
    %2161 = vmatpush.msra.mxu0 0.0
    %2162 = vmatpush.msra.mxu0 0.0
    %2163 = vmatpush.msra.mxu0 0.0
    %2164 = vmatpush.msra.mxu0 0.0
    %2165 = vmatpush.msra.mxu0 0.0
    %2166 = vmatpush.msra.mxu0 0.0
    %2167 = vmatpush.msra.mxu0 0.0
    %2168 = vmatpush.msra.mxu0 %v2148
    %2169 = vmatmul.f32.gmra.mxu0 %v2151
    %v2170 = vpop.f32.mrf.mxu0
    %v2171 = vadd.f32 0.0, %v2170
    %2172 = vdwg.mxu0
    %2173 = vrot.lane.b32.xlu0 %v1937, 56
    %v2174 = vpop.permute.xlu0 %2173
    %v2177 = vsel %vm1942, %v2146, 0
    %2179 = vmatpush.msra.mxu0 0.0
    %2180 = vmatpush.msra.mxu0 0.0
    %2181 = vmatpush.msra.mxu0 0.0
    %2182 = vmatpush.msra.mxu0 0.0
    %2183 = vmatpush.msra.mxu0 0.0
    %2184 = vmatpush.msra.mxu0 0.0
    %2185 = vmatpush.msra.mxu0 0.0
    %2186 = vmatpush.msra.mxu0 0.0
    %2187 = vmatpush.msra.mxu0 0.0
    %2188 = vmatpush.msra.mxu0 0.0
    %2189 = vmatpush.msra.mxu0 0.0
    %2190 = vmatpush.msra.mxu0 0.0
    %2191 = vmatpush.msra.mxu0 0.0
    %2192 = vmatpush.msra.mxu0 0.0
    %2193 = vmatpush.msra.mxu0 0.0
    %2194 = vmatpush.msra.mxu0 %v2174
    %2195 = vmatmul.f32.gmra.mxu0 %v2177
    %v2196 = vpop.f32.mrf.mxu0
    %v2197 = vadd.f32 0.0, %v2196
    %2198 = vdwg.mxu0
    %s2199 = scalar_lea.vmem [#allocation11], 8
    %v2200 = vld [vmem:[%s2199] sm:$0xff]
    %v2202 = vsel %vm1942, %v2171, 0
    %v2205 = vsel %vm1942, %v2197, 0
    %2207 = vmatpush.msra.mxu0 0.0
    %2208 = vmatpush.msra.mxu0 0.0
    %2209 = vmatpush.msra.mxu0 0.0
    %2210 = vmatpush.msra.mxu0 0.0
    %2211 = vmatpush.msra.mxu0 0.0
    %2212 = vmatpush.msra.mxu0 0.0
    %2213 = vmatpush.msra.mxu0 0.0
    %2214 = vmatpush.msra.mxu0 0.0
    %2215 = vmatpush.msra.mxu0 0.0
    %2216 = vmatpush.msra.mxu0 0.0
    %2217 = vmatpush.msra.mxu0 0.0
    %2218 = vmatpush.msra.mxu0 0.0
    %2219 = vmatpush.msra.mxu0 0.0
    %2220 = vmatpush.msra.mxu0 0.0
    %2221 = vmatpush.msra.mxu0 0.0
    %2222 = vmatpush.msra.mxu0 %v2200
    %2223 = vmatmul.f32.gmra.mxu0 %v2202
    %v2224 = vpop.f32.mrf.mxu0
    %v2225 = vadd.f32 0.0, %v2224
    %2226 = vmatmul.f32.gmra.mxu0 %v2205
    %v2227 = vpop.f32.mrf.mxu0
    %v2228 = vadd.f32 0.0, %v2227
    %2229 = vdwg.mxu0
    %v2231 = vsel %vm1942, %v2040, 0
    %v2234 = vsel %vm1942, %v2066, 0
    %2236 = vmatpush.msra.mxu0 0.0
    %2237 = vmatpush.msra.mxu0 0.0
    %2238 = vmatpush.msra.mxu0 0.0
    %2239 = vmatpush.msra.mxu0 0.0
    %2240 = vmatpush.msra.mxu0 0.0
    %2241 = vmatpush.msra.mxu0 0.0
    %2242 = vmatpush.msra.mxu0 0.0
    %2243 = vmatpush.msra.mxu0 0.0
    %2244 = vmatpush.msra.mxu0 0.0
    %2245 = vmatpush.msra.mxu0 0.0
    %2246 = vmatpush.msra.mxu0 0.0
    %2247 = vmatpush.msra.mxu0 0.0
    %2248 = vmatpush.msra.mxu0 0.0
    %2249 = vmatpush.msra.mxu0 0.0
    %2250 = vmatpush.msra.mxu0 0.0
    %2251 = vmatpush.msra.mxu0 %v2068
    %2252 = vmatmul.f32.gmra.mxu0 %v2231
    %v2253 = vpop.f32.mrf.mxu0
    %v2254 = vadd.f32 %v2225, %v2253
    %2255 = vmatmul.f32.gmra.mxu0 %v2234
    %v2256 = vpop.f32.mrf.mxu0
    %v2257 = vadd.f32 %v2228, %v2256
    %2258 = vdwg.mxu0
    %2259 = vrot.lane.b32.xlu0 %v1934, 112
    %v2260 = vpop.permute.xlu0 %2259
    %2261 = vrot.lane.b32.xlu0 %v1934, 80
    %v2262 = vpop.permute.xlu0 %2261
    %v2263 = vsel %vm1942, %v2260, 0
    %v2265 = vsel %vm1942, %v2262, 0
    %2267 = vmatpush.xpose.msra.mxu0 0.0
    %2268 = vmatpush.xpose.msra.mxu0 0.0
    %2269 = vmatpush.xpose.msra.mxu0 0.0
    %2270 = vmatpush.xpose.msra.mxu0 0.0
    %2271 = vmatpush.xpose.msra.mxu0 0.0
    %2272 = vmatpush.xpose.msra.mxu0 0.0
    %2273 = vmatpush.xpose.msra.mxu0 0.0
    %2274 = vmatpush.xpose.msra.mxu0 0.0
    %2275 = vmatpush.xpose.msra.mxu0 0.0
    %2276 = vmatpush.xpose.msra.mxu0 0.0
    %2277 = vmatpush.xpose.msra.mxu0 0.0
    %2278 = vmatpush.xpose.msra.mxu0 0.0
    %2279 = vmatpush.xpose.msra.mxu0 0.0
    %2280 = vmatpush.xpose.msra.mxu0 0.0
    %2281 = vmatpush.xpose.msra.mxu0 0.0
    %2282 = vmatpush.xpose.msra.mxu0 %v2265
    %2283 = vmatmul.f32.gmra.mxu0 %v2263
    %v2284 = vpop.f32.mrf.mxu0
    %v2285 = vadd.f32 0.0, %v2284
    %2286 = vdwg.mxu0
    %2287 = vrot.lane.b32.xlu0 %v1937, 112
    %v2288 = vpop.permute.xlu0 %2287
    %2289 = vrot.lane.b32.xlu0 %v1937, 80
    %v2290 = vpop.permute.xlu0 %2289
    %v2291 = vsel %vm1942, %v2288, 0
    %v2293 = vsel %vm1942, %v2290, 0
    %2295 = vmatpush.xpose.msra.mxu0 0.0
    %2296 = vmatpush.xpose.msra.mxu0 0.0
    %2297 = vmatpush.xpose.msra.mxu0 0.0
    %2298 = vmatpush.xpose.msra.mxu0 0.0
    %2299 = vmatpush.xpose.msra.mxu0 0.0
    %2300 = vmatpush.xpose.msra.mxu0 0.0
    %2301 = vmatpush.xpose.msra.mxu0 0.0
    %2302 = vmatpush.xpose.msra.mxu0 0.0
    %2303 = vmatpush.xpose.msra.mxu0 0.0
    %2304 = vmatpush.xpose.msra.mxu0 0.0
    %2305 = vmatpush.xpose.msra.mxu0 0.0
    %2306 = vmatpush.xpose.msra.mxu0 0.0
    %2307 = vmatpush.xpose.msra.mxu0 0.0
    %2308 = vmatpush.xpose.msra.mxu0 0.0
    %2309 = vmatpush.xpose.msra.mxu0 0.0
    %2310 = vmatpush.xpose.msra.mxu0 %v2293
    %2311 = vmatmul.f32.gmra.mxu0 %v2291
    %v2312 = vpop.f32.mrf.mxu0
    %v2313 = vadd.f32 0.0, %v2312
    %2314 = vdwg.mxu0
    %v2315 = vsel %vm1942, %v2285, -inf
    %2316 = vmax.xlane.f32.xlu0 %v2315
    %v2317 = vpop.xlane.xlu0 %2316
    %v2318 = vsel %vm1942, %v2313, -inf
    %2319 = vmax.xlane.f32.xlu0 %v2318
    %v2320 = vpop.xlane.xlu0 %2319
    %v2321 = vsub.f32 %v2285, %v2317
    %v2322 = vsub.f32 %v2313, %v2320
    %v2323 = vmul.f32 %v2321, 1.442695
    %v2324 = vpow.pop %v2323
    %v2325 = vmul.f32 %v2322, 1.442695
    %v2326 = vpow.pop %v2325
    %v2327 = vsel %vm1942, %v2324, 0.0
    %2328 = vadd.xlane.f32.xlu0 %v2327
    %v2329 = vpop.xlane.xlu0 %2328
    %v2330 = vsel %vm1942, %v2326, 0.0
    %2331 = vadd.xlane.f32.xlu0 %v2330
    %v2332 = vpop.xlane.xlu0 %2331
    %v2333 = vrcp.pop %v2329
    %v2334 = vrcp.pop %v2332
    %v2335 = vmul.f32 %v2324, %v2333
    %v2336 = vmul.f32 %v2326, %v2334
    %2337 = vrot.lane.b32.xlu0 %v1934, 48
    %v2338 = vpop.permute.xlu0 %2337
    %v2341 = vsel %vm1942, %v2335, 0
    %2343 = vmatpush.msra.mxu0 0.0
    %2344 = vmatpush.msra.mxu0 0.0
    %2345 = vmatpush.msra.mxu0 0.0
    %2346 = vmatpush.msra.mxu0 0.0
    %2347 = vmatpush.msra.mxu0 0.0
    %2348 = vmatpush.msra.mxu0 0.0
    %2349 = vmatpush.msra.mxu0 0.0
    %2350 = vmatpush.msra.mxu0 0.0
    %2351 = vmatpush.msra.mxu0 0.0
    %2352 = vmatpush.msra.mxu0 0.0
    %2353 = vmatpush.msra.mxu0 0.0
    %2354 = vmatpush.msra.mxu0 0.0
    %2355 = vmatpush.msra.mxu0 0.0
    %2356 = vmatpush.msra.mxu0 0.0
    %2357 = vmatpush.msra.mxu0 0.0
    %2358 = vmatpush.msra.mxu0 %v2338
    %2359 = vmatmul.f32.gmra.mxu0 %v2341
    %v2360 = vpop.f32.mrf.mxu0
    %v2361 = vadd.f32 0.0, %v2360
    %2362 = vdwg.mxu0
    %2363 = vrot.lane.b32.xlu0 %v1937, 48
    %v2364 = vpop.permute.xlu0 %2363
    %v2367 = vsel %vm1942, %v2336, 0
    %2369 = vmatpush.msra.mxu0 0.0
    %2370 = vmatpush.msra.mxu0 0.0
    %2371 = vmatpush.msra.mxu0 0.0
    %2372 = vmatpush.msra.mxu0 0.0
    %2373 = vmatpush.msra.mxu0 0.0
    %2374 = vmatpush.msra.mxu0 0.0
    %2375 = vmatpush.msra.mxu0 0.0
    %2376 = vmatpush.msra.mxu0 0.0
    %2377 = vmatpush.msra.mxu0 0.0
    %2378 = vmatpush.msra.mxu0 0.0
    %2379 = vmatpush.msra.mxu0 0.0
    %2380 = vmatpush.msra.mxu0 0.0
    %2381 = vmatpush.msra.mxu0 0.0
    %2382 = vmatpush.msra.mxu0 0.0
    %2383 = vmatpush.msra.mxu0 0.0
    %2384 = vmatpush.msra.mxu0 %v2364
    %2385 = vmatmul.f32.gmra.mxu0 %v2367
    %v2386 = vpop.f32.mrf.mxu0
    %v2387 = vadd.f32 0.0, %v2386
    %2388 = vdwg.mxu0
    %s2389 = scalar_lea.vmem [#allocation11], 16
    %v2390 = vld [vmem:[%s2389] sm:$0xff]
    %v2392 = vsel %vm1942, %v2361, 0
    %v2395 = vsel %vm1942, %v2387, 0
    %2397 = vmatpush.msra.mxu0 0.0
    %2398 = vmatpush.msra.mxu0 0.0
    %2399 = vmatpush.msra.mxu0 0.0
    %2400 = vmatpush.msra.mxu0 0.0
    %2401 = vmatpush.msra.mxu0 0.0
    %2402 = vmatpush.msra.mxu0 0.0
    %2403 = vmatpush.msra.mxu0 0.0
    %2404 = vmatpush.msra.mxu0 0.0
    %2405 = vmatpush.msra.mxu0 0.0
    %2406 = vmatpush.msra.mxu0 0.0
    %2407 = vmatpush.msra.mxu0 0.0
    %2408 = vmatpush.msra.mxu0 0.0
    %2409 = vmatpush.msra.mxu0 0.0
    %2410 = vmatpush.msra.mxu0 0.0
    %2411 = vmatpush.msra.mxu0 0.0
    %2412 = vmatpush.msra.mxu0 %v2390
    %2413 = vmatmul.f32.gmra.mxu0 %v2392
    %v2414 = vpop.f32.mrf.mxu0
    %v2415 = vadd.f32 0.0, %v2414
    %2416 = vmatmul.f32.gmra.mxu0 %v2395
    %v2417 = vpop.f32.mrf.mxu0
    %v2418 = vadd.f32 0.0, %v2417
    %2419 = vdwg.mxu0
    %v2420 = vadd.f32 %v2254, %v2415
    %v2421 = vadd.f32 %v2257, %v2418
    %2422 = vrot.lane.b32.xlu0 %v1934, 104
    %v2423 = vpop.permute.xlu0 %2422
    %2424 = vrot.lane.b32.xlu0 %v1934, 72
    %v2425 = vpop.permute.xlu0 %2424
    %v2426 = vsel %vm1942, %v2423, 0
    %v2428 = vsel %vm1942, %v2425, 0
    %2430 = vmatpush.xpose.msra.mxu0 0.0
    %2431 = vmatpush.xpose.msra.mxu0 0.0
    %2432 = vmatpush.xpose.msra.mxu0 0.0
    %2433 = vmatpush.xpose.msra.mxu0 0.0
    %2434 = vmatpush.xpose.msra.mxu0 0.0
    %2435 = vmatpush.xpose.msra.mxu0 0.0
    %2436 = vmatpush.xpose.msra.mxu0 0.0
    %2437 = vmatpush.xpose.msra.mxu0 0.0
    %2438 = vmatpush.xpose.msra.mxu0 0.0
    %2439 = vmatpush.xpose.msra.mxu0 0.0
    %2440 = vmatpush.xpose.msra.mxu0 0.0
    %2441 = vmatpush.xpose.msra.mxu0 0.0
    %2442 = vmatpush.xpose.msra.mxu0 0.0
    %2443 = vmatpush.xpose.msra.mxu0 0.0
    %2444 = vmatpush.xpose.msra.mxu0 0.0
    %2445 = vmatpush.xpose.msra.mxu0 %v2428
    %2446 = vmatmul.f32.gmra.mxu0 %v2426
    %v2447 = vpop.f32.mrf.mxu0
    %v2448 = vadd.f32 0.0, %v2447
    %2449 = vdwg.mxu0
    %2450 = vrot.lane.b32.xlu0 %v1937, 104
    %v2451 = vpop.permute.xlu0 %2450
    %2452 = vrot.lane.b32.xlu0 %v1937, 72
    %v2453 = vpop.permute.xlu0 %2452
    %v2454 = vsel %vm1942, %v2451, 0
    %v2456 = vsel %vm1942, %v2453, 0
    %2458 = vmatpush.xpose.msra.mxu0 0.0
    %2459 = vmatpush.xpose.msra.mxu0 0.0
    %2460 = vmatpush.xpose.msra.mxu0 0.0
    %2461 = vmatpush.xpose.msra.mxu0 0.0
    %2462 = vmatpush.xpose.msra.mxu0 0.0
    %2463 = vmatpush.xpose.msra.mxu0 0.0
    %2464 = vmatpush.xpose.msra.mxu0 0.0
    %2465 = vmatpush.xpose.msra.mxu0 0.0
    %2466 = vmatpush.xpose.msra.mxu0 0.0
    %2467 = vmatpush.xpose.msra.mxu0 0.0
    %2468 = vmatpush.xpose.msra.mxu0 0.0
    %2469 = vmatpush.xpose.msra.mxu0 0.0
    %2470 = vmatpush.xpose.msra.mxu0 0.0
    %2471 = vmatpush.xpose.msra.mxu0 0.0
    %2472 = vmatpush.xpose.msra.mxu0 0.0
    %2473 = vmatpush.xpose.msra.mxu0 %v2456
    %2474 = vmatmul.f32.gmra.mxu0 %v2454
    %v2475 = vpop.f32.mrf.mxu0
    %v2476 = vadd.f32 0.0, %v2475
    %2477 = vdwg.mxu0
    %v2478 = vsel %vm1942, %v2448, -inf
    %2479 = vmax.xlane.f32.xlu0 %v2478
    %v2480 = vpop.xlane.xlu0 %2479
    %v2481 = vsel %vm1942, %v2476, -inf
    %2482 = vmax.xlane.f32.xlu0 %v2481
    %v2483 = vpop.xlane.xlu0 %2482
    %v2484 = vsub.f32 %v2448, %v2480
    %v2485 = vsub.f32 %v2476, %v2483
    %v2486 = vmul.f32 %v2484, 1.442695
    %v2487 = vpow.pop %v2486
    %v2488 = vmul.f32 %v2485, 1.442695
    %v2489 = vpow.pop %v2488
    %v2490 = vsel %vm1942, %v2487, 0.0
    %2491 = vadd.xlane.f32.xlu0 %v2490
    %v2492 = vpop.xlane.xlu0 %2491
    %v2493 = vsel %vm1942, %v2489, 0.0
    %2494 = vadd.xlane.f32.xlu0 %v2493
    %v2495 = vpop.xlane.xlu0 %2494
    %v2496 = vrcp.pop %v2492
    %v2497 = vrcp.pop %v2495
    %v2498 = vmul.f32 %v2487, %v2496
    %v2499 = vmul.f32 %v2489, %v2497
    %2500 = vrot.lane.b32.xlu0 %v1934, 40
    %v2501 = vpop.permute.xlu0 %2500
    %v2504 = vsel %vm1942, %v2498, 0
    %2506 = vmatpush.msra.mxu0 0.0
    %2507 = vmatpush.msra.mxu0 0.0
    %2508 = vmatpush.msra.mxu0 0.0
    %2509 = vmatpush.msra.mxu0 0.0
    %2510 = vmatpush.msra.mxu0 0.0
    %2511 = vmatpush.msra.mxu0 0.0
    %2512 = vmatpush.msra.mxu0 0.0
    %2513 = vmatpush.msra.mxu0 0.0
    %2514 = vmatpush.msra.mxu0 0.0
    %2515 = vmatpush.msra.mxu0 0.0
    %2516 = vmatpush.msra.mxu0 0.0
    %2517 = vmatpush.msra.mxu0 0.0
    %2518 = vmatpush.msra.mxu0 0.0
    %2519 = vmatpush.msra.mxu0 0.0
    %2520 = vmatpush.msra.mxu0 0.0
    %2521 = vmatpush.msra.mxu0 %v2501
    %2522 = vmatmul.f32.gmra.mxu0 %v2504
    %v2523 = vpop.f32.mrf.mxu0
    %v2524 = vadd.f32 0.0, %v2523
    %2525 = vdwg.mxu0
    %2526 = vrot.lane.b32.xlu0 %v1937, 40
    %v2527 = vpop.permute.xlu0 %2526
    %v2530 = vsel %vm1942, %v2499, 0
    %2532 = vmatpush.msra.mxu0 0.0
    %2533 = vmatpush.msra.mxu0 0.0
    %2534 = vmatpush.msra.mxu0 0.0
    %2535 = vmatpush.msra.mxu0 0.0
    %2536 = vmatpush.msra.mxu0 0.0
    %2537 = vmatpush.msra.mxu0 0.0
    %2538 = vmatpush.msra.mxu0 0.0
    %2539 = vmatpush.msra.mxu0 0.0
    %2540 = vmatpush.msra.mxu0 0.0
    %2541 = vmatpush.msra.mxu0 0.0
    %2542 = vmatpush.msra.mxu0 0.0
    %2543 = vmatpush.msra.mxu0 0.0
    %2544 = vmatpush.msra.mxu0 0.0
    %2545 = vmatpush.msra.mxu0 0.0
    %2546 = vmatpush.msra.mxu0 0.0
    %2547 = vmatpush.msra.mxu0 %v2527
    %2548 = vmatmul.f32.gmra.mxu0 %v2530
    %v2549 = vpop.f32.mrf.mxu0
    %v2550 = vadd.f32 0.0, %v2549
    %2551 = vdwg.mxu0
    %s2552 = scalar_lea.vmem [#allocation11], 24
    %v2553 = vld [vmem:[%s2552] sm:$0xff]
    %v2555 = vsel %vm1942, %v2524, 0
    %v2558 = vsel %vm1942, %v2550, 0
    %2560 = vmatpush.msra.mxu0 0.0
    %2561 = vmatpush.msra.mxu0 0.0
    %2562 = vmatpush.msra.mxu0 0.0
    %2563 = vmatpush.msra.mxu0 0.0
    %2564 = vmatpush.msra.mxu0 0.0
    %2565 = vmatpush.msra.mxu0 0.0
    %2566 = vmatpush.msra.mxu0 0.0
    %2567 = vmatpush.msra.mxu0 0.0
    %2568 = vmatpush.msra.mxu0 0.0
    %2569 = vmatpush.msra.mxu0 0.0
    %2570 = vmatpush.msra.mxu0 0.0
    %2571 = vmatpush.msra.mxu0 0.0
    %2572 = vmatpush.msra.mxu0 0.0
    %2573 = vmatpush.msra.mxu0 0.0
    %2574 = vmatpush.msra.mxu0 0.0
    %2575 = vmatpush.msra.mxu0 %v2553
    %2576 = vmatmul.f32.gmra.mxu0 %v2555
    %v2577 = vpop.f32.mrf.mxu0
    %v2578 = vadd.f32 0.0, %v2577
    %2579 = vmatmul.f32.gmra.mxu0 %v2558
    %v2580 = vpop.f32.mrf.mxu0
    %v2581 = vadd.f32 0.0, %v2580
    %2582 = vdwg.mxu0
    %v2583 = vadd.f32 %v2420, %v2578
    %v2584 = vadd.f32 %v2421, %v2581
    %v2585 = vld [vmem:[%s10] sm:$0x1]
    %v2587 = vperm.slane %v2585, 0
    %v2589 = vadd.f32 %v2583, %v2587
    %v2590 = vadd.f32 %v2584, %v2587
    %v2591 = vld [vmem:[%s11] sm:$0xff]
    %v2592 = vld [vmem:[%s13] sm:$0x1]
    %v2594 = vperm.slane %v2592, 0
    %v2597 = vsel %vm1942, %v2589, 0
    %v2600 = vsel %vm1942, %v2590, 0
    %2602 = vmatpush.msra.mxu0 0.0
    %2603 = vmatpush.msra.mxu0 0.0
    %2604 = vmatpush.msra.mxu0 0.0
    %2605 = vmatpush.msra.mxu0 0.0
    %2606 = vmatpush.msra.mxu0 0.0
    %2607 = vmatpush.msra.mxu0 0.0
    %2608 = vmatpush.msra.mxu0 0.0
    %2609 = vmatpush.msra.mxu0 0.0
    %2610 = vmatpush.msra.mxu0 0.0
    %2611 = vmatpush.msra.mxu0 0.0
    %2612 = vmatpush.msra.mxu0 0.0
    %2613 = vmatpush.msra.mxu0 0.0
    %2614 = vmatpush.msra.mxu0 0.0
    %2615 = vmatpush.msra.mxu0 0.0
    %2616 = vmatpush.msra.mxu0 0.0
    %2617 = vmatpush.msra.mxu0 %v2591
    %2618 = vmatmul.f32.gmra.mxu0 %v2597
    %v2619 = vpop.f32.mrf.mxu0
    %v2620 = vadd.f32 %v2594, %v2619
    %2621 = vmatmul.f32.gmra.mxu0 %v2600
    %v2622 = vpop.f32.mrf.mxu0
    %v2623 = vadd.f32 %v2594, %v2622
    %2624 = vdwg.mxu0
    %v2625 = vld [vmem:[#allocation13] sm:$0xff]
    %v2626 = vld [vmem:[#allocation13 + $0x8] sm:$0xff]
    %v2627 = vld [vmem:[#allocation13 + $0x10] sm:$0xff]
    %v2628 = vld [vmem:[#allocation13 + $0x18] sm:$0xff]
    %v2629 = vld [vmem:[#allocation14] sm:$0xff]
    %v2630 = vld [vmem:[#allocation14 + $0x8] sm:$0xff]
    %v2631 = vld [vmem:[#allocation14 + $0x10] sm:$0xff]
    %v2632 = vld [vmem:[#allocation14 + $0x18] sm:$0xff]
    %v2633 = vld [vmem:[#allocation16] sm:$0xff]
    %v2634 = vld [vmem:[#allocation16 + $0x8] sm:$0xff]
    %v2635 = vld [vmem:[#allocation16 + $0x10] sm:$0xff]
    %v2636 = vld [vmem:[#allocation16 + $0x18] sm:$0xff]
    %v2637 = vld [vmem:[%s16] sm:$0x1]
    %2638 = vmatpush.msra.mxu0 0.0
    %2639 = vmatpush.msra.mxu0 0.0
    %2640 = vmatpush.msra.mxu0 0.0
    %2641 = vmatpush.msra.mxu0 0.0
    %2642 = vmatpush.msra.mxu0 0.0
    %2643 = vmatpush.msra.mxu0 0.0
    %2644 = vmatpush.msra.mxu0 0.0
    %2645 = vmatpush.msra.mxu0 0.0
    %2646 = vmatpush.msra.mxu0 0.0
    %2647 = vmatpush.msra.mxu0 0.0
    %2648 = vmatpush.msra.mxu0 0.0
    %2649 = vmatpush.msra.mxu0 0.0
    %2650 = vmatpush.msra.mxu0 %v2628
    %2651 = vmatpush.msra.mxu0 %v2627
    %2652 = vmatpush.msra.mxu0 %v2626
    %2653 = vmatpush.msra.mxu0 %v2625
    %2654 = vmatmul.f32.gmra.mxu0 %v256
    %v2655 = vpop.f32.mrf.mxu0
    %v2656 = vadd.f32 0.0, %v2655
    %2657 = vdwg.mxu0
    %v2659 = vrot.slane %v2656, 1
    %v2662 = vadd.f32 %v2620, %v2656
    %v2663 = vadd.f32 %v2623, %v2659
    %v2664 = vxor.u32 %v2662, 2147483648
    %v2665 = vxor.u32 %v2663, 2147483648
    %v2666 = vmul.f32 %v2664, 1.442695
    %v2667 = vpow.pop %v2666
    %v2668 = vmul.f32 %v2665, 1.442695
    %v2669 = vpow.pop %v2668
    %v2670 = vadd.f32 %v2667, 1.0
    %v2671 = vadd.f32 %v2669, 1.0
    %v2672 = vrcp.pop %v2670
    %v2673 = vmul.f32 %v2670, %v2672
    %v2674 = vsub.f32 1.0, %v2673
    %v2675 = vmul.f32 %v2672, %v2674
    %v2676 = vadd.f32 %v2672, %v2675
    %vm2677 = vweird.f32 %v2670
    %vm2678 = vweird.f32 %v2672
    %vm2679 = vmor %vm2677, %vm2678
    %v2680 = vsel %vm2679, %v2672, %v2676
    %v2681 = vand.u32 2147483647, %v2670
    %vm2682 = vcmp.eq.f32.partialorder %v2681, 8.507059e+37
    %v2683 = vand.u32 %v2670, 2147483648
    %v2684 = vor.u32 1.1754944e-38, %v2683
    %v2685 = vsel %vm2682, %v2684, %v2680
    %v2686 = vmul.f32 1.0, %v2685
    %v2687 = vrcp.pop %v2671
    %v2688 = vmul.f32 %v2671, %v2687
    %v2689 = vsub.f32 1.0, %v2688
    %v2690 = vmul.f32 %v2687, %v2689
    %v2691 = vadd.f32 %v2687, %v2690
    %vm2692 = vweird.f32 %v2671
    %vm2693 = vweird.f32 %v2687
    %vm2694 = vmor %vm2692, %vm2693
    %v2695 = vsel %vm2694, %v2687, %v2691
    %v2696 = vand.u32 2147483647, %v2671
    %vm2697 = vcmp.eq.f32.partialorder %v2696, 8.507059e+37
    %v2698 = vand.u32 %v2671, 2147483648
    %v2699 = vor.u32 1.1754944e-38, %v2698
    %v2700 = vsel %vm2697, %v2699, %v2695
    %v2701 = vmul.f32 1.0, %v2700
    %v2702 = vtanh.pop %v2662
    %v2703 = vtanh.pop %v2663
    %v2704 = vmul.f32 %v2686, 0.0
    %v2705 = vmul.f32 %v2701, 0.0
    %2708 = vrot.lane.b32.xlu0 %v2702, 64
    %v2709 = vpop.permute.xlu0 %2708
    %2710 = vrot.lane.b32.xlu0 %v2703, 64
    %v2711 = vpop.permute.xlu0 %2710
    %v2714 = vmul.f32 %v2686, %v2709
    %v2715 = vmul.f32 %v2701, %v2711
    %2718 = vrot.lane.b32.xlu0 %v2714, 32
    %v2719 = vpop.permute.xlu0 %2718
    %2720 = vrot.lane.b32.xlu0 %v2715, 32
    %v2721 = vpop.permute.xlu0 %2720
    %v2724 = vadd.f32 %v2704, %v2719
    %v2725 = vadd.f32 %v2705, %v2721
    %v2726 = vtanh.pop %v2724
    %v2727 = vtanh.pop %v2725
    %2730 = vrot.lane.b32.xlu0 %v2726, 64
    %v2731 = vpop.permute.xlu0 %2730
    %2732 = vrot.lane.b32.xlu0 %v2727, 64
    %v2733 = vpop.permute.xlu0 %2732
    %v2736 = vmul.f32 %v2686, %v2731
    %v2737 = vmul.f32 %v2701, %v2733
    %v2739 = vperm.slane %v2637, 0
    %v2743 = vrot.slane %v2737, 7
    %v2744 = vsel %vm364, %v2743, %v2736
    %2745 = vrot.lane.b32.xlu0 %v2744, 32
    %v2746 = vpop.permute.xlu0 %2745
    %v2747 = vsel %vm254, %v2746, 0
    %2749 = vmatpush.msra.mxu0 0.0
    %2750 = vmatpush.msra.mxu0 0.0
    %2751 = vmatpush.msra.mxu0 0.0
    %2752 = vmatpush.msra.mxu0 0.0
    %2753 = vmatpush.msra.mxu0 0.0
    %2754 = vmatpush.msra.mxu0 0.0
    %2755 = vmatpush.msra.mxu0 0.0
    %2756 = vmatpush.msra.mxu0 0.0
    %2757 = vmatpush.msra.mxu0 0.0
    %2758 = vmatpush.msra.mxu0 0.0
    %2759 = vmatpush.msra.mxu0 0.0
    %2760 = vmatpush.msra.mxu0 0.0
    %2761 = vmatpush.msra.mxu0 %v2632
    %2762 = vmatpush.msra.mxu0 %v2631
    %2763 = vmatpush.msra.mxu0 %v2630
    %2764 = vmatpush.msra.mxu0 %v2629
    %2765 = vmatmul.f32.gmra.mxu0 %v2747
    %v2766 = vpop.f32.mrf.mxu0
    %v2767 = vadd.f32 %v2739, %v2766
    %2768 = vdwg.mxu0
    %2769 = vmatpush.msra.mxu0 0.0
    %2770 = vmatpush.msra.mxu0 0.0
    %2771 = vmatpush.msra.mxu0 0.0
    %2772 = vmatpush.msra.mxu0 0.0
    %2773 = vmatpush.msra.mxu0 0.0
    %2774 = vmatpush.msra.mxu0 0.0
    %2775 = vmatpush.msra.mxu0 0.0
    %2776 = vmatpush.msra.mxu0 0.0
    %2777 = vmatpush.msra.mxu0 0.0
    %2778 = vmatpush.msra.mxu0 0.0
    %2779 = vmatpush.msra.mxu0 0.0
    %2780 = vmatpush.msra.mxu0 0.0
    %2781 = vmatpush.msra.mxu0 %v2636
    %2782 = vmatpush.msra.mxu0 %v2635
    %2783 = vmatpush.msra.mxu0 %v2634
    %2784 = vmatpush.msra.mxu0 %v2633
    %2785 = vmatmul.f32.gmra.mxu0 %v256
    %v2786 = vpop.f32.mrf.mxu0
    %v2787 = vadd.f32 0.0, %v2786
    %2788 = vdwg.mxu0
    %v2789 = vadd.f32 %v2767, %v2787
    %v2790 = vxor.u32 %v2789, 2147483648
    %v2791 = vmul.f32 %v2790, 1.442695
    %v2792 = vpow.pop %v2791
    %v2793 = vadd.f32 %v2792, 1.0
    %v2794 = vrcp.pop %v2793
    %v2795 = vmul.f32 %v2793, %v2794
    %v2796 = vsub.f32 1.0, %v2795
    %v2797 = vmul.f32 %v2794, %v2796
    %v2798 = vadd.f32 %v2794, %v2797
    %vm2799 = vweird.f32 %v2793
    %vm2800 = vweird.f32 %v2794
    %vm2801 = vmor %vm2799, %vm2800
    %v2802 = vsel %vm2801, %v2794, %v2798
    %v2803 = vand.u32 2147483647, %v2793
    %vm2804 = vcmp.eq.f32.partialorder %v2803, 8.507059e+37
    %v2805 = vand.u32 %v2793, 2147483648
    %v2806 = vor.u32 1.1754944e-38, %v2805
    %v2807 = vsel %vm2804, %v2806, %v2802
    %v2808 = vmul.f32 1.0, %v2807
    %v2809 = vtanh.pop %v2789
    %v2810 = vmul.f32 %v2808, 0.0
    %2812 = vrot.lane.b32.xlu0 %v2809, 64
    %v2813 = vpop.permute.xlu0 %2812
    %v2815 = vmul.f32 %v2808, %v2813
    %2817 = vrot.lane.b32.xlu0 %v2815, 32
    %v2818 = vpop.permute.xlu0 %2817
    %v2820 = vadd.f32 %v2810, %v2818
    %v2821 = vtanh.pop %v2820
    %2823 = vrot.lane.b32.xlu0 %v2821, 64
    %v2824 = vpop.permute.xlu0 %2823
    %v2826 = vmul.f32 %v2808, %v2824
    %2827 = vmatpush.msra.mxu0 0.0
    %2828 = vmatpush.msra.mxu0 0.0
    %2829 = vmatpush.msra.mxu0 0.0
    %2830 = vmatpush.msra.mxu0 0.0
    %2831 = vmatpush.msra.mxu0 0.0
    %2832 = vmatpush.msra.mxu0 0.0
    %2833 = vmatpush.msra.mxu0 0.0
    %2834 = vmatpush.msra.mxu0 0.0
    %2835 = vmatpush.msra.mxu0 0.0
    %2836 = vmatpush.msra.mxu0 0.0
    %2837 = vmatpush.msra.mxu0 0.0
    %2838 = vmatpush.msra.mxu0 0.0
    %2839 = vmatpush.msra.mxu0 %v2628
    %2840 = vmatpush.msra.mxu0 %v2627
    %2841 = vmatpush.msra.mxu0 %v2626
    %2842 = vmatpush.msra.mxu0 %v2625
    %2843 = vmatmul.f32.gmra.mxu0 %v2747
    %v2844 = vpop.f32.mrf.mxu0
    %v2845 = vadd.f32 0.0, %v2844
    %2846 = vdwg.mxu0
    %v2848 = vrot.slane %v2845, 7
    %v2851 = vadd.f32 %v2620, %v2848
    %v2852 = vadd.f32 %v2623, %v2845
    %v2853 = vxor.u32 %v2851, 2147483648
    %v2854 = vxor.u32 %v2852, 2147483648
    %v2855 = vmul.f32 %v2853, 1.442695
    %v2856 = vpow.pop %v2855
    %v2857 = vmul.f32 %v2854, 1.442695
    %v2858 = vpow.pop %v2857
    %v2859 = vadd.f32 %v2856, 1.0
    %v2860 = vadd.f32 %v2858, 1.0
    %v2861 = vrcp.pop %v2859
    %v2862 = vmul.f32 %v2859, %v2861
    %v2863 = vsub.f32 1.0, %v2862
    %v2864 = vmul.f32 %v2861, %v2863
    %v2865 = vadd.f32 %v2861, %v2864
    %vm2866 = vweird.f32 %v2859
    %vm2867 = vweird.f32 %v2861
    %vm2868 = vmor %vm2866, %vm2867
    %v2869 = vsel %vm2868, %v2861, %v2865
    %v2870 = vand.u32 2147483647, %v2859
    %vm2871 = vcmp.eq.f32.partialorder %v2870, 8.507059e+37
    %v2872 = vand.u32 %v2859, 2147483648
    %v2873 = vor.u32 1.1754944e-38, %v2872
    %v2874 = vsel %vm2871, %v2873, %v2869
    %v2875 = vmul.f32 1.0, %v2874
    %v2876 = vrcp.pop %v2860
    %v2877 = vmul.f32 %v2860, %v2876
    %v2878 = vsub.f32 1.0, %v2877
    %v2879 = vmul.f32 %v2876, %v2878
    %v2880 = vadd.f32 %v2876, %v2879
    %vm2881 = vweird.f32 %v2860
    %vm2882 = vweird.f32 %v2876
    %vm2883 = vmor %vm2881, %vm2882
    %v2884 = vsel %vm2883, %v2876, %v2880
    %v2885 = vand.u32 2147483647, %v2860
    %vm2886 = vcmp.eq.f32.partialorder %v2885, 8.507059e+37
    %v2887 = vand.u32 %v2860, 2147483648
    %v2888 = vor.u32 1.1754944e-38, %v2887
    %v2889 = vsel %vm2886, %v2888, %v2884
    %v2890 = vmul.f32 1.0, %v2889
    %v2891 = vtanh.pop %v2851
    %v2892 = vtanh.pop %v2852
    %v2895 = vrot.slane %v2724, 7
    %v2896 = vrot.slane %v2725, 7
    %v2899 = vmul.f32 %v2875, %v2895
    %v2900 = vmul.f32 %v2890, %v2896
    %2903 = vrot.lane.b32.xlu0 %v2891, 64
    %v2904 = vpop.permute.xlu0 %2903
    %2905 = vrot.lane.b32.xlu0 %v2892, 64
    %v2906 = vpop.permute.xlu0 %2905
    %v2909 = vmul.f32 %v2875, %v2904
    %v2910 = vmul.f32 %v2890, %v2906
    %2913 = vrot.lane.b32.xlu0 %v2909, 32
    %v2914 = vpop.permute.xlu0 %2913
    %2915 = vrot.lane.b32.xlu0 %v2910, 32
    %v2916 = vpop.permute.xlu0 %2915
    %v2919 = vadd.f32 %v2899, %v2914
    %v2920 = vadd.f32 %v2900, %v2916
    %v2921 = vtanh.pop %v2919
    %v2922 = vtanh.pop %v2920
    %2925 = vrot.lane.b32.xlu0 %v2921, 64
    %v2926 = vpop.permute.xlu0 %2925
    %2927 = vrot.lane.b32.xlu0 %v2922, 64
    %v2928 = vpop.permute.xlu0 %2927
    %v2931 = vmul.f32 %v2875, %v2926
    %v2932 = vmul.f32 %v2890, %v2928
    %v2935 = vrot.slane %v2931, 1
    %v2936 = vsel %vm364, %v2932, %v2935
    %2937 = vrot.lane.b32.xlu0 %v2936, 32
    %v2938 = vpop.permute.xlu0 %2937
    %v2939 = vsel %vm254, %v2938, 0
    %2941 = vmatpush.msra.mxu0 0.0
    %2942 = vmatpush.msra.mxu0 0.0
    %2943 = vmatpush.msra.mxu0 0.0
    %2944 = vmatpush.msra.mxu0 0.0
    %2945 = vmatpush.msra.mxu0 0.0
    %2946 = vmatpush.msra.mxu0 0.0
    %2947 = vmatpush.msra.mxu0 0.0
    %2948 = vmatpush.msra.mxu0 0.0
    %2949 = vmatpush.msra.mxu0 0.0
    %2950 = vmatpush.msra.mxu0 0.0
    %2951 = vmatpush.msra.mxu0 0.0
    %2952 = vmatpush.msra.mxu0 0.0
    %2953 = vmatpush.msra.mxu0 %v2632
    %2954 = vmatpush.msra.mxu0 %v2631
    %2955 = vmatpush.msra.mxu0 %v2630
    %2956 = vmatpush.msra.mxu0 %v2629
    %2957 = vmatmul.f32.gmra.mxu0 %v2939
    %v2958 = vpop.f32.mrf.mxu0
    %v2959 = vadd.f32 %v2739, %v2958
    %2960 = vdwg.mxu0
    %2962 = vrot.lane.b32.xlu0 %v2826, 32
    %v2963 = vpop.permute.xlu0 %2962
    %v2964 = vsel %vm254, %v2963, 0
    %2966 = vmatpush.msra.mxu0 0.0
    %2967 = vmatpush.msra.mxu0 0.0
    %2968 = vmatpush.msra.mxu0 0.0
    %2969 = vmatpush.msra.mxu0 0.0
    %2970 = vmatpush.msra.mxu0 0.0
    %2971 = vmatpush.msra.mxu0 0.0
    %2972 = vmatpush.msra.mxu0 0.0
    %2973 = vmatpush.msra.mxu0 0.0
    %2974 = vmatpush.msra.mxu0 0.0
    %2975 = vmatpush.msra.mxu0 0.0
    %2976 = vmatpush.msra.mxu0 0.0
    %2977 = vmatpush.msra.mxu0 0.0
    %2978 = vmatpush.msra.mxu0 %v2636
    %2979 = vmatpush.msra.mxu0 %v2635
    %2980 = vmatpush.msra.mxu0 %v2634
    %2981 = vmatpush.msra.mxu0 %v2633
    %2982 = vmatmul.f32.gmra.mxu0 %v2964
    %v2983 = vpop.f32.mrf.mxu0
    %v2984 = vadd.f32 0.0, %v2983
    %2985 = vdwg.mxu0
    %v2986 = vadd.f32 %v2959, %v2984
    %v2987 = vxor.u32 %v2986, 2147483648
    %v2988 = vmul.f32 %v2987, 1.442695
    %v2989 = vpow.pop %v2988
    %v2990 = vadd.f32 %v2989, 1.0
    %v2991 = vrcp.pop %v2990
    %v2992 = vmul.f32 %v2990, %v2991
    %v2993 = vsub.f32 1.0, %v2992
    %v2994 = vmul.f32 %v2991, %v2993
    %v2995 = vadd.f32 %v2991, %v2994
    %vm2996 = vweird.f32 %v2990
    %vm2997 = vweird.f32 %v2991
    %vm2998 = vmor %vm2996, %vm2997
    %v2999 = vsel %vm2998, %v2991, %v2995
    %v3000 = vand.u32 2147483647, %v2990
    %vm3001 = vcmp.eq.f32.partialorder %v3000, 8.507059e+37
    %v3002 = vand.u32 %v2990, 2147483648
    %v3003 = vor.u32 1.1754944e-38, %v3002
    %v3004 = vsel %vm3001, %v3003, %v2999
    %v3005 = vmul.f32 1.0, %v3004
    %v3006 = vtanh.pop %v2986
    %v3007 = vmul.f32 %v3005, %v2820
    %3009 = vrot.lane.b32.xlu0 %v3006, 64
    %v3010 = vpop.permute.xlu0 %3009
    %v3012 = vmul.f32 %v3005, %v3010
    %3014 = vrot.lane.b32.xlu0 %v3012, 32
    %v3015 = vpop.permute.xlu0 %3014
    %v3017 = vadd.f32 %v3007, %v3015
    %v3018 = vtanh.pop %v3017
    %3020 = vrot.lane.b32.xlu0 %v3018, 64
    %v3021 = vpop.permute.xlu0 %3020
    %v3023 = vmul.f32 %v3005, %v3021
    %3024 = vmatpush.msra.mxu0 0.0
    %3025 = vmatpush.msra.mxu0 0.0
    %3026 = vmatpush.msra.mxu0 0.0
    %3027 = vmatpush.msra.mxu0 0.0
    %3028 = vmatpush.msra.mxu0 0.0
    %3029 = vmatpush.msra.mxu0 0.0
    %3030 = vmatpush.msra.mxu0 0.0
    %3031 = vmatpush.msra.mxu0 0.0
    %3032 = vmatpush.msra.mxu0 0.0
    %3033 = vmatpush.msra.mxu0 0.0
    %3034 = vmatpush.msra.mxu0 0.0
    %3035 = vmatpush.msra.mxu0 0.0
    %3036 = vmatpush.msra.mxu0 %v2628
    %3037 = vmatpush.msra.mxu0 %v2627
    %3038 = vmatpush.msra.mxu0 %v2626
    %3039 = vmatpush.msra.mxu0 %v2625
    %3040 = vmatmul.f32.gmra.mxu0 %v2939
    %v3041 = vpop.f32.mrf.mxu0
    %v3042 = vadd.f32 0.0, %v3041
    %3043 = vdwg.mxu0
    %v3045 = vrot.slane %v3042, 6
    %v3046 = vrot.slane %v3042, 7
    %v3049 = vadd.f32 %v2620, %v3045
    %v3050 = vadd.f32 %v2623, %v3046
    %v3051 = vxor.u32 %v3049, 2147483648
    %v3052 = vxor.u32 %v3050, 2147483648
    %v3053 = vmul.f32 %v3051, 1.442695
    %v3054 = vpow.pop %v3053
    %v3055 = vmul.f32 %v3052, 1.442695
    %v3056 = vpow.pop %v3055
    %v3057 = vadd.f32 %v3054, 1.0
    %v3058 = vadd.f32 %v3056, 1.0
    %v3059 = vrcp.pop %v3057
    %v3060 = vmul.f32 %v3057, %v3059
    %v3061 = vsub.f32 1.0, %v3060
    %v3062 = vmul.f32 %v3059, %v3061
    %v3063 = vadd.f32 %v3059, %v3062
    %vm3064 = vweird.f32 %v3057
    %vm3065 = vweird.f32 %v3059
    %vm3066 = vmor %vm3064, %vm3065
    %v3067 = vsel %vm3066, %v3059, %v3063
    %v3068 = vand.u32 2147483647, %v3057
    %vm3069 = vcmp.eq.f32.partialorder %v3068, 8.507059e+37
    %v3070 = vand.u32 %v3057, 2147483648
    %v3071 = vor.u32 1.1754944e-38, %v3070
    %v3072 = vsel %vm3069, %v3071, %v3067
    %v3073 = vmul.f32 1.0, %v3072
    %v3074 = vrcp.pop %v3058
    %v3075 = vmul.f32 %v3058, %v3074
    %v3076 = vsub.f32 1.0, %v3075
    %v3077 = vmul.f32 %v3074, %v3076
    %v3078 = vadd.f32 %v3074, %v3077
    %vm3079 = vweird.f32 %v3058
    %vm3080 = vweird.f32 %v3074
    %vm3081 = vmor %vm3079, %vm3080
    %v3082 = vsel %vm3081, %v3074, %v3078
    %v3083 = vand.u32 2147483647, %v3058
    %vm3084 = vcmp.eq.f32.partialorder %v3083, 8.507059e+37
    %v3085 = vand.u32 %v3058, 2147483648
    %v3086 = vor.u32 1.1754944e-38, %v3085
    %v3087 = vsel %vm3084, %v3086, %v3082
    %v3088 = vmul.f32 1.0, %v3087
    %v3089 = vtanh.pop %v3049
    %v3090 = vtanh.pop %v3050
    %v3093 = vrot.slane %v2919, 7
    %v3094 = vrot.slane %v2920, 7
    %v3097 = vmul.f32 %v3073, %v3093
    %v3098 = vmul.f32 %v3088, %v3094
    %3101 = vrot.lane.b32.xlu0 %v3089, 64
    %v3102 = vpop.permute.xlu0 %3101
    %3103 = vrot.lane.b32.xlu0 %v3090, 64
    %v3104 = vpop.permute.xlu0 %3103
    %v3107 = vmul.f32 %v3073, %v3102
    %v3108 = vmul.f32 %v3088, %v3104
    %3111 = vrot.lane.b32.xlu0 %v3107, 32
    %v3112 = vpop.permute.xlu0 %3111
    %3113 = vrot.lane.b32.xlu0 %v3108, 32
    %v3114 = vpop.permute.xlu0 %3113
    %v3117 = vadd.f32 %v3097, %v3112
    %v3118 = vadd.f32 %v3098, %v3114
    %v3119 = vtanh.pop %v3117
    %v3120 = vtanh.pop %v3118
    %3123 = vrot.lane.b32.xlu0 %v3119, 64
    %v3124 = vpop.permute.xlu0 %3123
    %3125 = vrot.lane.b32.xlu0 %v3120, 64
    %v3126 = vpop.permute.xlu0 %3125
    %v3129 = vmul.f32 %v3073, %v3124
    %v3130 = vmul.f32 %v3088, %v3126
    %v3133 = vrot.slane %v3129, 2
    %v3134 = vrot.slane %v3130, 1
    %v3135 = vsel %vm364, %v3134, %v3133
    %3136 = vrot.lane.b32.xlu0 %v3135, 32
    %v3137 = vpop.permute.xlu0 %3136
    %v3138 = vsel %vm254, %v3137, 0
    %3140 = vmatpush.msra.mxu0 0.0
    %3141 = vmatpush.msra.mxu0 0.0
    %3142 = vmatpush.msra.mxu0 0.0
    %3143 = vmatpush.msra.mxu0 0.0
    %3144 = vmatpush.msra.mxu0 0.0
    %3145 = vmatpush.msra.mxu0 0.0
    %3146 = vmatpush.msra.mxu0 0.0
    %3147 = vmatpush.msra.mxu0 0.0
    %3148 = vmatpush.msra.mxu0 0.0
    %3149 = vmatpush.msra.mxu0 0.0
    %3150 = vmatpush.msra.mxu0 0.0
    %3151 = vmatpush.msra.mxu0 0.0
    %3152 = vmatpush.msra.mxu0 %v2632
    %3153 = vmatpush.msra.mxu0 %v2631
    %3154 = vmatpush.msra.mxu0 %v2630
    %3155 = vmatpush.msra.mxu0 %v2629
    %3156 = vmatmul.f32.gmra.mxu0 %v3138
    %v3157 = vpop.f32.mrf.mxu0
    %v3158 = vadd.f32 %v2739, %v3157
    %3159 = vdwg.mxu0
    %3161 = vrot.lane.b32.xlu0 %v3023, 32
    %v3162 = vpop.permute.xlu0 %3161
    %v3163 = vsel %vm254, %v3162, 0
    %3165 = vmatpush.msra.mxu0 0.0
    %3166 = vmatpush.msra.mxu0 0.0
    %3167 = vmatpush.msra.mxu0 0.0
    %3168 = vmatpush.msra.mxu0 0.0
    %3169 = vmatpush.msra.mxu0 0.0
    %3170 = vmatpush.msra.mxu0 0.0
    %3171 = vmatpush.msra.mxu0 0.0
    %3172 = vmatpush.msra.mxu0 0.0
    %3173 = vmatpush.msra.mxu0 0.0
    %3174 = vmatpush.msra.mxu0 0.0
    %3175 = vmatpush.msra.mxu0 0.0
    %3176 = vmatpush.msra.mxu0 0.0
    %3177 = vmatpush.msra.mxu0 %v2636
    %3178 = vmatpush.msra.mxu0 %v2635
    %3179 = vmatpush.msra.mxu0 %v2634
    %3180 = vmatpush.msra.mxu0 %v2633
    %3181 = vmatmul.f32.gmra.mxu0 %v3163
    %v3182 = vpop.f32.mrf.mxu0
    %v3183 = vadd.f32 0.0, %v3182
    %3184 = vdwg.mxu0
    %v3185 = vadd.f32 %v3158, %v3183
    %v3186 = vxor.u32 %v3185, 2147483648
    %v3187 = vmul.f32 %v3186, 1.442695
    %v3188 = vpow.pop %v3187
    %v3189 = vadd.f32 %v3188, 1.0
    %v3190 = vrcp.pop %v3189
    %v3191 = vmul.f32 %v3189, %v3190
    %v3192 = vsub.f32 1.0, %v3191
    %v3193 = vmul.f32 %v3190, %v3192
    %v3194 = vadd.f32 %v3190, %v3193
    %vm3195 = vweird.f32 %v3189
    %vm3196 = vweird.f32 %v3190
    %vm3197 = vmor %vm3195, %vm3196
    %v3198 = vsel %vm3197, %v3190, %v3194
    %v3199 = vand.u32 2147483647, %v3189
    %vm3200 = vcmp.eq.f32.partialorder %v3199, 8.507059e+37
    %v3201 = vand.u32 %v3189, 2147483648
    %v3202 = vor.u32 1.1754944e-38, %v3201
    %v3203 = vsel %vm3200, %v3202, %v3198
    %v3204 = vmul.f32 1.0, %v3203
    %v3205 = vtanh.pop %v3185
    %v3206 = vmul.f32 %v3204, %v3017
    %3208 = vrot.lane.b32.xlu0 %v3205, 64
    %v3209 = vpop.permute.xlu0 %3208
    %v3211 = vmul.f32 %v3204, %v3209
    %3213 = vrot.lane.b32.xlu0 %v3211, 32
    %v3214 = vpop.permute.xlu0 %3213
    %v3216 = vadd.f32 %v3206, %v3214
    %v3217 = vtanh.pop %v3216
    %3219 = vrot.lane.b32.xlu0 %v3217, 64
    %v3220 = vpop.permute.xlu0 %3219
    %v3222 = vmul.f32 %v3204, %v3220
    %3223 = vmatpush.msra.mxu0 0.0
    %3224 = vmatpush.msra.mxu0 0.0
    %3225 = vmatpush.msra.mxu0 0.0
    %3226 = vmatpush.msra.mxu0 0.0
    %3227 = vmatpush.msra.mxu0 0.0
    %3228 = vmatpush.msra.mxu0 0.0
    %3229 = vmatpush.msra.mxu0 0.0
    %3230 = vmatpush.msra.mxu0 0.0
    %3231 = vmatpush.msra.mxu0 0.0
    %3232 = vmatpush.msra.mxu0 0.0
    %3233 = vmatpush.msra.mxu0 0.0
    %3234 = vmatpush.msra.mxu0 0.0
    %3235 = vmatpush.msra.mxu0 %v2628
    %3236 = vmatpush.msra.mxu0 %v2627
    %3237 = vmatpush.msra.mxu0 %v2626
    %3238 = vmatpush.msra.mxu0 %v2625
    %3239 = vmatmul.f32.gmra.mxu0 %v3138
    %v3240 = vpop.f32.mrf.mxu0
    %v3241 = vadd.f32 0.0, %v3240
    %3242 = vdwg.mxu0
    %v3244 = vrot.slane %v3241, 5
    %v3245 = vrot.slane %v3241, 6
    %v3248 = vadd.f32 %v2620, %v3244
    %v3249 = vadd.f32 %v2623, %v3245
    %v3250 = vxor.u32 %v3248, 2147483648
    %v3251 = vxor.u32 %v3249, 2147483648
    %v3252 = vmul.f32 %v3250, 1.442695
    %v3253 = vpow.pop %v3252
    %v3254 = vmul.f32 %v3251, 1.442695
    %v3255 = vpow.pop %v3254
    %v3256 = vadd.f32 %v3253, 1.0
    %v3257 = vadd.f32 %v3255, 1.0
    %v3258 = vrcp.pop %v3256
    %v3259 = vmul.f32 %v3256, %v3258
    %v3260 = vsub.f32 1.0, %v3259
    %v3261 = vmul.f32 %v3258, %v3260
    %v3262 = vadd.f32 %v3258, %v3261
    %vm3263 = vweird.f32 %v3256
    %vm3264 = vweird.f32 %v3258
    %vm3265 = vmor %vm3263, %vm3264
    %v3266 = vsel %vm3265, %v3258, %v3262
    %v3267 = vand.u32 2147483647, %v3256
    %vm3268 = vcmp.eq.f32.partialorder %v3267, 8.507059e+37
    %v3269 = vand.u32 %v3256, 2147483648
    %v3270 = vor.u32 1.1754944e-38, %v3269
    %v3271 = vsel %vm3268, %v3270, %v3266
    %v3272 = vmul.f32 1.0, %v3271
    %v3273 = vrcp.pop %v3257
    %v3274 = vmul.f32 %v3257, %v3273
    %v3275 = vsub.f32 1.0, %v3274
    %v3276 = vmul.f32 %v3273, %v3275
    %v3277 = vadd.f32 %v3273, %v3276
    %vm3278 = vweird.f32 %v3257
    %vm3279 = vweird.f32 %v3273
    %vm3280 = vmor %vm3278, %vm3279
    %v3281 = vsel %vm3280, %v3273, %v3277
    %v3282 = vand.u32 2147483647, %v3257
    %vm3283 = vcmp.eq.f32.partialorder %v3282, 8.507059e+37
    %v3284 = vand.u32 %v3257, 2147483648
    %v3285 = vor.u32 1.1754944e-38, %v3284
    %v3286 = vsel %vm3283, %v3285, %v3281
    %v3287 = vmul.f32 1.0, %v3286
    %v3288 = vtanh.pop %v3248
    %v3289 = vtanh.pop %v3249
    %v3292 = vrot.slane %v3117, 7
    %v3293 = vrot.slane %v3118, 7
    %v3296 = vmul.f32 %v3272, %v3292
    %v3297 = vmul.f32 %v3287, %v3293
    %3300 = vrot.lane.b32.xlu0 %v3288, 64
    %v3301 = vpop.permute.xlu0 %3300
    %3302 = vrot.lane.b32.xlu0 %v3289, 64
    %v3303 = vpop.permute.xlu0 %3302
    %v3306 = vmul.f32 %v3272, %v3301
    %v3307 = vmul.f32 %v3287, %v3303
    %3310 = vrot.lane.b32.xlu0 %v3306, 32
    %v3311 = vpop.permute.xlu0 %3310
    %3312 = vrot.lane.b32.xlu0 %v3307, 32
    %v3313 = vpop.permute.xlu0 %3312
    %v3316 = vadd.f32 %v3296, %v3311
    %v3317 = vadd.f32 %v3297, %v3313
    %v3318 = vtanh.pop %v3316
    %v3319 = vtanh.pop %v3317
    %3322 = vrot.lane.b32.xlu0 %v3318, 64
    %v3323 = vpop.permute.xlu0 %3322
    %3324 = vrot.lane.b32.xlu0 %v3319, 64
    %v3325 = vpop.permute.xlu0 %3324
    %v3328 = vmul.f32 %v3272, %v3323
    %v3329 = vmul.f32 %v3287, %v3325
    %v3332 = vrot.slane %v3328, 3
    %v3333 = vrot.slane %v3329, 2
    %v3334 = vsel %vm364, %v3333, %v3332
    %3335 = vrot.lane.b32.xlu0 %v3334, 32
    %v3336 = vpop.permute.xlu0 %3335
    %v3337 = vsel %vm254, %v3336, 0
    %3339 = vmatpush.msra.mxu0 0.0
    %3340 = vmatpush.msra.mxu0 0.0
    %3341 = vmatpush.msra.mxu0 0.0
    %3342 = vmatpush.msra.mxu0 0.0
    %3343 = vmatpush.msra.mxu0 0.0
    %3344 = vmatpush.msra.mxu0 0.0
    %3345 = vmatpush.msra.mxu0 0.0
    %3346 = vmatpush.msra.mxu0 0.0
    %3347 = vmatpush.msra.mxu0 0.0
    %3348 = vmatpush.msra.mxu0 0.0
    %3349 = vmatpush.msra.mxu0 0.0
    %3350 = vmatpush.msra.mxu0 0.0
    %3351 = vmatpush.msra.mxu0 %v2632
    %3352 = vmatpush.msra.mxu0 %v2631
    %3353 = vmatpush.msra.mxu0 %v2630
    %3354 = vmatpush.msra.mxu0 %v2629
    %3355 = vmatmul.f32.gmra.mxu0 %v3337
    %v3356 = vpop.f32.mrf.mxu0
    %v3357 = vadd.f32 %v2739, %v3356
    %3358 = vdwg.mxu0
    %3360 = vrot.lane.b32.xlu0 %v3222, 32
    %v3361 = vpop.permute.xlu0 %3360
    %v3362 = vsel %vm254, %v3361, 0
    %3364 = vmatpush.msra.mxu0 0.0
    %3365 = vmatpush.msra.mxu0 0.0
    %3366 = vmatpush.msra.mxu0 0.0
    %3367 = vmatpush.msra.mxu0 0.0
    %3368 = vmatpush.msra.mxu0 0.0
    %3369 = vmatpush.msra.mxu0 0.0
    %3370 = vmatpush.msra.mxu0 0.0
    %3371 = vmatpush.msra.mxu0 0.0
    %3372 = vmatpush.msra.mxu0 0.0
    %3373 = vmatpush.msra.mxu0 0.0
    %3374 = vmatpush.msra.mxu0 0.0
    %3375 = vmatpush.msra.mxu0 0.0
    %3376 = vmatpush.msra.mxu0 %v2636
    %3377 = vmatpush.msra.mxu0 %v2635
    %3378 = vmatpush.msra.mxu0 %v2634
    %3379 = vmatpush.msra.mxu0 %v2633
    %3380 = vmatmul.f32.gmra.mxu0 %v3362
    %v3381 = vpop.f32.mrf.mxu0
    %v3382 = vadd.f32 0.0, %v3381
    %3383 = vdwg.mxu0
    %v3384 = vadd.f32 %v3357, %v3382
    %v3385 = vxor.u32 %v3384, 2147483648
    %v3386 = vmul.f32 %v3385, 1.442695
    %v3387 = vpow.pop %v3386
    %v3388 = vadd.f32 %v3387, 1.0
    %v3389 = vrcp.pop %v3388
    %v3390 = vmul.f32 %v3388, %v3389
    %v3391 = vsub.f32 1.0, %v3390
    %v3392 = vmul.f32 %v3389, %v3391
    %v3393 = vadd.f32 %v3389, %v3392
    %vm3394 = vweird.f32 %v3388
    %vm3395 = vweird.f32 %v3389
    %vm3396 = vmor %vm3394, %vm3395
    %v3397 = vsel %vm3396, %v3389, %v3393
    %v3398 = vand.u32 2147483647, %v3388
    %vm3399 = vcmp.eq.f32.partialorder %v3398, 8.507059e+37
    %v3400 = vand.u32 %v3388, 2147483648
    %v3401 = vor.u32 1.1754944e-38, %v3400
    %v3402 = vsel %vm3399, %v3401, %v3397
    %v3403 = vmul.f32 1.0, %v3402
    %v3404 = vtanh.pop %v3384
    %v3405 = vmul.f32 %v3403, %v3216
    %3407 = vrot.lane.b32.xlu0 %v3404, 64
    %v3408 = vpop.permute.xlu0 %3407
    %v3410 = vmul.f32 %v3403, %v3408
    %3412 = vrot.lane.b32.xlu0 %v3410, 32
    %v3413 = vpop.permute.xlu0 %3412
    %v3415 = vadd.f32 %v3405, %v3413
    %v3416 = vtanh.pop %v3415
    %3418 = vrot.lane.b32.xlu0 %v3416, 64
    %v3419 = vpop.permute.xlu0 %3418
    %v3421 = vmul.f32 %v3403, %v3419
    %3422 = vmatpush.msra.mxu0 0.0
    %3423 = vmatpush.msra.mxu0 0.0
    %3424 = vmatpush.msra.mxu0 0.0
    %3425 = vmatpush.msra.mxu0 0.0
    %3426 = vmatpush.msra.mxu0 0.0
    %3427 = vmatpush.msra.mxu0 0.0
    %3428 = vmatpush.msra.mxu0 0.0
    %3429 = vmatpush.msra.mxu0 0.0
    %3430 = vmatpush.msra.mxu0 0.0
    %3431 = vmatpush.msra.mxu0 0.0
    %3432 = vmatpush.msra.mxu0 0.0
    %3433 = vmatpush.msra.mxu0 0.0
    %3434 = vmatpush.msra.mxu0 %v2628
    %3435 = vmatpush.msra.mxu0 %v2627
    %3436 = vmatpush.msra.mxu0 %v2626
    %3437 = vmatpush.msra.mxu0 %v2625
    %3438 = vmatmul.f32.gmra.mxu0 %v3337
    %v3439 = vpop.f32.mrf.mxu0
    %v3440 = vadd.f32 0.0, %v3439
    %3441 = vdwg.mxu0
    %v3443 = vrot.slane %v3440, 4
    %v3444 = vrot.slane %v3440, 5
    %v3447 = vadd.f32 %v2620, %v3443
    %v3448 = vadd.f32 %v2623, %v3444
    %v3449 = vxor.u32 %v3447, 2147483648
    %v3450 = vxor.u32 %v3448, 2147483648
    %v3451 = vmul.f32 %v3449, 1.442695
    %v3452 = vpow.pop %v3451
    %v3453 = vmul.f32 %v3450, 1.442695
    %v3454 = vpow.pop %v3453
    %v3455 = vadd.f32 %v3452, 1.0
    %v3456 = vadd.f32 %v3454, 1.0
    %v3457 = vrcp.pop %v3455
    %v3458 = vmul.f32 %v3455, %v3457
    %v3459 = vsub.f32 1.0, %v3458
    %v3460 = vmul.f32 %v3457, %v3459
    %v3461 = vadd.f32 %v3457, %v3460
    %vm3462 = vweird.f32 %v3455
    %vm3463 = vweird.f32 %v3457
    %vm3464 = vmor %vm3462, %vm3463
    %v3465 = vsel %vm3464, %v3457, %v3461
    %v3466 = vand.u32 2147483647, %v3455
    %vm3467 = vcmp.eq.f32.partialorder %v3466, 8.507059e+37
    %v3468 = vand.u32 %v3455, 2147483648
    %v3469 = vor.u32 1.1754944e-38, %v3468
    %v3470 = vsel %vm3467, %v3469, %v3465
    %v3471 = vmul.f32 1.0, %v3470
    %v3472 = vrcp.pop %v3456
    %v3473 = vmul.f32 %v3456, %v3472
    %v3474 = vsub.f32 1.0, %v3473
    %v3475 = vmul.f32 %v3472, %v3474
    %v3476 = vadd.f32 %v3472, %v3475
    %vm3477 = vweird.f32 %v3456
    %vm3478 = vweird.f32 %v3472
    %vm3479 = vmor %vm3477, %vm3478
    %v3480 = vsel %vm3479, %v3472, %v3476
    %v3481 = vand.u32 2147483647, %v3456
    %vm3482 = vcmp.eq.f32.partialorder %v3481, 8.507059e+37
    %v3483 = vand.u32 %v3456, 2147483648
    %v3484 = vor.u32 1.1754944e-38, %v3483
    %v3485 = vsel %vm3482, %v3484, %v3480
    %v3486 = vmul.f32 1.0, %v3485
    %v3487 = vtanh.pop %v3447
    %v3488 = vtanh.pop %v3448
    %v3491 = vrot.slane %v3316, 7
    %v3492 = vrot.slane %v3317, 7
    %v3495 = vmul.f32 %v3471, %v3491
    %v3496 = vmul.f32 %v3486, %v3492
    %3499 = vrot.lane.b32.xlu0 %v3487, 64
    %v3500 = vpop.permute.xlu0 %3499
    %3501 = vrot.lane.b32.xlu0 %v3488, 64
    %v3502 = vpop.permute.xlu0 %3501
    %v3505 = vmul.f32 %v3471, %v3500
    %v3506 = vmul.f32 %v3486, %v3502
    %3509 = vrot.lane.b32.xlu0 %v3505, 32
    %v3510 = vpop.permute.xlu0 %3509
    %3511 = vrot.lane.b32.xlu0 %v3506, 32
    %v3512 = vpop.permute.xlu0 %3511
    %v3515 = vadd.f32 %v3495, %v3510
    %v3516 = vadd.f32 %v3496, %v3512
    %v3517 = vtanh.pop %v3515
    %v3518 = vtanh.pop %v3516
    %3521 = vrot.lane.b32.xlu0 %v3517, 64
    %v3522 = vpop.permute.xlu0 %3521
    %3523 = vrot.lane.b32.xlu0 %v3518, 64
    %v3524 = vpop.permute.xlu0 %3523
    %v3527 = vmul.f32 %v3471, %v3522
    %v3528 = vmul.f32 %v3486, %v3524
    %v3531 = vrot.slane %v3527, 4
    %v3532 = vrot.slane %v3528, 3
    %v3533 = vsel %vm364, %v3532, %v3531
    %3534 = vrot.lane.b32.xlu0 %v3533, 32
    %v3535 = vpop.permute.xlu0 %3534
    %v3536 = vsel %vm254, %v3535, 0
    %3538 = vmatpush.msra.mxu0 0.0
    %3539 = vmatpush.msra.mxu0 0.0
    %3540 = vmatpush.msra.mxu0 0.0
    %3541 = vmatpush.msra.mxu0 0.0
    %3542 = vmatpush.msra.mxu0 0.0
    %3543 = vmatpush.msra.mxu0 0.0
    %3544 = vmatpush.msra.mxu0 0.0
    %3545 = vmatpush.msra.mxu0 0.0
    %3546 = vmatpush.msra.mxu0 0.0
    %3547 = vmatpush.msra.mxu0 0.0
    %3548 = vmatpush.msra.mxu0 0.0
    %3549 = vmatpush.msra.mxu0 0.0
    %3550 = vmatpush.msra.mxu0 %v2632
    %3551 = vmatpush.msra.mxu0 %v2631
    %3552 = vmatpush.msra.mxu0 %v2630
    %3553 = vmatpush.msra.mxu0 %v2629
    %3554 = vmatmul.f32.gmra.mxu0 %v3536
    %v3555 = vpop.f32.mrf.mxu0
    %v3556 = vadd.f32 %v2739, %v3555
    %3557 = vdwg.mxu0
    %3559 = vrot.lane.b32.xlu0 %v3421, 32
    %v3560 = vpop.permute.xlu0 %3559
    %v3561 = vsel %vm254, %v3560, 0
    %3563 = vmatpush.msra.mxu0 0.0
    %3564 = vmatpush.msra.mxu0 0.0
    %3565 = vmatpush.msra.mxu0 0.0
    %3566 = vmatpush.msra.mxu0 0.0
    %3567 = vmatpush.msra.mxu0 0.0
    %3568 = vmatpush.msra.mxu0 0.0
    %3569 = vmatpush.msra.mxu0 0.0
    %3570 = vmatpush.msra.mxu0 0.0
    %3571 = vmatpush.msra.mxu0 0.0
    %3572 = vmatpush.msra.mxu0 0.0
    %3573 = vmatpush.msra.mxu0 0.0
    %3574 = vmatpush.msra.mxu0 0.0
    %3575 = vmatpush.msra.mxu0 %v2636
    %3576 = vmatpush.msra.mxu0 %v2635
    %3577 = vmatpush.msra.mxu0 %v2634
    %3578 = vmatpush.msra.mxu0 %v2633
    %3579 = vmatmul.f32.gmra.mxu0 %v3561
    %v3580 = vpop.f32.mrf.mxu0
    %v3581 = vadd.f32 0.0, %v3580
    %3582 = vdwg.mxu0
    %v3583 = vadd.f32 %v3556, %v3581
    %v3584 = vxor.u32 %v3583, 2147483648
    %v3585 = vmul.f32 %v3584, 1.442695
    %v3586 = vpow.pop %v3585
    %v3587 = vadd.f32 %v3586, 1.0
    %v3588 = vrcp.pop %v3587
    %v3589 = vmul.f32 %v3587, %v3588
    %v3590 = vsub.f32 1.0, %v3589
    %v3591 = vmul.f32 %v3588, %v3590
    %v3592 = vadd.f32 %v3588, %v3591
    %vm3593 = vweird.f32 %v3587
    %vm3594 = vweird.f32 %v3588
    %vm3595 = vmor %vm3593, %vm3594
    %v3596 = vsel %vm3595, %v3588, %v3592
    %v3597 = vand.u32 2147483647, %v3587
    %vm3598 = vcmp.eq.f32.partialorder %v3597, 8.507059e+37
    %v3599 = vand.u32 %v3587, 2147483648
    %v3600 = vor.u32 1.1754944e-38, %v3599
    %v3601 = vsel %vm3598, %v3600, %v3596
    %v3602 = vmul.f32 1.0, %v3601
    %v3603 = vtanh.pop %v3583
    %v3604 = vmul.f32 %v3602, %v3415
    %3606 = vrot.lane.b32.xlu0 %v3603, 64
    %v3607 = vpop.permute.xlu0 %3606
    %v3609 = vmul.f32 %v3602, %v3607
    %3611 = vrot.lane.b32.xlu0 %v3609, 32
    %v3612 = vpop.permute.xlu0 %3611
    %v3614 = vadd.f32 %v3604, %v3612
    %v3615 = vtanh.pop %v3614
    %3617 = vrot.lane.b32.xlu0 %v3615, 64
    %v3618 = vpop.permute.xlu0 %3617
    %v3620 = vmul.f32 %v3602, %v3618
    %3621 = vmatpush.msra.mxu0 0.0
    %3622 = vmatpush.msra.mxu0 0.0
    %3623 = vmatpush.msra.mxu0 0.0
    %3624 = vmatpush.msra.mxu0 0.0
    %3625 = vmatpush.msra.mxu0 0.0
    %3626 = vmatpush.msra.mxu0 0.0
    %3627 = vmatpush.msra.mxu0 0.0
    %3628 = vmatpush.msra.mxu0 0.0
    %3629 = vmatpush.msra.mxu0 0.0
    %3630 = vmatpush.msra.mxu0 0.0
    %3631 = vmatpush.msra.mxu0 0.0
    %3632 = vmatpush.msra.mxu0 0.0
    %3633 = vmatpush.msra.mxu0 %v2628
    %3634 = vmatpush.msra.mxu0 %v2627
    %3635 = vmatpush.msra.mxu0 %v2626
    %3636 = vmatpush.msra.mxu0 %v2625
    %3637 = vmatmul.f32.gmra.mxu0 %v3536
    %v3638 = vpop.f32.mrf.mxu0
    %v3639 = vadd.f32 0.0, %v3638
    %3640 = vdwg.mxu0
    %v3642 = vrot.slane %v3639, 3
    %v3643 = vrot.slane %v3639, 4
    %v3646 = vadd.f32 %v2620, %v3642
    %v3647 = vadd.f32 %v2623, %v3643
    %v3648 = vxor.u32 %v3646, 2147483648
    %v3649 = vxor.u32 %v3647, 2147483648
    %v3650 = vmul.f32 %v3648, 1.442695
    %v3651 = vpow.pop %v3650
    %v3652 = vmul.f32 %v3649, 1.442695
    %v3653 = vpow.pop %v3652
    %v3654 = vadd.f32 %v3651, 1.0
    %v3655 = vadd.f32 %v3653, 1.0
    %v3656 = vrcp.pop %v3654
    %v3657 = vmul.f32 %v3654, %v3656
    %v3658 = vsub.f32 1.0, %v3657
    %v3659 = vmul.f32 %v3656, %v3658
    %v3660 = vadd.f32 %v3656, %v3659
    %vm3661 = vweird.f32 %v3654
    %vm3662 = vweird.f32 %v3656
    %vm3663 = vmor %vm3661, %vm3662
    %v3664 = vsel %vm3663, %v3656, %v3660
    %v3665 = vand.u32 2147483647, %v3654
    %vm3666 = vcmp.eq.f32.partialorder %v3665, 8.507059e+37
    %v3667 = vand.u32 %v3654, 2147483648
    %v3668 = vor.u32 1.1754944e-38, %v3667
    %v3669 = vsel %vm3666, %v3668, %v3664
    %v3670 = vmul.f32 1.0, %v3669
    %v3671 = vrcp.pop %v3655
    %v3672 = vmul.f32 %v3655, %v3671
    %v3673 = vsub.f32 1.0, %v3672
    %v3674 = vmul.f32 %v3671, %v3673
    %v3675 = vadd.f32 %v3671, %v3674
    %vm3676 = vweird.f32 %v3655
    %vm3677 = vweird.f32 %v3671
    %vm3678 = vmor %vm3676, %vm3677
    %v3679 = vsel %vm3678, %v3671, %v3675
    %v3680 = vand.u32 2147483647, %v3655
    %vm3681 = vcmp.eq.f32.partialorder %v3680, 8.507059e+37
    %v3682 = vand.u32 %v3655, 2147483648
    %v3683 = vor.u32 1.1754944e-38, %v3682
    %v3684 = vsel %vm3681, %v3683, %v3679
    %v3685 = vmul.f32 1.0, %v3684
    %v3686 = vtanh.pop %v3646
    %v3687 = vtanh.pop %v3647
    %v3690 = vrot.slane %v3515, 7
    %v3691 = vrot.slane %v3516, 7
    %v3694 = vmul.f32 %v3670, %v3690
    %v3695 = vmul.f32 %v3685, %v3691
    %3698 = vrot.lane.b32.xlu0 %v3686, 64
    %v3699 = vpop.permute.xlu0 %3698
    %3700 = vrot.lane.b32.xlu0 %v3687, 64
    %v3701 = vpop.permute.xlu0 %3700
    %v3704 = vmul.f32 %v3670, %v3699
    %v3705 = vmul.f32 %v3685, %v3701
    %3708 = vrot.lane.b32.xlu0 %v3704, 32
    %v3709 = vpop.permute.xlu0 %3708
    %3710 = vrot.lane.b32.xlu0 %v3705, 32
    %v3711 = vpop.permute.xlu0 %3710
    %v3714 = vadd.f32 %v3694, %v3709
    %v3715 = vadd.f32 %v3695, %v3711
    %v3716 = vtanh.pop %v3714
    %v3717 = vtanh.pop %v3715
    %3720 = vrot.lane.b32.xlu0 %v3716, 64
    %v3721 = vpop.permute.xlu0 %3720
    %3722 = vrot.lane.b32.xlu0 %v3717, 64
    %v3723 = vpop.permute.xlu0 %3722
    %v3726 = vmul.f32 %v3670, %v3721
    %v3727 = vmul.f32 %v3685, %v3723
    %v3730 = vrot.slane %v3726, 5
    %v3731 = vrot.slane %v3727, 4
    %v3732 = vsel %vm364, %v3731, %v3730
    %3733 = vrot.lane.b32.xlu0 %v3732, 32
    %v3734 = vpop.permute.xlu0 %3733
    %v3735 = vsel %vm254, %v3734, 0
    %3737 = vmatpush.msra.mxu0 0.0
    %3738 = vmatpush.msra.mxu0 0.0
    %3739 = vmatpush.msra.mxu0 0.0
    %3740 = vmatpush.msra.mxu0 0.0
    %3741 = vmatpush.msra.mxu0 0.0
    %3742 = vmatpush.msra.mxu0 0.0
    %3743 = vmatpush.msra.mxu0 0.0
    %3744 = vmatpush.msra.mxu0 0.0
    %3745 = vmatpush.msra.mxu0 0.0
    %3746 = vmatpush.msra.mxu0 0.0
    %3747 = vmatpush.msra.mxu0 0.0
    %3748 = vmatpush.msra.mxu0 0.0
    %3749 = vmatpush.msra.mxu0 %v2632
    %3750 = vmatpush.msra.mxu0 %v2631
    %3751 = vmatpush.msra.mxu0 %v2630
    %3752 = vmatpush.msra.mxu0 %v2629
    %3753 = vmatmul.f32.gmra.mxu0 %v3735
    %v3754 = vpop.f32.mrf.mxu0
    %v3755 = vadd.f32 %v2739, %v3754
    %3756 = vdwg.mxu0
    %3758 = vrot.lane.b32.xlu0 %v3620, 32
    %v3759 = vpop.permute.xlu0 %3758
    %v3760 = vsel %vm254, %v3759, 0
    %3762 = vmatpush.msra.mxu0 0.0
    %3763 = vmatpush.msra.mxu0 0.0
    %3764 = vmatpush.msra.mxu0 0.0
    %3765 = vmatpush.msra.mxu0 0.0
    %3766 = vmatpush.msra.mxu0 0.0
    %3767 = vmatpush.msra.mxu0 0.0
    %3768 = vmatpush.msra.mxu0 0.0
    %3769 = vmatpush.msra.mxu0 0.0
    %3770 = vmatpush.msra.mxu0 0.0
    %3771 = vmatpush.msra.mxu0 0.0
    %3772 = vmatpush.msra.mxu0 0.0
    %3773 = vmatpush.msra.mxu0 0.0
    %3774 = vmatpush.msra.mxu0 %v2636
    %3775 = vmatpush.msra.mxu0 %v2635
    %3776 = vmatpush.msra.mxu0 %v2634
    %3777 = vmatpush.msra.mxu0 %v2633
    %3778 = vmatmul.f32.gmra.mxu0 %v3760
    %v3779 = vpop.f32.mrf.mxu0
    %v3780 = vadd.f32 0.0, %v3779
    %3781 = vdwg.mxu0
    %v3782 = vadd.f32 %v3755, %v3780
    %v3783 = vxor.u32 %v3782, 2147483648
    %v3784 = vmul.f32 %v3783, 1.442695
    %v3785 = vpow.pop %v3784
    %v3786 = vadd.f32 %v3785, 1.0
    %v3787 = vrcp.pop %v3786
    %v3788 = vmul.f32 %v3786, %v3787
    %v3789 = vsub.f32 1.0, %v3788
    %v3790 = vmul.f32 %v3787, %v3789
    %v3791 = vadd.f32 %v3787, %v3790
    %vm3792 = vweird.f32 %v3786
    %vm3793 = vweird.f32 %v3787
    %vm3794 = vmor %vm3792, %vm3793
    %v3795 = vsel %vm3794, %v3787, %v3791
    %v3796 = vand.u32 2147483647, %v3786
    %vm3797 = vcmp.eq.f32.partialorder %v3796, 8.507059e+37
    %v3798 = vand.u32 %v3786, 2147483648
    %v3799 = vor.u32 1.1754944e-38, %v3798
    %v3800 = vsel %vm3797, %v3799, %v3795
    %v3801 = vmul.f32 1.0, %v3800
    %v3802 = vtanh.pop %v3782
    %v3803 = vmul.f32 %v3801, %v3614
    %3805 = vrot.lane.b32.xlu0 %v3802, 64
    %v3806 = vpop.permute.xlu0 %3805
    %v3808 = vmul.f32 %v3801, %v3806
    %3810 = vrot.lane.b32.xlu0 %v3808, 32
    %v3811 = vpop.permute.xlu0 %3810
    %v3813 = vadd.f32 %v3803, %v3811
    %v3814 = vtanh.pop %v3813
    %3816 = vrot.lane.b32.xlu0 %v3814, 64
    %v3817 = vpop.permute.xlu0 %3816
    %v3819 = vmul.f32 %v3801, %v3817
    %3820 = vmatpush.msra.mxu0 0.0
    %3821 = vmatpush.msra.mxu0 0.0
    %3822 = vmatpush.msra.mxu0 0.0
    %3823 = vmatpush.msra.mxu0 0.0
    %3824 = vmatpush.msra.mxu0 0.0
    %3825 = vmatpush.msra.mxu0 0.0
    %3826 = vmatpush.msra.mxu0 0.0
    %3827 = vmatpush.msra.mxu0 0.0
    %3828 = vmatpush.msra.mxu0 0.0
    %3829 = vmatpush.msra.mxu0 0.0
    %3830 = vmatpush.msra.mxu0 0.0
    %3831 = vmatpush.msra.mxu0 0.0
    %3832 = vmatpush.msra.mxu0 %v2628
    %3833 = vmatpush.msra.mxu0 %v2627
    %3834 = vmatpush.msra.mxu0 %v2626
    %3835 = vmatpush.msra.mxu0 %v2625
    %3836 = vmatmul.f32.gmra.mxu0 %v3735
    %v3837 = vpop.f32.mrf.mxu0
    %v3838 = vadd.f32 0.0, %v3837
    %3839 = vdwg.mxu0
    %v3841 = vrot.slane %v3838, 2
    %v3842 = vrot.slane %v3838, 3
    %v3845 = vadd.f32 %v2620, %v3841
    %v3846 = vadd.f32 %v2623, %v3842
    %v3847 = vxor.u32 %v3845, 2147483648
    %v3848 = vxor.u32 %v3846, 2147483648
    %v3849 = vmul.f32 %v3847, 1.442695
    %v3850 = vpow.pop %v3849
    %v3851 = vmul.f32 %v3848, 1.442695
    %v3852 = vpow.pop %v3851
    %v3853 = vadd.f32 %v3850, 1.0
    %v3854 = vadd.f32 %v3852, 1.0
    %v3855 = vrcp.pop %v3853
    %v3856 = vmul.f32 %v3853, %v3855
    %v3857 = vsub.f32 1.0, %v3856
    %v3858 = vmul.f32 %v3855, %v3857
    %v3859 = vadd.f32 %v3855, %v3858
    %vm3860 = vweird.f32 %v3853
    %vm3861 = vweird.f32 %v3855
    %vm3862 = vmor %vm3860, %vm3861
    %v3863 = vsel %vm3862, %v3855, %v3859
    %v3864 = vand.u32 2147483647, %v3853
    %vm3865 = vcmp.eq.f32.partialorder %v3864, 8.507059e+37
    %v3866 = vand.u32 %v3853, 2147483648
    %v3867 = vor.u32 1.1754944e-38, %v3866
    %v3868 = vsel %vm3865, %v3867, %v3863
    %v3869 = vmul.f32 1.0, %v3868
    %v3870 = vrcp.pop %v3854
    %v3871 = vmul.f32 %v3854, %v3870
    %v3872 = vsub.f32 1.0, %v3871
    %v3873 = vmul.f32 %v3870, %v3872
    %v3874 = vadd.f32 %v3870, %v3873
    %vm3875 = vweird.f32 %v3854
    %vm3876 = vweird.f32 %v3870
    %vm3877 = vmor %vm3875, %vm3876
    %v3878 = vsel %vm3877, %v3870, %v3874
    %v3879 = vand.u32 2147483647, %v3854
    %vm3880 = vcmp.eq.f32.partialorder %v3879, 8.507059e+37
    %v3881 = vand.u32 %v3854, 2147483648
    %v3882 = vor.u32 1.1754944e-38, %v3881
    %v3883 = vsel %vm3880, %v3882, %v3878
    %v3884 = vmul.f32 1.0, %v3883
    %v3885 = vtanh.pop %v3845
    %v3886 = vtanh.pop %v3846
    %v3889 = vrot.slane %v3714, 7
    %v3890 = vrot.slane %v3715, 7
    %v3893 = vmul.f32 %v3869, %v3889
    %v3894 = vmul.f32 %v3884, %v3890
    %3897 = vrot.lane.b32.xlu0 %v3885, 64
    %v3898 = vpop.permute.xlu0 %3897
    %3899 = vrot.lane.b32.xlu0 %v3886, 64
    %v3900 = vpop.permute.xlu0 %3899
    %v3903 = vmul.f32 %v3869, %v3898
    %v3904 = vmul.f32 %v3884, %v3900
    %3907 = vrot.lane.b32.xlu0 %v3903, 32
    %v3908 = vpop.permute.xlu0 %3907
    %3909 = vrot.lane.b32.xlu0 %v3904, 32
    %v3910 = vpop.permute.xlu0 %3909
    %v3913 = vadd.f32 %v3893, %v3908
    %v3914 = vadd.f32 %v3894, %v3910
    %v3915 = vtanh.pop %v3913
    %v3916 = vtanh.pop %v3914
    %3919 = vrot.lane.b32.xlu0 %v3915, 64
    %v3920 = vpop.permute.xlu0 %3919
    %3921 = vrot.lane.b32.xlu0 %v3916, 64
    %v3922 = vpop.permute.xlu0 %3921
    %v3925 = vmul.f32 %v3869, %v3920
    %v3926 = vmul.f32 %v3884, %v3922
    %v3929 = vrot.slane %v3925, 6
    %v3930 = vrot.slane %v3926, 5
    %v3931 = vsel %vm364, %v3930, %v3929
    %3932 = vrot.lane.b32.xlu0 %v3931, 32
    %v3933 = vpop.permute.xlu0 %3932
    %v3934 = vsel %vm254, %v3933, 0
    %3936 = vmatpush.msra.mxu0 0.0
    %3937 = vmatpush.msra.mxu0 0.0
    %3938 = vmatpush.msra.mxu0 0.0
    %3939 = vmatpush.msra.mxu0 0.0
    %3940 = vmatpush.msra.mxu0 0.0
    %3941 = vmatpush.msra.mxu0 0.0
    %3942 = vmatpush.msra.mxu0 0.0
    %3943 = vmatpush.msra.mxu0 0.0
    %3944 = vmatpush.msra.mxu0 0.0
    %3945 = vmatpush.msra.mxu0 0.0
    %3946 = vmatpush.msra.mxu0 0.0
    %3947 = vmatpush.msra.mxu0 0.0
    %3948 = vmatpush.msra.mxu0 %v2632
    %3949 = vmatpush.msra.mxu0 %v2631
    %3950 = vmatpush.msra.mxu0 %v2630
    %3951 = vmatpush.msra.mxu0 %v2629
    %3952 = vmatmul.f32.gmra.mxu0 %v3934
    %v3953 = vpop.f32.mrf.mxu0
    %v3954 = vadd.f32 %v2739, %v3953
    %3955 = vdwg.mxu0
    %3957 = vrot.lane.b32.xlu0 %v3819, 32
    %v3958 = vpop.permute.xlu0 %3957
    %v3959 = vsel %vm254, %v3958, 0
    %3961 = vmatpush.msra.mxu0 0.0
    %3962 = vmatpush.msra.mxu0 0.0
    %3963 = vmatpush.msra.mxu0 0.0
    %3964 = vmatpush.msra.mxu0 0.0
    %3965 = vmatpush.msra.mxu0 0.0
    %3966 = vmatpush.msra.mxu0 0.0
    %3967 = vmatpush.msra.mxu0 0.0
    %3968 = vmatpush.msra.mxu0 0.0
    %3969 = vmatpush.msra.mxu0 0.0
    %3970 = vmatpush.msra.mxu0 0.0
    %3971 = vmatpush.msra.mxu0 0.0
    %3972 = vmatpush.msra.mxu0 0.0
    %3973 = vmatpush.msra.mxu0 %v2636
    %3974 = vmatpush.msra.mxu0 %v2635
    %3975 = vmatpush.msra.mxu0 %v2634
    %3976 = vmatpush.msra.mxu0 %v2633
    %3977 = vmatmul.f32.gmra.mxu0 %v3959
    %v3978 = vpop.f32.mrf.mxu0
    %v3979 = vadd.f32 0.0, %v3978
    %3980 = vdwg.mxu0
    %v3981 = vadd.f32 %v3954, %v3979
    %v3982 = vxor.u32 %v3981, 2147483648
    %v3983 = vmul.f32 %v3982, 1.442695
    %v3984 = vpow.pop %v3983
    %v3985 = vadd.f32 %v3984, 1.0
    %v3986 = vrcp.pop %v3985
    %v3987 = vmul.f32 %v3985, %v3986
    %v3988 = vsub.f32 1.0, %v3987
    %v3989 = vmul.f32 %v3986, %v3988
    %v3990 = vadd.f32 %v3986, %v3989
    %vm3991 = vweird.f32 %v3985
    %vm3992 = vweird.f32 %v3986
    %vm3993 = vmor %vm3991, %vm3992
    %v3994 = vsel %vm3993, %v3986, %v3990
    %v3995 = vand.u32 2147483647, %v3985
    %vm3996 = vcmp.eq.f32.partialorder %v3995, 8.507059e+37
    %v3997 = vand.u32 %v3985, 2147483648
    %v3998 = vor.u32 1.1754944e-38, %v3997
    %v3999 = vsel %vm3996, %v3998, %v3994
    %v4000 = vmul.f32 1.0, %v3999
    %v4001 = vtanh.pop %v3981
    %v4002 = vmul.f32 %v4000, %v3813
    %4004 = vrot.lane.b32.xlu0 %v4001, 64
    %v4005 = vpop.permute.xlu0 %4004
    %v4007 = vmul.f32 %v4000, %v4005
    %4009 = vrot.lane.b32.xlu0 %v4007, 32
    %v4010 = vpop.permute.xlu0 %4009
    %v4012 = vadd.f32 %v4002, %v4010
    %v4013 = vtanh.pop %v4012
    %4015 = vrot.lane.b32.xlu0 %v4013, 64
    %v4016 = vpop.permute.xlu0 %4015
    %v4018 = vmul.f32 %v4000, %v4016
    %4019 = vmatpush.msra.mxu0 0.0
    %4020 = vmatpush.msra.mxu0 0.0
    %4021 = vmatpush.msra.mxu0 0.0
    %4022 = vmatpush.msra.mxu0 0.0
    %4023 = vmatpush.msra.mxu0 0.0
    %4024 = vmatpush.msra.mxu0 0.0
    %4025 = vmatpush.msra.mxu0 0.0
    %4026 = vmatpush.msra.mxu0 0.0
    %4027 = vmatpush.msra.mxu0 0.0
    %4028 = vmatpush.msra.mxu0 0.0
    %4029 = vmatpush.msra.mxu0 0.0
    %4030 = vmatpush.msra.mxu0 0.0
    %4031 = vmatpush.msra.mxu0 %v2628
    %4032 = vmatpush.msra.mxu0 %v2627
    %4033 = vmatpush.msra.mxu0 %v2626
    %4034 = vmatpush.msra.mxu0 %v2625
    %4035 = vmatmul.f32.gmra.mxu0 %v3934
    %v4036 = vpop.f32.mrf.mxu0
    %v4037 = vadd.f32 0.0, %v4036
    %4038 = vdwg.mxu0
    %v4040 = vrot.slane %v4037, 1
    %v4041 = vrot.slane %v4037, 2
    %v4044 = vadd.f32 %v2620, %v4040
    %v4045 = vadd.f32 %v2623, %v4041
    %v4046 = vxor.u32 %v4044, 2147483648
    %v4047 = vxor.u32 %v4045, 2147483648
    %v4048 = vmul.f32 %v4046, 1.442695
    %v4049 = vpow.pop %v4048
    %v4050 = vmul.f32 %v4047, 1.442695
    %v4051 = vpow.pop %v4050
    %v4052 = vadd.f32 %v4049, 1.0
    %v4053 = vadd.f32 %v4051, 1.0
    %v4054 = vrcp.pop %v4052
    %v4055 = vmul.f32 %v4052, %v4054
    %v4056 = vsub.f32 1.0, %v4055
    %v4057 = vmul.f32 %v4054, %v4056
    %v4058 = vadd.f32 %v4054, %v4057
    %vm4059 = vweird.f32 %v4052
    %vm4060 = vweird.f32 %v4054
    %vm4061 = vmor %vm4059, %vm4060
    %v4062 = vsel %vm4061, %v4054, %v4058
    %v4063 = vand.u32 2147483647, %v4052
    %vm4064 = vcmp.eq.f32.partialorder %v4063, 8.507059e+37
    %v4065 = vand.u32 %v4052, 2147483648
    %v4066 = vor.u32 1.1754944e-38, %v4065
    %v4067 = vsel %vm4064, %v4066, %v4062
    %v4068 = vmul.f32 1.0, %v4067
    %v4069 = vrcp.pop %v4053
    %v4070 = vmul.f32 %v4053, %v4069
    %v4071 = vsub.f32 1.0, %v4070
    %v4072 = vmul.f32 %v4069, %v4071
    %v4073 = vadd.f32 %v4069, %v4072
    %vm4074 = vweird.f32 %v4053
    %vm4075 = vweird.f32 %v4069
    %vm4076 = vmor %vm4074, %vm4075
    %v4077 = vsel %vm4076, %v4069, %v4073
    %v4078 = vand.u32 2147483647, %v4053
    %vm4079 = vcmp.eq.f32.partialorder %v4078, 8.507059e+37
    %v4080 = vand.u32 %v4053, 2147483648
    %v4081 = vor.u32 1.1754944e-38, %v4080
    %v4082 = vsel %vm4079, %v4081, %v4077
    %v4083 = vmul.f32 1.0, %v4082
    %v4084 = vtanh.pop %v4044
    %v4085 = vtanh.pop %v4045
    %v4088 = vrot.slane %v3913, 7
    %v4089 = vrot.slane %v3914, 7
    %v4092 = vmul.f32 %v4068, %v4088
    %v4093 = vmul.f32 %v4083, %v4089
    %4096 = vrot.lane.b32.xlu0 %v4084, 64
    %v4097 = vpop.permute.xlu0 %4096
    %4098 = vrot.lane.b32.xlu0 %v4085, 64
    %v4099 = vpop.permute.xlu0 %4098
    %v4102 = vmul.f32 %v4068, %v4097
    %v4103 = vmul.f32 %v4083, %v4099
    %4106 = vrot.lane.b32.xlu0 %v4102, 32
    %v4107 = vpop.permute.xlu0 %4106
    %4108 = vrot.lane.b32.xlu0 %v4103, 32
    %v4109 = vpop.permute.xlu0 %4108
    %v4112 = vadd.f32 %v4092, %v4107
    %v4113 = vadd.f32 %v4093, %v4109
    %v4114 = vtanh.pop %v4112
    %v4115 = vtanh.pop %v4113
    %4118 = vrot.lane.b32.xlu0 %v4114, 64
    %v4119 = vpop.permute.xlu0 %4118
    %4120 = vrot.lane.b32.xlu0 %v4115, 64
    %v4121 = vpop.permute.xlu0 %4120
    %v4124 = vmul.f32 %v4068, %v4119
    %v4125 = vmul.f32 %v4083, %v4121
    %v4128 = vrot.slane %v4124, 7
    %v4129 = vrot.slane %v4125, 6
    %v4130 = vsel %vm364, %v4129, %v4128
    %4131 = vrot.lane.b32.xlu0 %v4130, 32
    %v4132 = vpop.permute.xlu0 %4131
    %v4133 = vsel %vm254, %v4132, 0
    %4135 = vmatpush.msra.mxu0 0.0
    %4136 = vmatpush.msra.mxu0 0.0
    %4137 = vmatpush.msra.mxu0 0.0
    %4138 = vmatpush.msra.mxu0 0.0
    %4139 = vmatpush.msra.mxu0 0.0
    %4140 = vmatpush.msra.mxu0 0.0
    %4141 = vmatpush.msra.mxu0 0.0
    %4142 = vmatpush.msra.mxu0 0.0
    %4143 = vmatpush.msra.mxu0 0.0
    %4144 = vmatpush.msra.mxu0 0.0
    %4145 = vmatpush.msra.mxu0 0.0
    %4146 = vmatpush.msra.mxu0 0.0
    %4147 = vmatpush.msra.mxu0 %v2632
    %4148 = vmatpush.msra.mxu0 %v2631
    %4149 = vmatpush.msra.mxu0 %v2630
    %4150 = vmatpush.msra.mxu0 %v2629
    %4151 = vmatmul.f32.gmra.mxu0 %v4133
    %v4152 = vpop.f32.mrf.mxu0
    %v4153 = vadd.f32 %v2739, %v4152
    %4154 = vdwg.mxu0
    %4156 = vrot.lane.b32.xlu0 %v4018, 32
    %v4157 = vpop.permute.xlu0 %4156
    %v4158 = vsel %vm254, %v4157, 0
    %4160 = vmatpush.msra.mxu0 0.0
    %4161 = vmatpush.msra.mxu0 0.0
    %4162 = vmatpush.msra.mxu0 0.0
    %4163 = vmatpush.msra.mxu0 0.0
    %4164 = vmatpush.msra.mxu0 0.0
    %4165 = vmatpush.msra.mxu0 0.0
    %4166 = vmatpush.msra.mxu0 0.0
    %4167 = vmatpush.msra.mxu0 0.0
    %4168 = vmatpush.msra.mxu0 0.0
    %4169 = vmatpush.msra.mxu0 0.0
    %4170 = vmatpush.msra.mxu0 0.0
    %4171 = vmatpush.msra.mxu0 0.0
    %4172 = vmatpush.msra.mxu0 %v2636
    %4173 = vmatpush.msra.mxu0 %v2635
    %4174 = vmatpush.msra.mxu0 %v2634
    %4175 = vmatpush.msra.mxu0 %v2633
    %4176 = vmatmul.f32.gmra.mxu0 %v4158
    %v4177 = vpop.f32.mrf.mxu0
    %v4178 = vadd.f32 0.0, %v4177
    %4179 = vdwg.mxu0
    %v4180 = vadd.f32 %v4153, %v4178
    %v4181 = vxor.u32 %v4180, 2147483648
    %v4182 = vmul.f32 %v4181, 1.442695
    %v4183 = vpow.pop %v4182
    %v4184 = vadd.f32 %v4183, 1.0
    %v4185 = vrcp.pop %v4184
    %v4186 = vmul.f32 %v4184, %v4185
    %v4187 = vsub.f32 1.0, %v4186
    %v4188 = vmul.f32 %v4185, %v4187
    %v4189 = vadd.f32 %v4185, %v4188
    %vm4190 = vweird.f32 %v4184
    %vm4191 = vweird.f32 %v4185
    %vm4192 = vmor %vm4190, %vm4191
    %v4193 = vsel %vm4192, %v4185, %v4189
    %v4194 = vand.u32 2147483647, %v4184
    %vm4195 = vcmp.eq.f32.partialorder %v4194, 8.507059e+37
    %v4196 = vand.u32 %v4184, 2147483648
    %v4197 = vor.u32 1.1754944e-38, %v4196
    %v4198 = vsel %vm4195, %v4197, %v4193
    %v4199 = vmul.f32 1.0, %v4198
    %v4200 = vtanh.pop %v4180
    %v4201 = vmul.f32 %v4199, %v4012
    %4203 = vrot.lane.b32.xlu0 %v4200, 64
    %v4204 = vpop.permute.xlu0 %4203
    %v4206 = vmul.f32 %v4199, %v4204
    %4208 = vrot.lane.b32.xlu0 %v4206, 32
    %v4209 = vpop.permute.xlu0 %4208
    %v4211 = vadd.f32 %v4201, %v4209
    %v4212 = vtanh.pop %v4211
    %4214 = vrot.lane.b32.xlu0 %v4212, 64
    %v4215 = vpop.permute.xlu0 %4214
    %v4217 = vmul.f32 %v4199, %v4215
    %v4218 = vld [vmem:[%s17] sm:$0xff]
    %v4219 = vld [vmem:[%s17 + $0x8] sm:$0xff]
    %v4220 = vld [vmem:[%s17 + $0x10] sm:$0xff]
    %v4221 = vld [vmem:[%s17 + $0x18] sm:$0xff]
    %v4222 = vld [vmem:[%s18] sm:$0x1]
    %v4224 = vperm.slane %v4222, 0
    %4227 = vrot.lane.b32.xlu0 %v4217, 32
    %v4228 = vpop.permute.xlu0 %4227
    %v4229 = vsel %vm254, %v4228, 0
    %4231 = vmatpush.msra.mxu0 0.0
    %4232 = vmatpush.msra.mxu0 0.0
    %4233 = vmatpush.msra.mxu0 0.0
    %4234 = vmatpush.msra.mxu0 0.0
    %4235 = vmatpush.msra.mxu0 0.0
    %4236 = vmatpush.msra.mxu0 0.0
    %4237 = vmatpush.msra.mxu0 0.0
    %4238 = vmatpush.msra.mxu0 0.0
    %4239 = vmatpush.msra.mxu0 0.0
    %4240 = vmatpush.msra.mxu0 0.0
    %4241 = vmatpush.msra.mxu0 0.0
    %4242 = vmatpush.msra.mxu0 0.0
    %4243 = vmatpush.msra.mxu0 %v4221
    %4244 = vmatpush.msra.mxu0 %v4220
    %4245 = vmatpush.msra.mxu0 %v4219
    %4246 = vmatpush.msra.mxu0 %v4218
    %4247 = vmatmul.f32.gmra.mxu0 %v4229
    %v4248 = vpop.f32.mrf.mxu0
    %v4249 = vadd.f32 %v4224, %v4248
    %4250 = vdwg.mxu0
    %vm4251 = vcmask 58368
    %4252 = vst.msk [vmem:[#allocation17] sm:$0x3] %vm4251, %v4249
    // Predicated region
    $region114: #{tpu_custom_call.1} parent=1 // pred_check
      _
    $region115: #{tpu_custom_call.1} parent=1 // pred_check_branch
      %4254 = sbr.rel (0) target = $region117
    $region116: #{tpu_custom_call.1} parent=1 // pred_region
      %4256 = vsyncadd [#allocation4], 0
      %s4258 = sshll.u32 [#allocation17], 4
      %s4259 = int_to_ptr.vmem [resolvable:$true] %s4258
      %s4260 = sshll.u32 %s19, 4
      %s4261 = int_to_ptr.hbm [resolvable:$true] %s4260
      %4263 = dma.vmem_to_hbm [thread:$0]  %s4259, 32, %s4261, [#allocation4]
    $region117: #{tpu_custom_call.1} parent=1 // pred_fallthru
      _
    // Predicated region
    $region118: #{tpu_custom_call.1} parent=1 // pred_check
      _
    $region119: #{tpu_custom_call.1} parent=1 // pred_check_branch
      %4265 = sbr.rel (0) target = $region121
    $region120: #{tpu_custom_call.1} parent=1 // pred_region
      %4267 = dma.done [#allocation4], 32
    $region121: #{tpu_custom_call.1} parent=1 // pred_fallthru
      _
    %4268 = vsyncpa [#allocation3], 1
    %4269 = vsyncpa [#allocation6], 1
    %4270 = vsyncpa [#allocation9], 1
    %4271 = vsyncpa [#allocation12], 1
    %4272 = vsyncpa [#allocation15], 1
    %4273 = vsyncpa [#allocation4], 1

</llo_original>
